<compile_context>
chip_gen: v7x
topology: tpu7x:2x2x1
jax: 0.10.0
libtpu: 0.0.40
codegen_flags: <defaults>
</compile_context>

<pallas_src>
import numpy as np
import jax
import jax.numpy as jnp
from jax.experimental import pallas as pl
from jax.experimental.pallas import tpu as pltpu


def _round_up(x, m):
    return (x + m - 1) // m * m


# ----------------------------------------------------------------------------
# Constant matrices: the 15 permutation-equivariant order-2 basis ops expressed
# as right-multiplications on the row-major flattened N*N index, plus the
# row-mean matrix (mean over j) and the diagonal indicator row.
# ----------------------------------------------------------------------------
def _basis_constants(n):
    n2 = n * n
    p = np.arange(n2)
    pi, pj = p // n, p % n
    ident = np.eye(n2, dtype=np.float32)
    perm = np.zeros((n2, n2), np.float32)            # transpose permutation
    perm[pj * n + pi, p] = 1.0
    dmat = np.zeros((n2, n), np.float32)             # diagonal extraction
    dmat[np.arange(n) * n + np.arange(n), np.arange(n)] = 1.0
    rmat = np.zeros((n2, n), np.float32)             # row means
    rmat[p, pi] = 1.0 / n
    cmat = np.zeros((n2, n), np.float32)             # col means
    cmat[p, pj] = 1.0 / n
    trv = dmat @ (np.ones((n, 1), np.float32) / n)   # trace mean
    totv = np.ones((n2, 1), np.float32) / n2         # total mean
    dT = dmat.T                                      # place vector on diagonal
    rbc = np.zeros((n, n2), np.float32)              # broadcast over rows
    rbc[pi, p] = 1.0
    cbc = np.zeros((n, n2), np.float32)              # broadcast over cols
    cbc[pj, p] = 1.0
    diag_row = dT.sum(axis=0, keepdims=True)         # (1,n2) diagonal indicator
    ones_row = np.ones((1, n2), np.float32)
    ops = np.stack(
        [ident, perm,
         dmat @ dT, rmat @ dT, cmat @ dT, trv @ diag_row, totv @ diag_row,
         dmat @ rbc, dmat @ cbc, rmat @ rbc, rmat @ cbc, cmat @ rbc, cmat @ cbc,
         trv @ ones_row, totv @ ones_row], axis=0).astype(np.float32)
    return ops, rmat.astype(np.float32), diag_row.astype(np.float32)


# ----------------------------------------------------------------------------
# Parameter prep: fold complex + A/B cross mixing into real block weights.
# ----------------------------------------------------------------------------
def _cross_block(Ar, Ai, Br, Bi):
    """(4O,4C) block implementing y1=A x1 + B x2, y2=A x2 + B x1 for complex A,B
    on the stacked layout [x1r;x2r;x1i;x2i] -> [y1r;y2r;y1i;y2i]."""
    return jnp.concatenate([
        jnp.concatenate([Ar, Br, -Ai, -Bi], axis=1),
        jnp.concatenate([Br, Ar, -Bi, -Ai], axis=1),
        jnp.concatenate([Ai, Bi, Ar, Br], axis=1),
        jnp.concatenate([Bi, Ai, Br, Ar], axis=1)], axis=0)


def init_params(key, early_struct=(1, 8), late_struct=(8, 3), vector_struct=(1, 8, 3)):
    keys = iter(jax.random.split(key, 128))
    nrm = lambda shape, s: jax.random.normal(next(keys), shape, jnp.float32) * s
    p = {'early_A': [], 'early_B': [], 'late_A': [], 'late_B': [],
         'vector': [], 'radrelu': []}
    for j in range(len(early_struct) - 1):
        cin, cout = early_struct[j], early_struct[j + 1]
        K = 15 * cin
        s = K ** -0.5
        for name in ('early_A', 'early_B'):
            p[name].append(dict(
                Wr=nrm((cout, K), s), Wi=nrm((cout, K), s),
                ball_r=nrm((cout, 1), 0.1), ball_i=nrm((cout, 1), 0.1),
                bdiag_r=nrm((cout, 1), 0.1), bdiag_i=nrm((cout, 1), 0.1)))
    for j in range(len(late_struct) - 1):
        cin, cout = late_struct[j], late_struct[j + 1]
        s = (2 * cin) ** -0.5
        for name in ('late_A', 'late_B'):
            p[name].append(dict(
                Wr=nrm((2, cout, cin), s), Wi=nrm((2, cout, cin), s),
                br=nrm((cout, 1), 0.1), bi=nrm((cout, 1), 0.1)))
    for j in range(len(vector_struct) - 1):
        cin, cout = vector_struct[j], vector_struct[j + 1]
        s = (2 * cin) ** -0.5
        p['vector'].append(dict(Wr=nrm((2, cout, cin), s), Wi=nrm((2, cout, cin), s)))
    for j in range(len(vector_struct) - 2):
        cout = vector_struct[j + 1]
        p['radrelu'].append(nrm((cout, 1), 0.1))
    return p


def prepare_params(params, n_points, c_in):
    """One-time prep: pre-stack A/B block weights, pre-sum biases, precompute
    basis matrices.  The mean-over-j of the tensor stage is folded into the
    last layer's basis matrices and bias."""
    n = n_points
    ops, rmean, diag_row = _basis_constants(n)
    ops_j = jnp.asarray(ops)                              # (15, n2, n2)
    rmean_j = jnp.asarray(rmean)                          # (n2, n)
    diag = jnp.asarray(diag_row)                          # (1, n2)

    n_early = len(params['early_A'])
    prep = {}
    if n_early > 1:
        prep['Mops_full'] = ops_j                         # only needed for mid layers
    prep['Mops_last'] = jnp.einsum('kab,bj->kaj', ops_j, rmean_j)   # (15, n2, n)

    early, kpad = [], []
    c_prev = c_in
    for li, (pA, pB) in enumerate(zip(params['early_A'], params['early_B'])):
        O, C = pA['Wr'].shape[0], c_prev
        Kp = _round_up(4 * C, 8)                          # sublane-align the stack
        kpad.append(Kp)
        blocks = []
        for k in range(15):
            sl = slice(k * C, (k + 1) * C)
            blk = _cross_block(pA['Wr'][:, sl], pA['Wi'][:, sl],
                               pB['Wr'][:, sl], pB['Wi'][:, sl])
            if Kp > 4 * C:
                blk = jnp.concatenate(
                    [blk, jnp.zeros((4 * O, Kp - 4 * C), jnp.float32)], axis=1)
            blocks.append(blk)
        w_big = jnp.concatenate(blocks, axis=1)           # (4O, 15*Kp)
        br = pA['ball_r'] + pB['ball_r'] + (pA['bdiag_r'] + pB['bdiag_r']) * diag
        bi = pA['ball_i'] + pB['ball_i'] + (pA['bdiag_i'] + pB['bdiag_i']) * diag
        bias = jnp.concatenate([br, br, bi, bi], axis=0)  # (4O, n2)
        if li == n_early - 1:
            bias = bias @ rmean_j                         # fold mean over j
        early.append((w_big, bias))
        c_prev = O
    prep['early'], prep['kpad'] = early, kpad

    late = []
    for pA, pB in zip(params['late_A'], params['late_B']):
        w_id = _cross_block(pA['Wr'][0], pA['Wi'][0], pB['Wr'][0], pB['Wi'][0])
        w_pool = _cross_block(pA['Wr'][1], pA['Wi'][1], pB['Wr'][1], pB['Wi'][1])
        br, bi = pA['br'] + pB['br'], pA['bi'] + pB['bi']
        late.append((w_id, w_pool, jnp.concatenate([br, br, bi, bi], axis=0)))
    prep['late'] = late

    vec = []
    for pv in params['vector']:                           # shared over both clouds
        Z0 = jnp.zeros_like(pv['Wr'][0])
        vec.append((_cross_block(pv['Wr'][0], pv['Wi'][0], Z0, Z0),
                    _cross_block(pv['Wr'][1], pv['Wi'][1], Z0, Z0)))
    prep['vector'] = vec
    prep['radrelu'] = [jnp.concatenate([rb, rb], axis=0) for rb in params['radrelu']]
    return prep


# ----------------------------------------------------------------------------
# Fused kernel (one grid step = one batch element; whole forward in one body).
# ----------------------------------------------------------------------------
def _complex_ctx_norm(yr, yi, eps):
    mr = jnp.mean(yr, axis=-1, keepdims=True)
    mi = jnp.mean(yi, axis=-1, keepdims=True)
    cr, ci = yr - mr, yi - mi
    var = jnp.mean(cr * cr + ci * ci, axis=-1, keepdims=True)
    inv = jax.lax.rsqrt(var + eps)          # EUP rsqrt instead of sqrt + divide
    return cr * inv, ci * inv


def _make_fused_kernel(n, n_early, n_late, n_vec, kpad, cn_type, tau, eps):
    n2 = n * n

    def kernel(*refs):
        it = iter(refs)
        x0_ref, cl_ref = next(it), next(it)
        m_full_ref = next(it) if n_early > 1 else None
        m_last_ref = next(it)
        eW = [(next(it), next(it)) for _ in range(n_early)]
        lW = [(next(it), next(it), next(it)) for _ in range(n_late)]
        vW = [(next(it), next(it)) for _ in range(n_vec)]
        rbs = [next(it) for _ in range(n_vec - 1)]
        out_w_ref, out_c_ref = next(it), next(it)

        # ---- early (order-2 tensor) stage ----
        x = x0_ref[0]                                          # (Kp0, n2)
        for l in range(n_early - 1):                           # intermediate layers
            w_big, bias = eW[l]
            f = jnp.concatenate(
                [jnp.dot(x, m_full_ref[k], preferred_element_type=jnp.float32)
                 for k in range(15)], axis=0)                  # (15*Kp, n2)
            y = jnp.dot(w_big[...], f,
                        preferred_element_type=jnp.float32) + bias[...]
            x = jnp.maximum(y, 0.0)
            kp_next = kpad[l + 1]
            if x.shape[0] != kp_next:
                x = jnp.concatenate(
                    [x, jnp.zeros((kp_next - x.shape[0], n2), jnp.float32)], axis=0)

        # last tensor layer: mean-over-j already folded into basis + bias
        w_big, bias_m = eW[-1]
        f = jnp.concatenate(
            [jnp.dot(x, m_last_ref[k], preferred_element_type=jnp.float32)
             for k in range(15)], axis=0)                      # (15*Kp, n)
        wv = jnp.dot(w_big[...], f,
                     preferred_element_type=jnp.float32) + bias_m[...]   # (4O, n)

        # ---- context norm on the weight branch ----
        if cn_type in (-1, 1):
            half = wv.shape[0] // 2
            wr, wi = _complex_ctx_norm(wv[:half], wv[half:], eps)
            wv = jnp.concatenate([wr, wi], axis=0)

        # ---- late (rotation-invariant vector) stage ----
        for l in range(n_late):
            w_id, w_pool, bias = lW[l]
            full = jnp.dot(w_id[...], wv, preferred_element_type=jnp.float32)
            pooled = jnp.dot(w_pool[...], wv, preferred_element_type=jnp.float32)
            wv = full + jnp.mean(pooled, axis=-1, keepdims=True) + bias[...]
            if l < n_late - 1:
                wv = jnp.maximum(wv, 0.0)
        out_w_ref[0] = wv                                      # [w1r;w2r;w1i;w2i]

        # ---- cloud (rotation-equivariant vector) stage ----
        z = cl_ref[0]                                          # (4*c_in, n)
        for l in range(n_vec):
            w_id, w_pool = vW[l]
            full = jnp.dot(w_id[...], z, preferred_element_type=jnp.float32)
            pooled = jnp.dot(w_pool[...], z, preferred_element_type=jnp.float32)
            z = full + jnp.mean(pooled, axis=-1, keepdims=True)
            if l < n_vec - 1:                                  # RadRelu
                h = z.shape[0] // 2
                zr, zi = z[:h], z[h:]
                rad = jnp.sqrt(zr * zr + zi * zi)
                scale = jnp.maximum(rad + rbs[l][...], 0.0) * pl.reciprocal(
                    rad + tau, approx=True)
                z = jnp.concatenate([zr * scale, zi * scale], axis=0)
        h = z.shape[0] // 2
        zr, zi = z[:h], z[h:]
        if cn_type in (-1, 2):
            zr, zi = _complex_ctx_norm(zr, zi, eps)
        out_c_ref[0] = jnp.concatenate([zr, zi], axis=0)       # [c1r;c2r;c1i;c2i]

    return kernel


# ----------------------------------------------------------------------------
# Forward pass (mirrors TwoCloudModule.forward)
# ----------------------------------------------------------------------------
def two_cloud_forward(prep, cloud1, cloud2, *, cn_type=-1, tau=0.01, eps=1e-5):
    cloud1 = cloud1.astype(jnp.float32)
    cloud2 = cloud2.astype(jnp.float32)
    B, C, n, _ = cloud1.shape
    n2 = n * n

    # tensorify_z:  T[b,c,i,j] = z_i * conj(z_j)
    z1r, z1i = cloud1[..., 0], cloud1[..., 1]
    z2r, z2i = cloud2[..., 0], cloud2[..., 1]

    def tensorify(zr, zi):
        tr = zr[..., :, None] * zr[..., None, :] + zi[..., :, None] * zi[..., None, :]
        ti = zi[..., :, None] * zr[..., None, :] - zr[..., :, None] * zi[..., None, :]
        return tr.reshape(B, C, n2), ti.reshape(B, C, n2)

    t1r, t1i = tensorify(z1r, z1i)
    t2r, t2i = tensorify(z2r, z2i)
    x0 = jnp.concatenate([t1r, t2r, t1i, t2i], axis=1)        # (B, 4C, n2)
    kp0 = prep['kpad'][0]
    if kp0 > 4 * C:
        x0 = jnp.concatenate(
            [x0, jnp.zeros((B, kp0 - 4 * C, n2), jnp.float32)], axis=1)
    cl = jnp.concatenate([z1r, z2r, z1i, z2i], axis=1)        # (B, 4C, n)

    def batched_spec(a):
        nd = a.ndim
        return pl.BlockSpec((1,) + a.shape[1:],
                            lambda b, _nd=nd: (b,) + (0,) * (_nd - 1))

    def const_spec(a):
        nd = a.ndim
        return pl.BlockSpec(a.shape, lambda b, _nd=nd: (0,) * _nd)

    n_early = len(prep['early'])
    inputs, in_specs = [x0, cl], [batched_spec(x0), batched_spec(cl)]
    if n_early > 1:
        inputs.append(prep['Mops_full'])
        in_specs.append(const_spec(prep['Mops_full']))
    inputs.append(prep['Mops_last'])
    in_specs.append(const_spec(prep['Mops_last']))
    for w_big, bias in prep['early']:
        inputs += [w_big, bias]
        in_specs += [const_spec(w_big), const_spec(bias)]
    for w_id, w_pool, bias in prep['late']:
        inputs += [w_id, w_pool, bias]
        in_specs += [const_spec(w_id), const_spec(w_pool), const_spec(bias)]
    for w_id, w_pool in prep['vector']:
        inputs += [w_id, w_pool]
        in_specs += [const_spec(w_id), const_spec(w_pool)]
    for rb in prep['radrelu']:
        inputs.append(rb)
        in_specs.append(const_spec(rb))

    o = prep['late'][-1][0].shape[0] // 4                     # output channels
    out_shape = tuple(jax.ShapeDtypeStruct((B, 4 * o, n), jnp.float32)
                      for _ in range(2))
    out_specs = tuple(pl.BlockSpec((1, 4 * o, n), lambda b: (b, 0, 0))
                      for _ in range(2))

    kernel = _make_fused_kernel(n, n_early, len(prep['late']), len(prep['vector']),
                                prep['kpad'], cn_type, tau, eps)
    out_w, out_c = pl.pallas_call(
        kernel,
        grid=(B,),
        in_specs=in_specs,
        out_specs=out_specs,
        out_shape=out_shape,
        compiler_params=pltpu.CompilerParams(
            # 2-way megacore split on v7x; negligible serial loop on v5e/v6e.
            dimension_semantics=("parallel",)),
    )(*inputs)

    def unstack(a):   # rows are [y1r(o); y2r(o); y1i(o); y2i(o)]
        y1 = jnp.stack([a[:, 0:o], a[:, 2 * o:3 * o]], axis=-1)
        y2 = jnp.stack([a[:, o:2 * o], a[:, 3 * o:4 * o]], axis=-1)
        return y1, y2

    weight1, weight2 = unstack(out_w)
    c1, c2 = unstack(out_c)
    return c1, c2, weight1, weight2


# ----------------------------------------------------------------------------
if __name__ == "__main__":
    key = jax.random.PRNGKey(0)
    k_param, k_c1, k_c2 = jax.random.split(key, 3)
    early_struct, late_struct, vector_struct = (1, 8), (8, 3), (1, 8, 3)
    params = init_params(k_param, early_struct, late_struct, vector_struct)

    B, c_in, n = 2, early_struct[0], 8
    prep = prepare_params(params, n, c_in)

    cloud1 = jax.random.normal(k_c1, (B, c_in, n, 2), jnp.float32)
    cloud2 = jax.random.normal(k_c2, (B, c_in, n, 2), jnp.float32)

    fwd = jax.jit(lambda a, b: two_cloud_forward(prep, a, b, cn_type=-1, tau=0.01))
    c1, c2, w1, w2 = fwd(cloud1, cloud2)
    for t in (c1, c2, w1, w2):
        jax.block_until_ready(t)

    co = late_struct[-1]
    assert c1.shape == (B, co, n, 2) and c2.shape == (B, co, n, 2)
    assert w1.shape == (B, co, n, 2) and w2.shape == (B, co, n, 2)
    assert all(bool(jnp.isfinite(t).all()) for t in (c1, c2, w1, w2))
    print("KERNEL_OK")
</pallas_src>

<mosaic_0001>
module attributes {stable_mosaic.version = 11 : i64} {
  func.func @kernel(%arg0: i32, %arg1: memref<1x8x64xf32, #tpu.memory_space<vmem>>, %arg2: memref<1x4x8xf32, #tpu.memory_space<vmem>>, %arg3: memref<15x64x8xf32, #tpu.memory_space<vmem>>, %arg4: memref<32x120xf32, #tpu.memory_space<vmem>>, %arg5: memref<32x8xf32, #tpu.memory_space<vmem>>, %arg6: memref<12x32xf32, #tpu.memory_space<vmem>>, %arg7: memref<12x32xf32, #tpu.memory_space<vmem>>, %arg8: memref<12x1xf32, #tpu.memory_space<vmem>>, %arg9: memref<32x4xf32, #tpu.memory_space<vmem>>, %arg10: memref<32x4xf32, #tpu.memory_space<vmem>>, %arg11: memref<12x32xf32, #tpu.memory_space<vmem>>, %arg12: memref<12x32xf32, #tpu.memory_space<vmem>>, %arg13: memref<16x1xf32, #tpu.memory_space<vmem>>, %arg14: memref<1x12x8xf32, #tpu.memory_space<vmem>>, %arg15: memref<1x12x8xf32, #tpu.memory_space<vmem>>) attributes {dimension_semantics = [#tpu.dimension_semantics<parallel>], iteration_bounds = array<i64: 2>, scalar_prefetch = 0 : i64, scratch_operands = 0 : i64, tpu.core_type = #tpu.core_type<tc>, window_params = [{transform_indices = @transform_0, window_bounds = array<i64: 1, 8, 64>}, {transform_indices = @transform_1, window_bounds = array<i64: 1, 4, 8>}, {pipeline_mode = #tpu.pipeline_mode<synchronous>, transform_indices = @transform_2, window_bounds = array<i64: 15, 64, 8>}, {pipeline_mode = #tpu.pipeline_mode<synchronous>, transform_indices = @transform_3, window_bounds = array<i64: 32, 120>}, {pipeline_mode = #tpu.pipeline_mode<synchronous>, transform_indices = @transform_4, window_bounds = array<i64: 32, 8>}, {pipeline_mode = #tpu.pipeline_mode<synchronous>, transform_indices = @transform_5, window_bounds = array<i64: 12, 32>}, {pipeline_mode = #tpu.pipeline_mode<synchronous>, transform_indices = @transform_6, window_bounds = array<i64: 12, 32>}, {pipeline_mode = #tpu.pipeline_mode<synchronous>, transform_indices = @transform_7, window_bounds = array<i64: 12, 1>}, {pipeline_mode = #tpu.pipeline_mode<synchronous>, transform_indices = @transform_8, window_bounds = array<i64: 32, 4>}, {pipeline_mode = #tpu.pipeline_mode<synchronous>, transform_indices = @transform_9, window_bounds = array<i64: 32, 4>}, {pipeline_mode = #tpu.pipeline_mode<synchronous>, transform_indices = @transform_10, window_bounds = array<i64: 12, 32>}, {pipeline_mode = #tpu.pipeline_mode<synchronous>, transform_indices = @transform_11, window_bounds = array<i64: 12, 32>}, {pipeline_mode = #tpu.pipeline_mode<synchronous>, transform_indices = @transform_12, window_bounds = array<i64: 16, 1>}, {transform_indices = @transform_13, window_bounds = array<i64: 1, 12, 8>}, {transform_indices = @transform_14, window_bounds = array<i64: 1, 12, 8>}]} {
    %c0 = arith.constant 0 : index
    %c0_0 = arith.constant 0 : index
    %c0_1 = arith.constant 0 : index
    %0 = vector.load %arg1[%c0, %c0_0, %c0_1] : memref<1x8x64xf32, #tpu.memory_space<vmem>>, vector<1x8x64xf32>
    %1 = vector.shape_cast %0 : vector<1x8x64xf32> to vector<8x64xf32>
    %c0_2 = arith.constant 0 : index
    %c0_3 = arith.constant 0 : index
    %c0_4 = arith.constant 0 : index
    %2 = vector.load %arg3[%c0_2, %c0_3, %c0_4] : memref<15x64x8xf32, #tpu.memory_space<vmem>>, vector<1x64x8xf32>
    %3 = vector.shape_cast %2 : vector<1x64x8xf32> to vector<64x8xf32>
    %cst = arith.constant dense<0.000000e+00> : vector<8x8xf32>
    %4 = tpu.matmul %1, %3, %cst {dimension_numbers = #tpu.dot_dimension_numbers<[1], [0], [0], [1], [0, 0, 1, 1], [], []>} : vector<8x64xf32>, vector<64x8xf32>, vector<8x8xf32> -> vector<8x8xf32>
    %c1 = arith.constant 1 : index
    %c0_5 = arith.constant 0 : index
    %c0_6 = arith.constant 0 : index
    %5 = vector.load %arg3[%c1, %c0_5, %c0_6] : memref<15x64x8xf32, #tpu.memory_space<vmem>>, vector<1x64x8xf32>
    %6 = vector.shape_cast %5 : vector<1x64x8xf32> to vector<64x8xf32>
    %cst_7 = arith.constant dense<0.000000e+00> : vector<8x8xf32>
    %7 = tpu.matmul %1, %6, %cst_7 {dimension_numbers = #tpu.dot_dimension_numbers<[1], [0], [0], [1], [0, 0, 1, 1], [], []>} : vector<8x64xf32>, vector<64x8xf32>, vector<8x8xf32> -> vector<8x8xf32>
    %c2 = arith.constant 2 : index
    %c0_8 = arith.constant 0 : index
    %c0_9 = arith.constant 0 : index
    %8 = vector.load %arg3[%c2, %c0_8, %c0_9] : memref<15x64x8xf32, #tpu.memory_space<vmem>>, vector<1x64x8xf32>
    %9 = vector.shape_cast %8 : vector<1x64x8xf32> to vector<64x8xf32>
    %cst_10 = arith.constant dense<0.000000e+00> : vector<8x8xf32>
    %10 = tpu.matmul %1, %9, %cst_10 {dimension_numbers = #tpu.dot_dimension_numbers<[1], [0], [0], [1], [0, 0, 1, 1], [], []>} : vector<8x64xf32>, vector<64x8xf32>, vector<8x8xf32> -> vector<8x8xf32>
    %c3 = arith.constant 3 : index
    %c0_11 = arith.constant 0 : index
    %c0_12 = arith.constant 0 : index
    %11 = vector.load %arg3[%c3, %c0_11, %c0_12] : memref<15x64x8xf32, #tpu.memory_space<vmem>>, vector<1x64x8xf32>
    %12 = vector.shape_cast %11 : vector<1x64x8xf32> to vector<64x8xf32>
    %cst_13 = arith.constant dense<0.000000e+00> : vector<8x8xf32>
    %13 = tpu.matmul %1, %12, %cst_13 {dimension_numbers = #tpu.dot_dimension_numbers<[1], [0], [0], [1], [0, 0, 1, 1], [], []>} : vector<8x64xf32>, vector<64x8xf32>, vector<8x8xf32> -> vector<8x8xf32>
    %c4 = arith.constant 4 : index
    %c0_14 = arith.constant 0 : index
    %c0_15 = arith.constant 0 : index
    %14 = vector.load %arg3[%c4, %c0_14, %c0_15] : memref<15x64x8xf32, #tpu.memory_space<vmem>>, vector<1x64x8xf32>
    %15 = vector.shape_cast %14 : vector<1x64x8xf32> to vector<64x8xf32>
    %cst_16 = arith.constant dense<0.000000e+00> : vector<8x8xf32>
    %16 = tpu.matmul %1, %15, %cst_16 {dimension_numbers = #tpu.dot_dimension_numbers<[1], [0], [0], [1], [0, 0, 1, 1], [], []>} : vector<8x64xf32>, vector<64x8xf32>, vector<8x8xf32> -> vector<8x8xf32>
    %c5 = arith.constant 5 : index
    %c0_17 = arith.constant 0 : index
    %c0_18 = arith.constant 0 : index
    %17 = vector.load %arg3[%c5, %c0_17, %c0_18] : memref<15x64x8xf32, #tpu.memory_space<vmem>>, vector<1x64x8xf32>
    %18 = vector.shape_cast %17 : vector<1x64x8xf32> to vector<64x8xf32>
    %cst_19 = arith.constant dense<0.000000e+00> : vector<8x8xf32>
    %19 = tpu.matmul %1, %18, %cst_19 {dimension_numbers = #tpu.dot_dimension_numbers<[1], [0], [0], [1], [0, 0, 1, 1], [], []>} : vector<8x64xf32>, vector<64x8xf32>, vector<8x8xf32> -> vector<8x8xf32>
    %c6 = arith.constant 6 : index
    %c0_20 = arith.constant 0 : index
    %c0_21 = arith.constant 0 : index
    %20 = vector.load %arg3[%c6, %c0_20, %c0_21] : memref<15x64x8xf32, #tpu.memory_space<vmem>>, vector<1x64x8xf32>
    %21 = vector.shape_cast %20 : vector<1x64x8xf32> to vector<64x8xf32>
    %cst_22 = arith.constant dense<0.000000e+00> : vector<8x8xf32>
    %22 = tpu.matmul %1, %21, %cst_22 {dimension_numbers = #tpu.dot_dimension_numbers<[1], [0], [0], [1], [0, 0, 1, 1], [], []>} : vector<8x64xf32>, vector<64x8xf32>, vector<8x8xf32> -> vector<8x8xf32>
    %c7 = arith.constant 7 : index
    %c0_23 = arith.constant 0 : index
    %c0_24 = arith.constant 0 : index
    %23 = vector.load %arg3[%c7, %c0_23, %c0_24] : memref<15x64x8xf32, #tpu.memory_space<vmem>>, vector<1x64x8xf32>
    %24 = vector.shape_cast %23 : vector<1x64x8xf32> to vector<64x8xf32>
    %cst_25 = arith.constant dense<0.000000e+00> : vector<8x8xf32>
    %25 = tpu.matmul %1, %24, %cst_25 {dimension_numbers = #tpu.dot_dimension_numbers<[1], [0], [0], [1], [0, 0, 1, 1], [], []>} : vector<8x64xf32>, vector<64x8xf32>, vector<8x8xf32> -> vector<8x8xf32>
    %c8 = arith.constant 8 : index
    %c0_26 = arith.constant 0 : index
    %c0_27 = arith.constant 0 : index
    %26 = vector.load %arg3[%c8, %c0_26, %c0_27] : memref<15x64x8xf32, #tpu.memory_space<vmem>>, vector<1x64x8xf32>
    %27 = vector.shape_cast %26 : vector<1x64x8xf32> to vector<64x8xf32>
    %cst_28 = arith.constant dense<0.000000e+00> : vector<8x8xf32>
    %28 = tpu.matmul %1, %27, %cst_28 {dimension_numbers = #tpu.dot_dimension_numbers<[1], [0], [0], [1], [0, 0, 1, 1], [], []>} : vector<8x64xf32>, vector<64x8xf32>, vector<8x8xf32> -> vector<8x8xf32>
    %c9 = arith.constant 9 : index
    %c0_29 = arith.constant 0 : index
    %c0_30 = arith.constant 0 : index
    %29 = vector.load %arg3[%c9, %c0_29, %c0_30] : memref<15x64x8xf32, #tpu.memory_space<vmem>>, vector<1x64x8xf32>
    %30 = vector.shape_cast %29 : vector<1x64x8xf32> to vector<64x8xf32>
    %cst_31 = arith.constant dense<0.000000e+00> : vector<8x8xf32>
    %31 = tpu.matmul %1, %30, %cst_31 {dimension_numbers = #tpu.dot_dimension_numbers<[1], [0], [0], [1], [0, 0, 1, 1], [], []>} : vector<8x64xf32>, vector<64x8xf32>, vector<8x8xf32> -> vector<8x8xf32>
    %c10 = arith.constant 10 : index
    %c0_32 = arith.constant 0 : index
    %c0_33 = arith.constant 0 : index
    %32 = vector.load %arg3[%c10, %c0_32, %c0_33] : memref<15x64x8xf32, #tpu.memory_space<vmem>>, vector<1x64x8xf32>
    %33 = vector.shape_cast %32 : vector<1x64x8xf32> to vector<64x8xf32>
    %cst_34 = arith.constant dense<0.000000e+00> : vector<8x8xf32>
    %34 = tpu.matmul %1, %33, %cst_34 {dimension_numbers = #tpu.dot_dimension_numbers<[1], [0], [0], [1], [0, 0, 1, 1], [], []>} : vector<8x64xf32>, vector<64x8xf32>, vector<8x8xf32> -> vector<8x8xf32>
    %c11 = arith.constant 11 : index
    %c0_35 = arith.constant 0 : index
    %c0_36 = arith.constant 0 : index
    %35 = vector.load %arg3[%c11, %c0_35, %c0_36] : memref<15x64x8xf32, #tpu.memory_space<vmem>>, vector<1x64x8xf32>
    %36 = vector.shape_cast %35 : vector<1x64x8xf32> to vector<64x8xf32>
    %cst_37 = arith.constant dense<0.000000e+00> : vector<8x8xf32>
    %37 = tpu.matmul %1, %36, %cst_37 {dimension_numbers = #tpu.dot_dimension_numbers<[1], [0], [0], [1], [0, 0, 1, 1], [], []>} : vector<8x64xf32>, vector<64x8xf32>, vector<8x8xf32> -> vector<8x8xf32>
    %c12 = arith.constant 12 : index
    %c0_38 = arith.constant 0 : index
    %c0_39 = arith.constant 0 : index
    %38 = vector.load %arg3[%c12, %c0_38, %c0_39] : memref<15x64x8xf32, #tpu.memory_space<vmem>>, vector<1x64x8xf32>
    %39 = vector.shape_cast %38 : vector<1x64x8xf32> to vector<64x8xf32>
    %cst_40 = arith.constant dense<0.000000e+00> : vector<8x8xf32>
    %40 = tpu.matmul %1, %39, %cst_40 {dimension_numbers = #tpu.dot_dimension_numbers<[1], [0], [0], [1], [0, 0, 1, 1], [], []>} : vector<8x64xf32>, vector<64x8xf32>, vector<8x8xf32> -> vector<8x8xf32>
    %c13 = arith.constant 13 : index
    %c0_41 = arith.constant 0 : index
    %c0_42 = arith.constant 0 : index
    %41 = vector.load %arg3[%c13, %c0_41, %c0_42] : memref<15x64x8xf32, #tpu.memory_space<vmem>>, vector<1x64x8xf32>
    %42 = vector.shape_cast %41 : vector<1x64x8xf32> to vector<64x8xf32>
    %cst_43 = arith.constant dense<0.000000e+00> : vector<8x8xf32>
    %43 = tpu.matmul %1, %42, %cst_43 {dimension_numbers = #tpu.dot_dimension_numbers<[1], [0], [0], [1], [0, 0, 1, 1], [], []>} : vector<8x64xf32>, vector<64x8xf32>, vector<8x8xf32> -> vector<8x8xf32>
    %c14 = arith.constant 14 : index
    %c0_44 = arith.constant 0 : index
    %c0_45 = arith.constant 0 : index
    %44 = vector.load %arg3[%c14, %c0_44, %c0_45] : memref<15x64x8xf32, #tpu.memory_space<vmem>>, vector<1x64x8xf32>
    %45 = vector.shape_cast %44 : vector<1x64x8xf32> to vector<64x8xf32>
    %cst_46 = arith.constant dense<0.000000e+00> : vector<8x8xf32>
    %46 = tpu.matmul %1, %45, %cst_46 {dimension_numbers = #tpu.dot_dimension_numbers<[1], [0], [0], [1], [0, 0, 1, 1], [], []>} : vector<8x64xf32>, vector<64x8xf32>, vector<8x8xf32> -> vector<8x8xf32>
    %47 = tpu.concatenate %4, %7, %10, %13, %16, %19, %22, %25, %28, %31, %34, %37, %40, %43, %46 in 0 : vector<8x8xf32>, vector<8x8xf32>, vector<8x8xf32>, vector<8x8xf32>, vector<8x8xf32>, vector<8x8xf32>, vector<8x8xf32>, vector<8x8xf32>, vector<8x8xf32>, vector<8x8xf32>, vector<8x8xf32>, vector<8x8xf32>, vector<8x8xf32>, vector<8x8xf32>, vector<8x8xf32> -> vector<120x8xf32>
    %c0_47 = arith.constant 0 : index
    %c0_48 = arith.constant 0 : index
    %48 = vector.load %arg4[%c0_47, %c0_48] : memref<32x120xf32, #tpu.memory_space<vmem>>, vector<32x120xf32>
    %cst_49 = arith.constant dense<0.000000e+00> : vector<32x8xf32>
    %49 = tpu.matmul %48, %47, %cst_49 {dimension_numbers = #tpu.dot_dimension_numbers<[1], [0], [0], [1], [0, 0, 1, 1], [], []>} : vector<32x120xf32>, vector<120x8xf32>, vector<32x8xf32> -> vector<32x8xf32>
    %c0_50 = arith.constant 0 : index
    %c0_51 = arith.constant 0 : index
    %50 = vector.load %arg5[%c0_50, %c0_51] : memref<32x8xf32, #tpu.memory_space<vmem>>, vector<32x8xf32>
    %51 = arith.addf %49, %50 : vector<32x8xf32>
    %52 = vector.extract_strided_slice %51 {offsets = [0, 0], sizes = [16, 8], strides = [1, 1]} : vector<32x8xf32> to vector<16x8xf32>
    %53 = vector.extract_strided_slice %51 {offsets = [16, 0], sizes = [16, 8], strides = [1, 1]} : vector<32x8xf32> to vector<16x8xf32>
    %cst_52 = arith.constant dense<0.000000e+00> : vector<16xf32>
    %54 = vector.multi_reduction <add>, %52, %cst_52 [1] : vector<16x8xf32> to vector<16xf32>
    %55 = vector.shape_cast %54 : vector<16xf32> to vector<16x1xf32>
    %cst_53 = arith.constant 8.000000e+00 : f32
    %56 = vector.broadcast %cst_53 : f32 to vector<16x1xf32>
    %57 = arith.divf %55, %56 : vector<16x1xf32>
    %cst_54 = arith.constant dense<0.000000e+00> : vector<16xf32>
    %58 = vector.multi_reduction <add>, %53, %cst_54 [1] : vector<16x8xf32> to vector<16xf32>
    %59 = vector.shape_cast %58 : vector<16xf32> to vector<16x1xf32>
    %cst_55 = arith.constant 8.000000e+00 : f32
    %60 = vector.broadcast %cst_55 : f32 to vector<16x1xf32>
    %61 = arith.divf %59, %60 : vector<16x1xf32>
    %62 = vector.broadcast %57 : vector<16x1xf32> to vector<16x8xf32>
    %63 = arith.subf %52, %62 : vector<16x8xf32>
    %64 = vector.broadcast %61 : vector<16x1xf32> to vector<16x8xf32>
    %65 = arith.subf %53, %64 : vector<16x8xf32>
    %66 = arith.mulf %63, %63 : vector<16x8xf32>
    %67 = arith.mulf %65, %65 : vector<16x8xf32>
    %68 = arith.addf %66, %67 : vector<16x8xf32>
    %cst_56 = arith.constant dense<0.000000e+00> : vector<16xf32>
    %69 = vector.multi_reduction <add>, %68, %cst_56 [1] : vector<16x8xf32> to vector<16xf32>
    %70 = vector.shape_cast %69 : vector<16xf32> to vector<16x1xf32>
    %cst_57 = arith.constant 8.000000e+00 : f32
    %71 = vector.broadcast %cst_57 : f32 to vector<16x1xf32>
    %72 = arith.divf %70, %71 : vector<16x1xf32>
    %cst_58 = arith.constant 9.99999974E-6 : f32
    %73 = vector.broadcast %cst_58 : f32 to vector<16x1xf32>
    %74 = arith.addf %72, %73 : vector<16x1xf32>
    %75 = math.rsqrt %74 : vector<16x1xf32>
    %76 = vector.broadcast %75 : vector<16x1xf32> to vector<16x8xf32>
    %77 = arith.mulf %63, %76 : vector<16x8xf32>
    %78 = vector.broadcast %75 : vector<16x1xf32> to vector<16x8xf32>
    %79 = arith.mulf %65, %78 : vector<16x8xf32>
    %80 = tpu.concatenate %77, %79 in 0 : vector<16x8xf32>, vector<16x8xf32> -> vector<32x8xf32>
    %c0_59 = arith.constant 0 : index
    %c0_60 = arith.constant 0 : index
    %81 = vector.load %arg6[%c0_59, %c0_60] : memref<12x32xf32, #tpu.memory_space<vmem>>, vector<12x32xf32>
    %cst_61 = arith.constant dense<0.000000e+00> : vector<12x8xf32>
    %82 = tpu.matmul %81, %80, %cst_61 {dimension_numbers = #tpu.dot_dimension_numbers<[1], [0], [0], [1], [0, 0, 1, 1], [], []>} : vector<12x32xf32>, vector<32x8xf32>, vector<12x8xf32> -> vector<12x8xf32>
    %c0_62 = arith.constant 0 : index
    %c0_63 = arith.constant 0 : index
    %83 = vector.load %arg7[%c0_62, %c0_63] : memref<12x32xf32, #tpu.memory_space<vmem>>, vector<12x32xf32>
    %cst_64 = arith.constant dense<0.000000e+00> : vector<12x8xf32>
    %84 = tpu.matmul %83, %80, %cst_64 {dimension_numbers = #tpu.dot_dimension_numbers<[1], [0], [0], [1], [0, 0, 1, 1], [], []>} : vector<12x32xf32>, vector<32x8xf32>, vector<12x8xf32> -> vector<12x8xf32>
    %cst_65 = arith.constant dense<0.000000e+00> : vector<12xf32>
    %85 = vector.multi_reduction <add>, %84, %cst_65 [1] : vector<12x8xf32> to vector<12xf32>
    %86 = vector.shape_cast %85 : vector<12xf32> to vector<12x1xf32>
    %cst_66 = arith.constant 8.000000e+00 : f32
    %87 = vector.broadcast %cst_66 : f32 to vector<12x1xf32>
    %88 = arith.divf %86, %87 : vector<12x1xf32>
    %89 = vector.broadcast %88 : vector<12x1xf32> to vector<12x8xf32>
    %90 = arith.addf %82, %89 : vector<12x8xf32>
    %c0_67 = arith.constant 0 : index
    %c0_68 = arith.constant 0 : index
    %91 = vector.load %arg8[%c0_67, %c0_68] : memref<12x1xf32, #tpu.memory_space<vmem>>, vector<12x1xf32>
    %92 = vector.broadcast %91 : vector<12x1xf32> to vector<12x8xf32>
    %93 = arith.addf %90, %92 : vector<12x8xf32>
    %c0_69 = arith.constant 0 : index
    %c0_70 = arith.constant 0 : index
    %c0_71 = arith.constant 0 : index
    %94 = vector.load %arg14[%c0_69, %c0_70, %c0_71] : memref<1x12x8xf32, #tpu.memory_space<vmem>>, vector<1x12x8xf32>
    %95 = vector.shape_cast %94 : vector<1x12x8xf32> to vector<12x8xf32>
    %96 = vector.shape_cast %93 : vector<12x8xf32> to vector<1x12x8xf32>
    tpu.vector_store %arg14[%c0_69, %c0_70, %c0_71], %96 {strides = array<i32>} : memref<1x12x8xf32, #tpu.memory_space<vmem>>, vector<1x12x8xf32>,
    %c0_72 = arith.constant 0 : index
    %c0_73 = arith.constant 0 : index
    %c0_74 = arith.constant 0 : index
    %97 = vector.load %arg2[%c0_72, %c0_73, %c0_74] : memref<1x4x8xf32, #tpu.memory_space<vmem>>, vector<1x4x8xf32>
    %98 = vector.shape_cast %97 : vector<1x4x8xf32> to vector<4x8xf32>
    %c0_75 = arith.constant 0 : index
    %c0_76 = arith.constant 0 : index
    %99 = vector.load %arg9[%c0_75, %c0_76] : memref<32x4xf32, #tpu.memory_space<vmem>>, vector<32x4xf32>
    %cst_77 = arith.constant dense<0.000000e+00> : vector<32x8xf32>
    %100 = tpu.matmul %99, %98, %cst_77 {dimension_numbers = #tpu.dot_dimension_numbers<[1], [0], [0], [1], [0, 0, 1, 1], [], []>} : vector<32x4xf32>, vector<4x8xf32>, vector<32x8xf32> -> vector<32x8xf32>
    %c0_78 = arith.constant 0 : index
    %c0_79 = arith.constant 0 : index
    %101 = vector.load %arg10[%c0_78, %c0_79] : memref<32x4xf32, #tpu.memory_space<vmem>>, vector<32x4xf32>
    %cst_80 = arith.constant dense<0.000000e+00> : vector<32x8xf32>
    %102 = tpu.matmul %101, %98, %cst_80 {dimension_numbers = #tpu.dot_dimension_numbers<[1], [0], [0], [1], [0, 0, 1, 1], [], []>} : vector<32x4xf32>, vector<4x8xf32>, vector<32x8xf32> -> vector<32x8xf32>
    %cst_81 = arith.constant dense<0.000000e+00> : vector<32xf32>
    %103 = vector.multi_reduction <add>, %102, %cst_81 [1] : vector<32x8xf32> to vector<32xf32>
    %104 = vector.shape_cast %103 : vector<32xf32> to vector<32x1xf32>
    %cst_82 = arith.constant 8.000000e+00 : f32
    %105 = vector.broadcast %cst_82 : f32 to vector<32x1xf32>
    %106 = arith.divf %104, %105 : vector<32x1xf32>
    %107 = vector.broadcast %106 : vector<32x1xf32> to vector<32x8xf32>
    %108 = arith.addf %100, %107 : vector<32x8xf32>
    %109 = vector.extract_strided_slice %108 {offsets = [0, 0], sizes = [16, 8], strides = [1, 1]} : vector<32x8xf32> to vector<16x8xf32>
    %110 = vector.extract_strided_slice %108 {offsets = [16, 0], sizes = [16, 8], strides = [1, 1]} : vector<32x8xf32> to vector<16x8xf32>
    %111 = arith.mulf %109, %109 : vector<16x8xf32>
    %112 = arith.mulf %110, %110 : vector<16x8xf32>
    %113 = arith.addf %111, %112 : vector<16x8xf32>
    %114 = math.sqrt %113 : vector<16x8xf32>
    %c0_83 = arith.constant 0 : index
    %c0_84 = arith.constant 0 : index
    %115 = vector.load %arg13[%c0_83, %c0_84] : memref<16x1xf32, #tpu.memory_space<vmem>>, vector<16x1xf32>
    %116 = vector.broadcast %115 : vector<16x1xf32> to vector<16x8xf32>
    %117 = arith.addf %114, %116 : vector<16x8xf32>
    %cst_85 = arith.constant 0.000000e+00 : f32
    %118 = vector.broadcast %cst_85 : f32 to vector<16x8xf32>
    %119 = arith.maximumf %117, %118 : vector<16x8xf32>
    %cst_86 = arith.constant 0.00999999977 : f32
    %120 = vector.broadcast %cst_86 : f32 to vector<16x8xf32>
    %121 = arith.addf %114, %120 : vector<16x8xf32>
    %122 = tpu.reciprocal %121 {approx = true} : vector<16x8xf32> -> vector<16x8xf32>
    %123 = arith.mulf %119, %122 : vector<16x8xf32>
    %124 = arith.mulf %109, %123 : vector<16x8xf32>
    %125 = arith.mulf %110, %123 : vector<16x8xf32>
    %126 = tpu.concatenate %124, %125 in 0 : vector<16x8xf32>, vector<16x8xf32> -> vector<32x8xf32>
    %c0_87 = arith.constant 0 : index
    %c0_88 = arith.constant 0 : index
    %127 = vector.load %arg11[%c0_87, %c0_88] : memref<12x32xf32, #tpu.memory_space<vmem>>, vector<12x32xf32>
    %cst_89 = arith.constant dense<0.000000e+00> : vector<12x8xf32>
    %128 = tpu.matmul %127, %126, %cst_89 {dimension_numbers = #tpu.dot_dimension_numbers<[1], [0], [0], [1], [0, 0, 1, 1], [], []>} : vector<12x32xf32>, vector<32x8xf32>, vector<12x8xf32> -> vector<12x8xf32>
    %c0_90 = arith.constant 0 : index
    %c0_91 = arith.constant 0 : index
    %129 = vector.load %arg12[%c0_90, %c0_91] : memref<12x32xf32, #tpu.memory_space<vmem>>, vector<12x32xf32>
    %cst_92 = arith.constant dense<0.000000e+00> : vector<12x8xf32>
    %130 = tpu.matmul %129, %126, %cst_92 {dimension_numbers = #tpu.dot_dimension_numbers<[1], [0], [0], [1], [0, 0, 1, 1], [], []>} : vector<12x32xf32>, vector<32x8xf32>, vector<12x8xf32> -> vector<12x8xf32>
    %cst_93 = arith.constant dense<0.000000e+00> : vector<12xf32>
    %131 = vector.multi_reduction <add>, %130, %cst_93 [1] : vector<12x8xf32> to vector<12xf32>
    %132 = vector.shape_cast %131 : vector<12xf32> to vector<12x1xf32>
    %cst_94 = arith.constant 8.000000e+00 : f32
    %133 = vector.broadcast %cst_94 : f32 to vector<12x1xf32>
    %134 = arith.divf %132, %133 : vector<12x1xf32>
    %135 = vector.broadcast %134 : vector<12x1xf32> to vector<12x8xf32>
    %136 = arith.addf %128, %135 : vector<12x8xf32>
    %137 = vector.extract_strided_slice %136 {offsets = [0, 0], sizes = [6, 8], strides = [1, 1]} : vector<12x8xf32> to vector<6x8xf32>
    %138 = vector.extract_strided_slice %136 {offsets = [6, 0], sizes = [6, 8], strides = [1, 1]} : vector<12x8xf32> to vector<6x8xf32>
    %cst_95 = arith.constant dense<0.000000e+00> : vector<6xf32>
    %139 = vector.multi_reduction <add>, %137, %cst_95 [1] : vector<6x8xf32> to vector<6xf32>
    %140 = vector.shape_cast %139 : vector<6xf32> to vector<6x1xf32>
    %cst_96 = arith.constant 8.000000e+00 : f32
    %141 = vector.broadcast %cst_96 : f32 to vector<6x1xf32>
    %142 = arith.divf %140, %141 : vector<6x1xf32>
    %cst_97 = arith.constant dense<0.000000e+00> : vector<6xf32>
    %143 = vector.multi_reduction <add>, %138, %cst_97 [1] : vector<6x8xf32> to vector<6xf32>
    %144 = vector.shape_cast %143 : vector<6xf32> to vector<6x1xf32>
    %cst_98 = arith.constant 8.000000e+00 : f32
    %145 = vector.broadcast %cst_98 : f32 to vector<6x1xf32>
    %146 = arith.divf %144, %145 : vector<6x1xf32>
    %147 = vector.broadcast %142 : vector<6x1xf32> to vector<6x8xf32>
    %148 = arith.subf %137, %147 : vector<6x8xf32>
    %149 = vector.broadcast %146 : vector<6x1xf32> to vector<6x8xf32>
    %150 = arith.subf %138, %149 : vector<6x8xf32>
    %151 = arith.mulf %148, %148 : vector<6x8xf32>
    %152 = arith.mulf %150, %150 : vector<6x8xf32>
    %153 = arith.addf %151, %152 : vector<6x8xf32>
    %cst_99 = arith.constant dense<0.000000e+00> : vector<6xf32>
    %154 = vector.multi_reduction <add>, %153, %cst_99 [1] : vector<6x8xf32> to vector<6xf32>
    %155 = vector.shape_cast %154 : vector<6xf32> to vector<6x1xf32>
    %cst_100 = arith.constant 8.000000e+00 : f32
    %156 = vector.broadcast %cst_100 : f32 to vector<6x1xf32>
    %157 = arith.divf %155, %156 : vector<6x1xf32>
    %cst_101 = arith.constant 9.99999974E-6 : f32
    %158 = vector.broadcast %cst_101 : f32 to vector<6x1xf32>
    %159 = arith.addf %157, %158 : vector<6x1xf32>
    %160 = math.rsqrt %159 : vector<6x1xf32>
    %161 = vector.broadcast %160 : vector<6x1xf32> to vector<6x8xf32>
    %162 = arith.mulf %148, %161 : vector<6x8xf32>
    %163 = vector.broadcast %160 : vector<6x1xf32> to vector<6x8xf32>
    %164 = arith.mulf %150, %163 : vector<6x8xf32>
    %165 = tpu.concatenate %162, %164 in 0 : vector<6x8xf32>, vector<6x8xf32> -> vector<12x8xf32>
    %c0_102 = arith.constant 0 : index
    %c0_103 = arith.constant 0 : index
    %c0_104 = arith.constant 0 : index
    %166 = vector.load %arg15[%c0_102, %c0_103, %c0_104] : memref<1x12x8xf32, #tpu.memory_space<vmem>>, vector<1x12x8xf32>
    %167 = vector.shape_cast %166 : vector<1x12x8xf32> to vector<12x8xf32>
    %168 = vector.shape_cast %165 : vector<12x8xf32> to vector<1x12x8xf32>
    tpu.vector_store %arg15[%c0_102, %c0_103, %c0_104], %168 {strides = array<i32>} : memref<1x12x8xf32, #tpu.memory_space<vmem>>, vector<1x12x8xf32>,
    return
  }
  func.func @transform_0(%arg0: i32) -> (i32, i32, i32) {
    %c0_i32 = arith.constant 0 : i32
    %c0_i32_0 = arith.constant 0 : i32
    %c0_i32_1 = arith.constant 0 : i32
    return %arg0, %c0_i32, %c0_i32_0 : i32, i32, i32
  }
  func.func @transform_1(%arg0: i32) -> (i32, i32, i32) {
    %c0_i32 = arith.constant 0 : i32
    %c0_i32_0 = arith.constant 0 : i32
    %c0_i32_1 = arith.constant 0 : i32
    return %arg0, %c0_i32, %c0_i32_0 : i32, i32, i32
  }
  func.func @transform_2(%arg0: i32) -> (i32, i32, i32) {
    %c0_i32 = arith.constant 0 : i32
    %c0_i32_0 = arith.constant 0 : i32
    %c0_i32_1 = arith.constant 0 : i32
    %c0_i32_2 = arith.constant 0 : i32
    return %c0_i32, %c0_i32_0, %c0_i32_1 : i32, i32, i32
  }
  func.func @transform_3(%arg0: i32) -> (i32, i32) {
    %c0_i32 = arith.constant 0 : i32
    %c0_i32_0 = arith.constant 0 : i32
    %c0_i32_1 = arith.constant 0 : i32
    return %c0_i32, %c0_i32_0 : i32, i32
  }
  func.func @transform_4(%arg0: i32) -> (i32, i32) {
    %c0_i32 = arith.constant 0 : i32
    %c0_i32_0 = arith.constant 0 : i32
    %c0_i32_1 = arith.constant 0 : i32
    return %c0_i32, %c0_i32_0 : i32, i32
  }
  func.func @transform_5(%arg0: i32) -> (i32, i32) {
    %c0_i32 = arith.constant 0 : i32
    %c0_i32_0 = arith.constant 0 : i32
    %c0_i32_1 = arith.constant 0 : i32
    return %c0_i32, %c0_i32_0 : i32, i32
  }
  func.func @transform_6(%arg0: i32) -> (i32, i32) {
    %c0_i32 = arith.constant 0 : i32
    %c0_i32_0 = arith.constant 0 : i32
    %c0_i32_1 = arith.constant 0 : i32
    return %c0_i32, %c0_i32_0 : i32, i32
  }
  func.func @transform_7(%arg0: i32) -> (i32, i32) {
    %c0_i32 = arith.constant 0 : i32
    %c0_i32_0 = arith.constant 0 : i32
    %c0_i32_1 = arith.constant 0 : i32
    return %c0_i32, %c0_i32_0 : i32, i32
  }
  func.func @transform_8(%arg0: i32) -> (i32, i32) {
    %c0_i32 = arith.constant 0 : i32
    %c0_i32_0 = arith.constant 0 : i32
    %c0_i32_1 = arith.constant 0 : i32
    return %c0_i32, %c0_i32_0 : i32, i32
  }
  func.func @transform_9(%arg0: i32) -> (i32, i32) {
    %c0_i32 = arith.constant 0 : i32
    %c0_i32_0 = arith.constant 0 : i32
    %c0_i32_1 = arith.constant 0 : i32
    return %c0_i32, %c0_i32_0 : i32, i32
  }
  func.func @transform_10(%arg0: i32) -> (i32, i32) {
    %c0_i32 = arith.constant 0 : i32
    %c0_i32_0 = arith.constant 0 : i32
    %c0_i32_1 = arith.constant 0 : i32
    return %c0_i32, %c0_i32_0 : i32, i32
  }
  func.func @transform_11(%arg0: i32) -> (i32, i32) {
    %c0_i32 = arith.constant 0 : i32
    %c0_i32_0 = arith.constant 0 : i32
    %c0_i32_1 = arith.constant 0 : i32
    return %c0_i32, %c0_i32_0 : i32, i32
  }
  func.func @transform_12(%arg0: i32) -> (i32, i32) {
    %c0_i32 = arith.constant 0 : i32
    %c0_i32_0 = arith.constant 0 : i32
    %c0_i32_1 = arith.constant 0 : i32
    return %c0_i32, %c0_i32_0 : i32, i32
  }
  func.func @transform_13(%arg0: i32) -> (i32, i32, i32) {
    %c0_i32 = arith.constant 0 : i32
    %c0_i32_0 = arith.constant 0 : i32
    %c0_i32_1 = arith.constant 0 : i32
    return %arg0, %c0_i32, %c0_i32_0 : i32, i32, i32
  }
  func.func @transform_14(%arg0: i32) -> (i32, i32, i32) {
    %c0_i32 = arith.constant 0 : i32
    %c0_i32_0 = arith.constant 0 : i32
    %c0_i32_1 = arith.constant 0 : i32
    return %arg0, %c0_i32, %c0_i32_0 : i32, i32, i32
  }
}

</mosaic_0001>

<llo_original>
// kernel: _lambda_.1
$region0: #{_lambda_.1}
  #allocation0 [shape = 'u32[]', space=smem, size = 0x4, offset = 0x4, fixed_abs, tag = 'smem constant byte address 0x4 - core index']
  #allocation1 [shape = 'u32[144,128]{1,0:T(1,128)}', space=vmem, size = 0x12000, scoped, tag = 'internal scratch']
  %s0 = inlined_call_operand.vmem [shape: f32[2,8,64], index: 0, kind: input, shape index: {}]
  %s1 = inlined_call_operand.vmem [shape: f32[2,4,8], index: 1, kind: input, shape index: {}]
  %s2 = inlined_call_operand.hbm [shape: f32[15,64,8], index: 2, kind: input, shape index: {}]
  %s3 = inlined_call_operand.vmem [shape: f32[32,120], index: 3, kind: input, shape index: {}]
  %s4 = inlined_call_operand.vmem [shape: f32[32,8], index: 4, kind: input, shape index: {}]
  %s5 = inlined_call_operand.vmem [shape: f32[12,32], index: 5, kind: input, shape index: {}]
  %s6 = inlined_call_operand.vmem [shape: f32[12,32], index: 6, kind: input, shape index: {}]
  %s7 = inlined_call_operand.vmem [shape: f32[12,1], index: 7, kind: input, shape index: {}]
  %s8 = inlined_call_operand.vmem [shape: f32[32,4], index: 8, kind: input, shape index: {}]
  %s9 = inlined_call_operand.vmem [shape: f32[32,4], index: 9, kind: input, shape index: {}]
  %s10 = inlined_call_operand.vmem [shape: f32[12,32], index: 10, kind: input, shape index: {}]
  %s11 = inlined_call_operand.vmem [shape: f32[12,32], index: 11, kind: input, shape index: {}]
  %s12 = inlined_call_operand.vmem [shape: f32[16,1], index: 12, kind: input, shape index: {}]
  %s13 = inlined_call_operand.vmem [shape: f32[2,12,8], index: 13, kind: output, shape index: {0}]
  %s14 = inlined_call_operand.vmem [shape: f32[2,12,8], index: 14, kind: output, shape index: {1}]
  %15 = xla_tuple %s13, %s14
  %s16 = sld [smem:[#allocation0]]
  $region97: #{_lambda_.1} parent=0
    _
  %s18 = ssub.s32 1, %s16
  %s19 = scalar_select 0, %s18, %s16
  $region1: #{_lambda_.1} parent=0
    #allocation2 [shape = 'u8[491520]{0}', space=vmem, size = 0x78000, scoped, tag = 'input window, operand 2, single buffered']
    #allocation3 [shape = 's32[2]{0}', space=sflag, size = 0x8, scoped, tag = 'scoped memory for _lambda_.1']
    %20 = vsyncpa [#allocation3], 0
    loop: start=0, step=1, limit=4
    $region2: #{_lambda_.1} parent=1 // loop_pre_header
      _
    $region3: #{_lambda_.1} parent=1 // loop_header
      %s22 = sphi 0, %s26
      %p23 = scmp.ge.s32.totalorder %s22, 4
      %s32 = sphi 0, %s34
      %s35 = sphi 0, %s32
      %s36 = sphi 0, %s35
      %s52 = sphi 0, %s36
      %s58 = sphi 0, %s60
      %s61 = sphi 0, %s58
      %s62 = sphi 0, %s61
      %s78 = sphi 0, %s62
      %s82 = sphi 0, %s82
      %s84 = sphi 0, %s82
      %s85 = sphi 0, %s84
      %s99 = sphi 0, %s85
      %s103 = sphi 0, %s103
      %s105 = sphi 0, %s103
      %s106 = sphi 0, %s105
      %s120 = sphi 0, %s106
      %s124 = sphi 0, %s124
      %s126 = sphi 0, %s124
      %s127 = sphi 0, %s126
      %s141 = sphi 0, %s127
      %s145 = sphi 0, %s145
      %s147 = sphi 0, %s145
      %s148 = sphi 0, %s147
      %s162 = sphi 0, %s148
      %s166 = sphi 0, %s166
      %s168 = sphi 0, %s166
      %s169 = sphi 0, %s168
      %s183 = sphi 0, %s169
      %s187 = sphi 0, %s187
      %s189 = sphi 0, %s187
      %s190 = sphi 0, %s189
      %s204 = sphi 0, %s190
      %s208 = sphi 0, %s208
      %s210 = sphi 0, %s208
      %s211 = sphi 0, %s210
      %s225 = sphi 0, %s211
      %s229 = sphi 0, %s229
      %s231 = sphi 0, %s229
      %s232 = sphi 0, %s231
      %s246 = sphi 0, %s232
      %s250 = sphi 0, %s250
      %s252 = sphi 0, %s250
      %s253 = sphi 0, %s252
      %s267 = sphi 0, %s253
      %s271 = sphi 0, %s271
      %s273 = sphi 0, %s271
      %s274 = sphi 0, %s273
      %s288 = sphi 0, %s274
      %s292 = sphi 0, %s292
      %s294 = sphi 0, %s292
      %s295 = sphi 0, %s294
      %s309 = sphi 0, %s295
      %s315 = sphi 0, %s317
      %s318 = sphi 0, %s315
      %s319 = sphi 0, %s318
      %s335 = sphi 0, %s319
      %s341 = sphi 0, %s343
      %s344 = sphi 0, %s341
      %s345 = sphi 0, %s344
      %s361 = sphi 0, %s345
    $region4: #{_lambda_.1} parent=1 // loop_header_branch
      %25 = sbr.rel (%p23) target = $region8
    $region5: #{_lambda_.1} parent=1 // loop_body
      %s27 = ssub.s32 %s22, 1
      %s28 = ssub.s32 %s22, 2
      %s29 = sadd.s32 %s22, 1
      %s30 = ssub.s32 %s22, %s29
      %p31 = scmp.eq.s32.totalorder %s30, 0
      %s33 = sadd.s32 %s32, 1
      %s34 = scalar_select %p31, %s32, %s33
      %p37 = pneg %p31
      %p38 = scmp.eq.s32.totalorder %s22, 1
      %p39 = por %p37, %p38
      %p40 = scmp.ne.s32.totalorder %s32, %s35
      %p41 = scmp.eq.s32.totalorder %s22, 0
      %p42 = por %p40, %p41
      %p43 = scmp.ne.s32.totalorder %s32, %s35
      %p44 = scmp.eq.s32.totalorder %s27, 1
      %p45 = por %p43, %p44
      %p46 = scmp.ne.s32.totalorder %s35, %s36
      %p47 = scmp.eq.s32.totalorder %s27, 0
      %p48 = por %p46, %p47
      %p49 = scmp.ne.s32.totalorder %s35, %s36
      %p50 = scmp.eq.s32.totalorder %s28, 1
      %p51 = por %p49, %p50
      %p53 = scmp.ne.s32.totalorder %s36, %s52
      %p54 = scmp.eq.s32.totalorder %s28, 0
      %p55 = por %p53, %p54
      %s56 = ssub.s32 %s22, %s29
      %p57 = scmp.eq.s32.totalorder %s56, 0
      %s59 = sadd.s32 %s58, 1
      %s60 = scalar_select %p57, %s58, %s59
      %p63 = pneg %p57
      %p64 = scmp.eq.s32.totalorder %s22, 1
      %p65 = por %p63, %p64
      %p66 = scmp.ne.s32.totalorder %s58, %s61
      %p67 = scmp.eq.s32.totalorder %s22, 0
      %p68 = por %p66, %p67
      %p69 = scmp.ne.s32.totalorder %s58, %s61
      %p70 = scmp.eq.s32.totalorder %s27, 1
      %p71 = por %p69, %p70
      %p72 = scmp.ne.s32.totalorder %s61, %s62
      %p73 = scmp.eq.s32.totalorder %s27, 0
      %p74 = por %p72, %p73
      %p75 = scmp.ne.s32.totalorder %s61, %s62
      %p76 = scmp.eq.s32.totalorder %s28, 1
      %p77 = por %p75, %p76
      %p79 = scmp.ne.s32.totalorder %s62, %s78
      %p80 = scmp.eq.s32.totalorder %s28, 0
      %p81 = por %p79, %p80
      %s83 = sadd.s32 %s82, 1
      %p86 = scmp.eq.s32.totalorder %s22, 1
      %p87 = scmp.ne.s32.totalorder %s82, %s84
      %p88 = scmp.eq.s32.totalorder %s22, 0
      %p89 = por %p87, %p88
      %p90 = scmp.ne.s32.totalorder %s82, %s84
      %p91 = scmp.eq.s32.totalorder %s27, 1
      %p92 = por %p90, %p91
      %p93 = scmp.ne.s32.totalorder %s84, %s85
      %p94 = scmp.eq.s32.totalorder %s27, 0
      %p95 = por %p93, %p94
      %p96 = scmp.ne.s32.totalorder %s84, %s85
      %p97 = scmp.eq.s32.totalorder %s28, 1
      %p98 = por %p96, %p97
      %p100 = scmp.ne.s32.totalorder %s85, %s99
      %p101 = scmp.eq.s32.totalorder %s28, 0
      %p102 = por %p100, %p101
      %s104 = sadd.s32 %s103, 1
      %p107 = scmp.eq.s32.totalorder %s22, 1
      %p108 = scmp.ne.s32.totalorder %s103, %s105
      %p109 = scmp.eq.s32.totalorder %s22, 0
      %p110 = por %p108, %p109
      %p111 = scmp.ne.s32.totalorder %s103, %s105
      %p112 = scmp.eq.s32.totalorder %s27, 1
      %p113 = por %p111, %p112
      %p114 = scmp.ne.s32.totalorder %s105, %s106
      %p115 = scmp.eq.s32.totalorder %s27, 0
      %p116 = por %p114, %p115
      %p117 = scmp.ne.s32.totalorder %s105, %s106
      %p118 = scmp.eq.s32.totalorder %s28, 1
      %p119 = por %p117, %p118
      %p121 = scmp.ne.s32.totalorder %s106, %s120
      %p122 = scmp.eq.s32.totalorder %s28, 0
      %p123 = por %p121, %p122
      %s125 = sadd.s32 %s124, 1
      %p128 = scmp.eq.s32.totalorder %s22, 1
      %p129 = scmp.ne.s32.totalorder %s124, %s126
      %p130 = scmp.eq.s32.totalorder %s22, 0
      %p131 = por %p129, %p130
      %p132 = scmp.ne.s32.totalorder %s124, %s126
      %p133 = scmp.eq.s32.totalorder %s27, 1
      %p134 = por %p132, %p133
      %p135 = scmp.ne.s32.totalorder %s126, %s127
      %p136 = scmp.eq.s32.totalorder %s27, 0
      %p137 = por %p135, %p136
      %p138 = scmp.ne.s32.totalorder %s126, %s127
      %p139 = scmp.eq.s32.totalorder %s28, 1
      %p140 = por %p138, %p139
      %p142 = scmp.ne.s32.totalorder %s127, %s141
      %p143 = scmp.eq.s32.totalorder %s28, 0
      %p144 = por %p142, %p143
      %s146 = sadd.s32 %s145, 1
      %p149 = scmp.eq.s32.totalorder %s22, 1
      %p150 = scmp.ne.s32.totalorder %s145, %s147
      %p151 = scmp.eq.s32.totalorder %s22, 0
      %p152 = por %p150, %p151
      %p153 = scmp.ne.s32.totalorder %s145, %s147
      %p154 = scmp.eq.s32.totalorder %s27, 1
      %p155 = por %p153, %p154
      %p156 = scmp.ne.s32.totalorder %s147, %s148
      %p157 = scmp.eq.s32.totalorder %s27, 0
      %p158 = por %p156, %p157
      %p159 = scmp.ne.s32.totalorder %s147, %s148
      %p160 = scmp.eq.s32.totalorder %s28, 1
      %p161 = por %p159, %p160
      %p163 = scmp.ne.s32.totalorder %s148, %s162
      %p164 = scmp.eq.s32.totalorder %s28, 0
      %p165 = por %p163, %p164
      %s167 = sadd.s32 %s166, 1
      %p170 = scmp.eq.s32.totalorder %s22, 1
      %p171 = scmp.ne.s32.totalorder %s166, %s168
      %p172 = scmp.eq.s32.totalorder %s22, 0
      %p173 = por %p171, %p172
      %p174 = scmp.ne.s32.totalorder %s166, %s168
      %p175 = scmp.eq.s32.totalorder %s27, 1
      %p176 = por %p174, %p175
      %p177 = scmp.ne.s32.totalorder %s168, %s169
      %p178 = scmp.eq.s32.totalorder %s27, 0
      %p179 = por %p177, %p178
      %p180 = scmp.ne.s32.totalorder %s168, %s169
      %p181 = scmp.eq.s32.totalorder %s28, 1
      %p182 = por %p180, %p181
      %p184 = scmp.ne.s32.totalorder %s169, %s183
      %p185 = scmp.eq.s32.totalorder %s28, 0
      %p186 = por %p184, %p185
      %s188 = sadd.s32 %s187, 1
      %p191 = scmp.eq.s32.totalorder %s22, 1
      %p192 = scmp.ne.s32.totalorder %s187, %s189
      %p193 = scmp.eq.s32.totalorder %s22, 0
      %p194 = por %p192, %p193
      %p195 = scmp.ne.s32.totalorder %s187, %s189
      %p196 = scmp.eq.s32.totalorder %s27, 1
      %p197 = por %p195, %p196
      %p198 = scmp.ne.s32.totalorder %s189, %s190
      %p199 = scmp.eq.s32.totalorder %s27, 0
      %p200 = por %p198, %p199
      %p201 = scmp.ne.s32.totalorder %s189, %s190
      %p202 = scmp.eq.s32.totalorder %s28, 1
      %p203 = por %p201, %p202
      %p205 = scmp.ne.s32.totalorder %s190, %s204
      %p206 = scmp.eq.s32.totalorder %s28, 0
      %p207 = por %p205, %p206
      %s209 = sadd.s32 %s208, 1
      %p212 = scmp.eq.s32.totalorder %s22, 1
      %p213 = scmp.ne.s32.totalorder %s208, %s210
      %p214 = scmp.eq.s32.totalorder %s22, 0
      %p215 = por %p213, %p214
      %p216 = scmp.ne.s32.totalorder %s208, %s210
      %p217 = scmp.eq.s32.totalorder %s27, 1
      %p218 = por %p216, %p217
      %p219 = scmp.ne.s32.totalorder %s210, %s211
      %p220 = scmp.eq.s32.totalorder %s27, 0
      %p221 = por %p219, %p220
      %p222 = scmp.ne.s32.totalorder %s210, %s211
      %p223 = scmp.eq.s32.totalorder %s28, 1
      %p224 = por %p222, %p223
      %p226 = scmp.ne.s32.totalorder %s211, %s225
      %p227 = scmp.eq.s32.totalorder %s28, 0
      %p228 = por %p226, %p227
      %s230 = sadd.s32 %s229, 1
      %p233 = scmp.eq.s32.totalorder %s22, 1
      %p234 = scmp.ne.s32.totalorder %s229, %s231
      %p235 = scmp.eq.s32.totalorder %s22, 0
      %p236 = por %p234, %p235
      %p237 = scmp.ne.s32.totalorder %s229, %s231
      %p238 = scmp.eq.s32.totalorder %s27, 1
      %p239 = por %p237, %p238
      %p240 = scmp.ne.s32.totalorder %s231, %s232
      %p241 = scmp.eq.s32.totalorder %s27, 0
      %p242 = por %p240, %p241
      %p243 = scmp.ne.s32.totalorder %s231, %s232
      %p244 = scmp.eq.s32.totalorder %s28, 1
      %p245 = por %p243, %p244
      %p247 = scmp.ne.s32.totalorder %s232, %s246
      %p248 = scmp.eq.s32.totalorder %s28, 0
      %p249 = por %p247, %p248
      %s251 = sadd.s32 %s250, 1
      %p254 = scmp.eq.s32.totalorder %s22, 1
      %p255 = scmp.ne.s32.totalorder %s250, %s252
      %p256 = scmp.eq.s32.totalorder %s22, 0
      %p257 = por %p255, %p256
      %p258 = scmp.ne.s32.totalorder %s250, %s252
      %p259 = scmp.eq.s32.totalorder %s27, 1
      %p260 = por %p258, %p259
      %p261 = scmp.ne.s32.totalorder %s252, %s253
      %p262 = scmp.eq.s32.totalorder %s27, 0
      %p263 = por %p261, %p262
      %p264 = scmp.ne.s32.totalorder %s252, %s253
      %p265 = scmp.eq.s32.totalorder %s28, 1
      %p266 = por %p264, %p265
      %p268 = scmp.ne.s32.totalorder %s253, %s267
      %p269 = scmp.eq.s32.totalorder %s28, 0
      %p270 = por %p268, %p269
      %s272 = sadd.s32 %s271, 1
      %p275 = scmp.eq.s32.totalorder %s22, 1
      %p276 = scmp.ne.s32.totalorder %s271, %s273
      %p277 = scmp.eq.s32.totalorder %s22, 0
      %p278 = por %p276, %p277
      %p279 = scmp.ne.s32.totalorder %s271, %s273
      %p280 = scmp.eq.s32.totalorder %s27, 1
      %p281 = por %p279, %p280
      %p282 = scmp.ne.s32.totalorder %s273, %s274
      %p283 = scmp.eq.s32.totalorder %s27, 0
      %p284 = por %p282, %p283
      %p285 = scmp.ne.s32.totalorder %s273, %s274
      %p286 = scmp.eq.s32.totalorder %s28, 1
      %p287 = por %p285, %p286
      %p289 = scmp.ne.s32.totalorder %s274, %s288
      %p290 = scmp.eq.s32.totalorder %s28, 0
      %p291 = por %p289, %p290
      %s293 = sadd.s32 %s292, 1
      %p296 = scmp.eq.s32.totalorder %s22, 1
      %p297 = scmp.ne.s32.totalorder %s292, %s294
      %p298 = scmp.eq.s32.totalorder %s22, 0
      %p299 = por %p297, %p298
      %p300 = scmp.ne.s32.totalorder %s292, %s294
      %p301 = scmp.eq.s32.totalorder %s27, 1
      %p302 = por %p300, %p301
      %p303 = scmp.ne.s32.totalorder %s294, %s295
      %p304 = scmp.eq.s32.totalorder %s27, 0
      %p305 = por %p303, %p304
      %p306 = scmp.ne.s32.totalorder %s294, %s295
      %p307 = scmp.eq.s32.totalorder %s28, 1
      %p308 = por %p306, %p307
      %p310 = scmp.ne.s32.totalorder %s295, %s309
      %p311 = scmp.eq.s32.totalorder %s28, 0
      %p312 = por %p310, %p311
      %s313 = ssub.s32 %s22, %s29
      %p314 = scmp.eq.s32.totalorder %s313, 0
      %s316 = sadd.s32 %s315, 1
      %s317 = scalar_select %p314, %s315, %s316
      %p320 = pneg %p314
      %p321 = scmp.eq.s32.totalorder %s22, 1
      %p322 = por %p320, %p321
      %p323 = scmp.ne.s32.totalorder %s315, %s318
      %p324 = scmp.eq.s32.totalorder %s22, 0
      %p325 = por %p323, %p324
      %p326 = scmp.ne.s32.totalorder %s315, %s318
      %p327 = scmp.eq.s32.totalorder %s27, 1
      %p328 = por %p326, %p327
      %p329 = scmp.ne.s32.totalorder %s318, %s319
      %p330 = scmp.eq.s32.totalorder %s27, 0
      %p331 = por %p329, %p330
      %p332 = scmp.ne.s32.totalorder %s318, %s319
      %p333 = scmp.eq.s32.totalorder %s28, 1
      %p334 = por %p332, %p333
      %p336 = scmp.ne.s32.totalorder %s319, %s335
      %p337 = scmp.eq.s32.totalorder %s28, 0
      %p338 = por %p336, %p337
      %s339 = ssub.s32 %s22, %s29
      %p340 = scmp.eq.s32.totalorder %s339, 0
      %s342 = sadd.s32 %s341, 1
      %s343 = scalar_select %p340, %s341, %s342
      %p346 = pneg %p340
      %p347 = scmp.eq.s32.totalorder %s22, 1
      %p348 = por %p346, %p347
      %p349 = scmp.ne.s32.totalorder %s341, %s344
      %p350 = scmp.eq.s32.totalorder %s22, 0
      %p351 = por %p349, %p350
      %p352 = scmp.ne.s32.totalorder %s341, %s344
      %p353 = scmp.eq.s32.totalorder %s27, 1
      %p354 = por %p352, %p353
      %p355 = scmp.ne.s32.totalorder %s344, %s345
      %p356 = scmp.eq.s32.totalorder %s27, 0
      %p357 = por %p355, %p356
      %p358 = scmp.ne.s32.totalorder %s344, %s345
      %p359 = scmp.eq.s32.totalorder %s28, 1
      %p360 = por %p358, %p359
      %p362 = scmp.ne.s32.totalorder %s345, %s361
      %p363 = scmp.eq.s32.totalorder %s28, 0
      %p364 = por %p362, %p363
      %p365 = scmp.le.s32.totalorder 1, %s22
      %p366 = scmp.lt.s32.totalorder %s22, 3
      %p367 = pnand %p365, %p366
      %p368 = pneg %p367
      // Predicated region
      $region9: #{_lambda_.1} parent=5 // pred_check
        _
      $region10: #{_lambda_.1} parent=5 // pred_check_branch
        %370 = sbr.rel (%p367) target = $region12
      $region11: #{_lambda_.1} parent=5 // pred_region
        %s371 = ssub.s32 %s22, 1
        // Predicated region
        $region13: #{_lambda_.1} parent=11 // pred_check
          %p372 = pneg %p95
        $region14: #{_lambda_.1} parent=11 // pred_check_branch
          %374 = sbr.rel (%p372) target = $region16
        $region15: #{_lambda_.1} parent=11 // pred_region
          %s376 = ssub.s32 15360, 15360
          %377 = vsyncadd [#allocation3], %s376
          %s378 = sshll.u32 [#allocation2], 4
          %s379 = int_to_ptr.vmem [resolvable:$true] %s378
          %384 = dma.hbm_to_vmem [thread:$0]  %s2, 15360, %s379, [#allocation3], 128, 128, 8
        $region16: #{_lambda_.1} parent=11 // pred_fallthru
          _
        // Predicated region
        $region17: #{_lambda_.1} parent=11 // pred_check
          %p385 = pneg %p116
        $region18: #{_lambda_.1} parent=11 // pred_check_branch
          %387 = sbr.rel (%p385) target = $region20
        $region19: #{_lambda_.1} parent=11 // pred_region
          _
        $region20: #{_lambda_.1} parent=11 // pred_fallthru
          _
        // Predicated region
        $region21: #{_lambda_.1} parent=11 // pred_check
          %p388 = pneg %p137
        $region22: #{_lambda_.1} parent=11 // pred_check_branch
          %390 = sbr.rel (%p388) target = $region24
        $region23: #{_lambda_.1} parent=11 // pred_region
          _
        $region24: #{_lambda_.1} parent=11 // pred_fallthru
          _
        // Predicated region
        $region25: #{_lambda_.1} parent=11 // pred_check
          %p391 = pneg %p158
        $region26: #{_lambda_.1} parent=11 // pred_check_branch
          %393 = sbr.rel (%p391) target = $region28
        $region27: #{_lambda_.1} parent=11 // pred_region
          _
        $region28: #{_lambda_.1} parent=11 // pred_fallthru
          _
        // Predicated region
        $region29: #{_lambda_.1} parent=11 // pred_check
          %p394 = pneg %p179
        $region30: #{_lambda_.1} parent=11 // pred_check_branch
          %396 = sbr.rel (%p394) target = $region32
        $region31: #{_lambda_.1} parent=11 // pred_region
          _
        $region32: #{_lambda_.1} parent=11 // pred_fallthru
          _
        // Predicated region
        $region33: #{_lambda_.1} parent=11 // pred_check
          %p397 = pneg %p200
        $region34: #{_lambda_.1} parent=11 // pred_check_branch
          %399 = sbr.rel (%p397) target = $region36
        $region35: #{_lambda_.1} parent=11 // pred_region
          _
        $region36: #{_lambda_.1} parent=11 // pred_fallthru
          _
        // Predicated region
        $region37: #{_lambda_.1} parent=11 // pred_check
          %p400 = pneg %p221
        $region38: #{_lambda_.1} parent=11 // pred_check_branch
          %402 = sbr.rel (%p400) target = $region40
        $region39: #{_lambda_.1} parent=11 // pred_region
          _
        $region40: #{_lambda_.1} parent=11 // pred_fallthru
          _
        // Predicated region
        $region41: #{_lambda_.1} parent=11 // pred_check
          %p403 = pneg %p242
        $region42: #{_lambda_.1} parent=11 // pred_check_branch
          %405 = sbr.rel (%p403) target = $region44
        $region43: #{_lambda_.1} parent=11 // pred_region
          _
        $region44: #{_lambda_.1} parent=11 // pred_fallthru
          _
        // Predicated region
        $region45: #{_lambda_.1} parent=11 // pred_check
          %p406 = pneg %p263
        $region46: #{_lambda_.1} parent=11 // pred_check_branch
          %408 = sbr.rel (%p406) target = $region48
        $region47: #{_lambda_.1} parent=11 // pred_region
          _
        $region48: #{_lambda_.1} parent=11 // pred_fallthru
          _
        // Predicated region
        $region49: #{_lambda_.1} parent=11 // pred_check
          %p409 = pneg %p284
        $region50: #{_lambda_.1} parent=11 // pred_check_branch
          %411 = sbr.rel (%p409) target = $region52
        $region51: #{_lambda_.1} parent=11 // pred_region
          _
        $region52: #{_lambda_.1} parent=11 // pred_fallthru
          _
        // Predicated region
        $region53: #{_lambda_.1} parent=11 // pred_check
          %p412 = pneg %p305
        $region54: #{_lambda_.1} parent=11 // pred_check_branch
          %414 = sbr.rel (%p412) target = $region56
        $region55: #{_lambda_.1} parent=11 // pred_region
          _
        $region56: #{_lambda_.1} parent=11 // pred_fallthru
          _
      $region12: #{_lambda_.1} parent=5 // pred_fallthru
        _
      %p415 = scmp.lt.s32.totalorder %s22, 2
      // Predicated region
      $region57: #{_lambda_.1} parent=5 // pred_check
        %p416 = pneg %p415
      $region58: #{_lambda_.1} parent=5 // pred_check_branch
        %418 = sbr.rel (%p416) target = $region60
      $region59: #{_lambda_.1} parent=5 // pred_region
        // Predicated region
        $region61: #{_lambda_.1} parent=59 // pred_check
          %p419 = pneg %p42
        $region62: #{_lambda_.1} parent=59 // pred_check_branch
          %421 = sbr.rel (%p419) target = $region64
        $region63: #{_lambda_.1} parent=59 // pred_region
          %p422 = scmp.lt.s32.totalorder %s22, 1
          %s423 = scalar_select %p422, %s22, 1
          %s424 = smul.addr %s423, 8
          %s425 = scalar_lea.vmem %s0, %s424
        $region64: #{_lambda_.1} parent=59 // pred_fallthru
          _
        // Predicated region
        $region65: #{_lambda_.1} parent=59 // pred_check
          %p426 = pneg %p68
        $region66: #{_lambda_.1} parent=59 // pred_check_branch
          %428 = sbr.rel (%p426) target = $region68
        $region67: #{_lambda_.1} parent=59 // pred_region
          %p429 = scmp.lt.s32.totalorder %s22, 1
          %s430 = scalar_select %p429, %s22, 1
          %s431 = smul.addr %s430, 4
          %s432 = scalar_lea.vmem %s1, %s431
        $region68: #{_lambda_.1} parent=59 // pred_fallthru
          _
      $region60: #{_lambda_.1} parent=5 // pred_fallthru
        _
      %p433 = scmp.le.s32.totalorder 1, %s22
      %p434 = scmp.lt.s32.totalorder %s22, 3
      %p435 = pnand %p433, %p434
      %p436 = pneg %p435
      // Predicated region
      $region69: #{_lambda_.1} parent=5 // pred_check
        _
      $region70: #{_lambda_.1} parent=5 // pred_check_branch
        %438 = sbr.rel (%p435) target = $region72
      $region71: #{_lambda_.1} parent=5 // pred_region
        %s439 = ssub.s32 %s22, 1
        // Predicated region
        $region73: #{_lambda_.1} parent=71 // pred_check
          %p440 = pneg %p95
        $region74: #{_lambda_.1} parent=71 // pred_check_branch
          %442 = sbr.rel (%p440) target = $region76
        $region75: #{_lambda_.1} parent=71 // pred_region
          %443 = dma.done [#allocation3], 15360
        $region76: #{_lambda_.1} parent=71 // pred_fallthru
          _
        %p444 = scmp.lt.s32.totalorder %s27, 1
        %s445 = scalar_select %p444, %s27, 1
        %s446 = smul.addr %s445, 8
        %s447 = scalar_lea.vmem %s0, %s446
        %p448 = pneg %p48
        %p449 = pneg %p45
        %p450 = scmp.lt.s32.totalorder %s27, 1
        %s451 = scalar_select %p450, %s27, 1
        %s452 = smul.addr %s451, 4
        %s453 = scalar_lea.vmem %s1, %s452
        %p454 = pneg %p74
        %p455 = pneg %p71
        %p456 = pneg %p95
        %p457 = pneg %p92
        %p458 = pneg %p116
        %p459 = pneg %p113
        %p460 = pneg %p137
        %p461 = pneg %p134
        %p462 = pneg %p158
        %p463 = pneg %p155
        %p464 = pneg %p179
        %p465 = pneg %p176
        %p466 = pneg %p200
        %p467 = pneg %p197
        %p468 = pneg %p221
        %p469 = pneg %p218
        %p470 = pneg %p242
        %p471 = pneg %p239
        %p472 = pneg %p263
        %p473 = pneg %p260
        %p474 = pneg %p284
        %p475 = pneg %p281
        %p476 = pneg %p305
        %p477 = pneg %p302
        %p478 = pneg %p331
        %p479 = pneg %p328
        %p480 = scmp.lt.s32.totalorder %s27, 1
        %s481 = scalar_select %p480, %s27, 1
        %s482 = smul.addr %s481, 2
        %s483 = smul.addr %s482, 8
        %s484 = scalar_lea.vmem %s13, %s483
        %p485 = pneg %p357
        %p486 = pneg %p354
        %p487 = scmp.lt.s32.totalorder %s27, 1
        %s488 = scalar_select %p487, %s27, 1
        %s489 = smul.addr %s488, 2
        %s490 = smul.addr %s489, 8
        %s491 = scalar_lea.vmem %s14, %s490
        %p492 = scmp.lt.s32.totalorder %s27, 1
        %s493 = scalar_select %p492, %s27, 1
        %s494 = smul.addr %s493, 8
        %s495 = scalar_lea.vmem %s0, %s494
        %p496 = scmp.lt.s32.totalorder %s27, 1
        %s497 = scalar_select %p496, %s27, 1
        %s498 = smul.addr %s497, 4
        %s499 = scalar_lea.vmem %s1, %s498
        %p500 = scmp.lt.s32.totalorder %s27, 1
        %s501 = scalar_select %p500, %s27, 1
        %s502 = smul.addr %s501, 2
        %s503 = smul.addr %s502, 8
        %s504 = scalar_lea.vmem %s13, %s503
        %p505 = scmp.lt.s32.totalorder %s27, 1
        %s506 = scalar_select %p505, %s27, 1
        %s507 = smul.addr %s506, 2
        %s508 = smul.addr %s507, 8
        %s509 = scalar_lea.vmem %s14, %s508
        %v510 = vld [vmem:[%s495] sm:$0xff]
        %v511 = vld [vmem:[#allocation2] sm:$0xff]
        %v512 = vld [vmem:[#allocation2 + $0x8] sm:$0xff]
        %v513 = vld [vmem:[#allocation2 + $0x10] sm:$0xff]
        %v514 = vld [vmem:[#allocation2 + $0x18] sm:$0xff]
        %v515 = vld [vmem:[#allocation2 + $0x20] sm:$0xff]
        %v516 = vld [vmem:[#allocation2 + $0x28] sm:$0xff]
        %v517 = vld [vmem:[#allocation2 + $0x30] sm:$0xff]
        %v518 = vld [vmem:[#allocation2 + $0x38] sm:$0xff]
        %vm519 = vcmask 523264
        %v521 = vsel %vm519, %v510, 0
        %523 = vmatprep.subr.mxu0 0.0
        %524 = vmatpush1.msra.mxu0 %v511
        %525 = vmatprep.subr.mxu0 0.0
        %526 = vmatpush1.msra.mxu0 %v512
        %527 = vmatprep.subr.mxu0 0.0
        %528 = vmatpush1.msra.mxu0 %v513
        %529 = vmatprep.subr.mxu0 0.0
        %530 = vmatpush1.msra.mxu0 %v514
        %531 = vmatprep.subr.mxu0 0.0
        %532 = vmatpush1.msra.mxu0 %v515
        %533 = vmatprep.subr.mxu0 0.0
        %534 = vmatpush1.msra.mxu0 %v516
        %535 = vmatprep.subr.mxu0 0.0
        %536 = vmatpush1.msra.mxu0 %v517
        %537 = vmatprep.subr.mxu0 0.0
        %538 = vmatpush1.msra.mxu0 %v518
        %539 = vmatprep.subr.mxu0 0.0
        %540 = vmatpush1.msra.mxu0 0.0
        %541 = vmatprep.subr.mxu0 0.0
        %542 = vmatpush1.msra.mxu0 0.0
        %543 = vmatprep.subr.mxu0 0.0
        %544 = vmatpush1.msra.mxu0 0.0
        %545 = vmatprep.subr.mxu0 0.0
        %546 = vmatpush1.msra.mxu0 0.0
        %547 = vmatprep.subr.mxu0 0.0
        %548 = vmatpush1.msra.mxu0 0.0
        %549 = vmatprep.subr.mxu0 0.0
        %550 = vmatpush1.msra.mxu0 0.0
        %551 = vmatprep.subr.mxu0 0.0
        %552 = vmatpush1.msra.mxu0 0.0
        %553 = vmatprep.subr.mxu0 0.0
        %554 = vmatpush1.msra.mxu0 0.0
        %555 = vmatprep.subr.mxu0 0.0
        %556 = vmatpush1.msra.mxu0 0.0
        %557 = vmatprep.subr.mxu0 0.0
        %558 = vmatpush1.msra.mxu0 0.0
        %559 = vmatprep.subr.mxu0 0.0
        %560 = vmatpush1.msra.mxu0 0.0
        %561 = vmatprep.subr.mxu0 0.0
        %562 = vmatpush1.msra.mxu0 0.0
        %563 = vmatprep.subr.mxu0 0.0
        %564 = vmatpush1.msra.mxu0 0.0
        %565 = vmatprep.subr.mxu0 0.0
        %566 = vmatpush1.msra.mxu0 0.0
        %567 = vmatprep.subr.mxu0 0.0
        %568 = vmatpush1.msra.mxu0 0.0
        %569 = vmatprep.subr.mxu0 0.0
        %570 = vmatpush1.msra.mxu0 0.0
        %571 = vmatprep.subr.mxu0 0.0
        %572 = vmatpush1.msra.mxu0 0.0
        %573 = vmatprep.subr.mxu0 0.0
        %574 = vmatpush1.msra.mxu0 0.0
        %575 = vmatprep.subr.mxu0 0.0
        %576 = vmatpush1.msra.mxu0 0.0
        %577 = vmatprep.subr.mxu0 0.0
        %578 = vmatpush1.msra.mxu0 0.0
        %579 = vmatprep.subr.mxu0 0.0
        %580 = vmatpush1.msra.mxu0 0.0
        %581 = vmatprep.subr.mxu0 0.0
        %582 = vmatpush1.msra.mxu0 0.0
        %583 = vmatprep.subr.mxu0 0.0
        %584 = vmatpush1.msra.mxu0 0.0
        %585 = vmatprep.subr.mxu0 0.0
        %586 = vmatpush1.msra.mxu0 0.0
        %587 = vmatprep.mubr.f32.mxu0 0.0
        %588 = vmatmul.mubr.f32.gmra.mrb[0].mxu0 %v521
        %v589 = vpop.f32.mrb[0].mxu0
        %v590 = vadd.f32 0.0, %v589
        %v591 = vpop.f32.mrb[0].mxu0
        %592 = vdwg.mxu0
        %s593 = scalar_lea.vmem [#allocation2], 64
        %v594 = vld [vmem:[%s593] sm:$0xff]
        %v595 = vld [vmem:[%s593 + $0x8] sm:$0xff]
        %v596 = vld [vmem:[%s593 + $0x10] sm:$0xff]
        %v597 = vld [vmem:[%s593 + $0x18] sm:$0xff]
        %v598 = vld [vmem:[%s593 + $0x20] sm:$0xff]
        %v599 = vld [vmem:[%s593 + $0x28] sm:$0xff]
        %v600 = vld [vmem:[%s593 + $0x30] sm:$0xff]
        %v601 = vld [vmem:[%s593 + $0x38] sm:$0xff]
        %602 = vmatprep.subr.mxu0 0.0
        %603 = vmatpush1.msra.mxu0 %v594
        %604 = vmatprep.subr.mxu0 0.0
        %605 = vmatpush1.msra.mxu0 %v595
        %606 = vmatprep.subr.mxu0 0.0
        %607 = vmatpush1.msra.mxu0 %v596
        %608 = vmatprep.subr.mxu0 0.0
        %609 = vmatpush1.msra.mxu0 %v597
        %610 = vmatprep.subr.mxu0 0.0
        %611 = vmatpush1.msra.mxu0 %v598
        %612 = vmatprep.subr.mxu0 0.0
        %613 = vmatpush1.msra.mxu0 %v599
        %614 = vmatprep.subr.mxu0 0.0
        %615 = vmatpush1.msra.mxu0 %v600
        %616 = vmatprep.subr.mxu0 0.0
        %617 = vmatpush1.msra.mxu0 %v601
        %618 = vmatprep.subr.mxu0 0.0
        %619 = vmatpush1.msra.mxu0 0.0
        %620 = vmatprep.subr.mxu0 0.0
        %621 = vmatpush1.msra.mxu0 0.0
        %622 = vmatprep.subr.mxu0 0.0
        %623 = vmatpush1.msra.mxu0 0.0
        %624 = vmatprep.subr.mxu0 0.0
        %625 = vmatpush1.msra.mxu0 0.0
        %626 = vmatprep.subr.mxu0 0.0
        %627 = vmatpush1.msra.mxu0 0.0
        %628 = vmatprep.subr.mxu0 0.0
        %629 = vmatpush1.msra.mxu0 0.0
        %630 = vmatprep.subr.mxu0 0.0
        %631 = vmatpush1.msra.mxu0 0.0
        %632 = vmatprep.subr.mxu0 0.0
        %633 = vmatpush1.msra.mxu0 0.0
        %634 = vmatprep.subr.mxu0 0.0
        %635 = vmatpush1.msra.mxu0 0.0
        %636 = vmatprep.subr.mxu0 0.0
        %637 = vmatpush1.msra.mxu0 0.0
        %638 = vmatprep.subr.mxu0 0.0
        %639 = vmatpush1.msra.mxu0 0.0
        %640 = vmatprep.subr.mxu0 0.0
        %641 = vmatpush1.msra.mxu0 0.0
        %642 = vmatprep.subr.mxu0 0.0
        %643 = vmatpush1.msra.mxu0 0.0
        %644 = vmatprep.subr.mxu0 0.0
        %645 = vmatpush1.msra.mxu0 0.0
        %646 = vmatprep.subr.mxu0 0.0
        %647 = vmatpush1.msra.mxu0 0.0
        %648 = vmatprep.subr.mxu0 0.0
        %649 = vmatpush1.msra.mxu0 0.0
        %650 = vmatprep.subr.mxu0 0.0
        %651 = vmatpush1.msra.mxu0 0.0
        %652 = vmatprep.subr.mxu0 0.0
        %653 = vmatpush1.msra.mxu0 0.0
        %654 = vmatprep.subr.mxu0 0.0
        %655 = vmatpush1.msra.mxu0 0.0
        %656 = vmatprep.subr.mxu0 0.0
        %657 = vmatpush1.msra.mxu0 0.0
        %658 = vmatprep.subr.mxu0 0.0
        %659 = vmatpush1.msra.mxu0 0.0
        %660 = vmatprep.subr.mxu0 0.0
        %661 = vmatpush1.msra.mxu0 0.0
        %662 = vmatprep.subr.mxu0 0.0
        %663 = vmatpush1.msra.mxu0 0.0
        %664 = vmatprep.subr.mxu0 0.0
        %665 = vmatpush1.msra.mxu0 0.0
        %666 = vmatprep.mubr.f32.mxu0 0.0
        %667 = vmatmul.mubr.f32.gmra.mrb[0].mxu0 %v521
        %v668 = vpop.f32.mrb[0].mxu0
        %v669 = vadd.f32 0.0, %v668
        %v670 = vpop.f32.mrb[0].mxu0
        %671 = vdwg.mxu0
        %s672 = scalar_lea.vmem [#allocation2], 128
        %v673 = vld [vmem:[%s672] sm:$0xff]
        %v674 = vld [vmem:[%s672 + $0x8] sm:$0xff]
        %v675 = vld [vmem:[%s672 + $0x10] sm:$0xff]
        %v676 = vld [vmem:[%s672 + $0x18] sm:$0xff]
        %v677 = vld [vmem:[%s672 + $0x20] sm:$0xff]
        %v678 = vld [vmem:[%s672 + $0x28] sm:$0xff]
        %v679 = vld [vmem:[%s672 + $0x30] sm:$0xff]
        %v680 = vld [vmem:[%s672 + $0x38] sm:$0xff]
        %681 = vmatprep.subr.mxu0 0.0
        %682 = vmatpush1.msra.mxu0 %v673
        %683 = vmatprep.subr.mxu0 0.0
        %684 = vmatpush1.msra.mxu0 %v674
        %685 = vmatprep.subr.mxu0 0.0
        %686 = vmatpush1.msra.mxu0 %v675
        %687 = vmatprep.subr.mxu0 0.0
        %688 = vmatpush1.msra.mxu0 %v676
        %689 = vmatprep.subr.mxu0 0.0
        %690 = vmatpush1.msra.mxu0 %v677
        %691 = vmatprep.subr.mxu0 0.0
        %692 = vmatpush1.msra.mxu0 %v678
        %693 = vmatprep.subr.mxu0 0.0
        %694 = vmatpush1.msra.mxu0 %v679
        %695 = vmatprep.subr.mxu0 0.0
        %696 = vmatpush1.msra.mxu0 %v680
        %697 = vmatprep.subr.mxu0 0.0
        %698 = vmatpush1.msra.mxu0 0.0
        %699 = vmatprep.subr.mxu0 0.0
        %700 = vmatpush1.msra.mxu0 0.0
        %701 = vmatprep.subr.mxu0 0.0
        %702 = vmatpush1.msra.mxu0 0.0
        %703 = vmatprep.subr.mxu0 0.0
        %704 = vmatpush1.msra.mxu0 0.0
        %705 = vmatprep.subr.mxu0 0.0
        %706 = vmatpush1.msra.mxu0 0.0
        %707 = vmatprep.subr.mxu0 0.0
        %708 = vmatpush1.msra.mxu0 0.0
        %709 = vmatprep.subr.mxu0 0.0
        %710 = vmatpush1.msra.mxu0 0.0
        %711 = vmatprep.subr.mxu0 0.0
        %712 = vmatpush1.msra.mxu0 0.0
        %713 = vmatprep.subr.mxu0 0.0
        %714 = vmatpush1.msra.mxu0 0.0
        %715 = vmatprep.subr.mxu0 0.0
        %716 = vmatpush1.msra.mxu0 0.0
        %717 = vmatprep.subr.mxu0 0.0
        %718 = vmatpush1.msra.mxu0 0.0
        %719 = vmatprep.subr.mxu0 0.0
        %720 = vmatpush1.msra.mxu0 0.0
        %721 = vmatprep.subr.mxu0 0.0
        %722 = vmatpush1.msra.mxu0 0.0
        %723 = vmatprep.subr.mxu0 0.0
        %724 = vmatpush1.msra.mxu0 0.0
        %725 = vmatprep.subr.mxu0 0.0
        %726 = vmatpush1.msra.mxu0 0.0
        %727 = vmatprep.subr.mxu0 0.0
        %728 = vmatpush1.msra.mxu0 0.0
        %729 = vmatprep.subr.mxu0 0.0
        %730 = vmatpush1.msra.mxu0 0.0
        %731 = vmatprep.subr.mxu0 0.0
        %732 = vmatpush1.msra.mxu0 0.0
        %733 = vmatprep.subr.mxu0 0.0
        %734 = vmatpush1.msra.mxu0 0.0
        %735 = vmatprep.subr.mxu0 0.0
        %736 = vmatpush1.msra.mxu0 0.0
        %737 = vmatprep.subr.mxu0 0.0
        %738 = vmatpush1.msra.mxu0 0.0
        %739 = vmatprep.subr.mxu0 0.0
        %740 = vmatpush1.msra.mxu0 0.0
        %741 = vmatprep.subr.mxu0 0.0
        %742 = vmatpush1.msra.mxu0 0.0
        %743 = vmatprep.subr.mxu0 0.0
        %744 = vmatpush1.msra.mxu0 0.0
        %745 = vmatprep.mubr.f32.mxu0 0.0
        %746 = vmatmul.mubr.f32.gmra.mrb[0].mxu0 %v521
        %v747 = vpop.f32.mrb[0].mxu0
        %v748 = vadd.f32 0.0, %v747
        %v749 = vpop.f32.mrb[0].mxu0
        %750 = vdwg.mxu0
        %s751 = scalar_lea.vmem [#allocation2], 192
        %v752 = vld [vmem:[%s751] sm:$0xff]
        %v753 = vld [vmem:[%s751 + $0x8] sm:$0xff]
        %v754 = vld [vmem:[%s751 + $0x10] sm:$0xff]
        %v755 = vld [vmem:[%s751 + $0x18] sm:$0xff]
        %v756 = vld [vmem:[%s751 + $0x20] sm:$0xff]
        %v757 = vld [vmem:[%s751 + $0x28] sm:$0xff]
        %v758 = vld [vmem:[%s751 + $0x30] sm:$0xff]
        %v759 = vld [vmem:[%s751 + $0x38] sm:$0xff]
        %760 = vmatprep.subr.mxu0 0.0
        %761 = vmatpush1.msra.mxu0 %v752
        %762 = vmatprep.subr.mxu0 0.0
        %763 = vmatpush1.msra.mxu0 %v753
        %764 = vmatprep.subr.mxu0 0.0
        %765 = vmatpush1.msra.mxu0 %v754
        %766 = vmatprep.subr.mxu0 0.0
        %767 = vmatpush1.msra.mxu0 %v755
        %768 = vmatprep.subr.mxu0 0.0
        %769 = vmatpush1.msra.mxu0 %v756
        %770 = vmatprep.subr.mxu0 0.0
        %771 = vmatpush1.msra.mxu0 %v757
        %772 = vmatprep.subr.mxu0 0.0
        %773 = vmatpush1.msra.mxu0 %v758
        %774 = vmatprep.subr.mxu0 0.0
        %775 = vmatpush1.msra.mxu0 %v759
        %776 = vmatprep.subr.mxu0 0.0
        %777 = vmatpush1.msra.mxu0 0.0
        %778 = vmatprep.subr.mxu0 0.0
        %779 = vmatpush1.msra.mxu0 0.0
        %780 = vmatprep.subr.mxu0 0.0
        %781 = vmatpush1.msra.mxu0 0.0
        %782 = vmatprep.subr.mxu0 0.0
        %783 = vmatpush1.msra.mxu0 0.0
        %784 = vmatprep.subr.mxu0 0.0
        %785 = vmatpush1.msra.mxu0 0.0
        %786 = vmatprep.subr.mxu0 0.0
        %787 = vmatpush1.msra.mxu0 0.0
        %788 = vmatprep.subr.mxu0 0.0
        %789 = vmatpush1.msra.mxu0 0.0
        %790 = vmatprep.subr.mxu0 0.0
        %791 = vmatpush1.msra.mxu0 0.0
        %792 = vmatprep.subr.mxu0 0.0
        %793 = vmatpush1.msra.mxu0 0.0
        %794 = vmatprep.subr.mxu0 0.0
        %795 = vmatpush1.msra.mxu0 0.0
        %796 = vmatprep.subr.mxu0 0.0
        %797 = vmatpush1.msra.mxu0 0.0
        %798 = vmatprep.subr.mxu0 0.0
        %799 = vmatpush1.msra.mxu0 0.0
        %800 = vmatprep.subr.mxu0 0.0
        %801 = vmatpush1.msra.mxu0 0.0
        %802 = vmatprep.subr.mxu0 0.0
        %803 = vmatpush1.msra.mxu0 0.0
        %804 = vmatprep.subr.mxu0 0.0
        %805 = vmatpush1.msra.mxu0 0.0
        %806 = vmatprep.subr.mxu0 0.0
        %807 = vmatpush1.msra.mxu0 0.0
        %808 = vmatprep.subr.mxu0 0.0
        %809 = vmatpush1.msra.mxu0 0.0
        %810 = vmatprep.subr.mxu0 0.0
        %811 = vmatpush1.msra.mxu0 0.0
        %812 = vmatprep.subr.mxu0 0.0
        %813 = vmatpush1.msra.mxu0 0.0
        %814 = vmatprep.subr.mxu0 0.0
        %815 = vmatpush1.msra.mxu0 0.0
        %816 = vmatprep.subr.mxu0 0.0
        %817 = vmatpush1.msra.mxu0 0.0
        %818 = vmatprep.subr.mxu0 0.0
        %819 = vmatpush1.msra.mxu0 0.0
        %820 = vmatprep.subr.mxu0 0.0
        %821 = vmatpush1.msra.mxu0 0.0
        %822 = vmatprep.subr.mxu0 0.0
        %823 = vmatpush1.msra.mxu0 0.0
        %824 = vmatprep.mubr.f32.mxu0 0.0
        %825 = vmatmul.mubr.f32.gmra.mrb[0].mxu0 %v521
        %v826 = vpop.f32.mrb[0].mxu0
        %v827 = vadd.f32 0.0, %v826
        %v828 = vpop.f32.mrb[0].mxu0
        %829 = vdwg.mxu0
        %s830 = scalar_lea.vmem [#allocation2], 256
        %v831 = vld [vmem:[%s830] sm:$0xff]
        %v832 = vld [vmem:[%s830 + $0x8] sm:$0xff]
        %v833 = vld [vmem:[%s830 + $0x10] sm:$0xff]
        %v834 = vld [vmem:[%s830 + $0x18] sm:$0xff]
        %v835 = vld [vmem:[%s830 + $0x20] sm:$0xff]
        %v836 = vld [vmem:[%s830 + $0x28] sm:$0xff]
        %v837 = vld [vmem:[%s830 + $0x30] sm:$0xff]
        %v838 = vld [vmem:[%s830 + $0x38] sm:$0xff]
        %839 = vmatprep.subr.mxu0 0.0
        %840 = vmatpush1.msra.mxu0 %v831
        %841 = vmatprep.subr.mxu0 0.0
        %842 = vmatpush1.msra.mxu0 %v832
        %843 = vmatprep.subr.mxu0 0.0
        %844 = vmatpush1.msra.mxu0 %v833
        %845 = vmatprep.subr.mxu0 0.0
        %846 = vmatpush1.msra.mxu0 %v834
        %847 = vmatprep.subr.mxu0 0.0
        %848 = vmatpush1.msra.mxu0 %v835
        %849 = vmatprep.subr.mxu0 0.0
        %850 = vmatpush1.msra.mxu0 %v836
        %851 = vmatprep.subr.mxu0 0.0
        %852 = vmatpush1.msra.mxu0 %v837
        %853 = vmatprep.subr.mxu0 0.0
        %854 = vmatpush1.msra.mxu0 %v838
        %855 = vmatprep.subr.mxu0 0.0
        %856 = vmatpush1.msra.mxu0 0.0
        %857 = vmatprep.subr.mxu0 0.0
        %858 = vmatpush1.msra.mxu0 0.0
        %859 = vmatprep.subr.mxu0 0.0
        %860 = vmatpush1.msra.mxu0 0.0
        %861 = vmatprep.subr.mxu0 0.0
        %862 = vmatpush1.msra.mxu0 0.0
        %863 = vmatprep.subr.mxu0 0.0
        %864 = vmatpush1.msra.mxu0 0.0
        %865 = vmatprep.subr.mxu0 0.0
        %866 = vmatpush1.msra.mxu0 0.0
        %867 = vmatprep.subr.mxu0 0.0
        %868 = vmatpush1.msra.mxu0 0.0
        %869 = vmatprep.subr.mxu0 0.0
        %870 = vmatpush1.msra.mxu0 0.0
        %871 = vmatprep.subr.mxu0 0.0
        %872 = vmatpush1.msra.mxu0 0.0
        %873 = vmatprep.subr.mxu0 0.0
        %874 = vmatpush1.msra.mxu0 0.0
        %875 = vmatprep.subr.mxu0 0.0
        %876 = vmatpush1.msra.mxu0 0.0
        %877 = vmatprep.subr.mxu0 0.0
        %878 = vmatpush1.msra.mxu0 0.0
        %879 = vmatprep.subr.mxu0 0.0
        %880 = vmatpush1.msra.mxu0 0.0
        %881 = vmatprep.subr.mxu0 0.0
        %882 = vmatpush1.msra.mxu0 0.0
        %883 = vmatprep.subr.mxu0 0.0
        %884 = vmatpush1.msra.mxu0 0.0
        %885 = vmatprep.subr.mxu0 0.0
        %886 = vmatpush1.msra.mxu0 0.0
        %887 = vmatprep.subr.mxu0 0.0
        %888 = vmatpush1.msra.mxu0 0.0
        %889 = vmatprep.subr.mxu0 0.0
        %890 = vmatpush1.msra.mxu0 0.0
        %891 = vmatprep.subr.mxu0 0.0
        %892 = vmatpush1.msra.mxu0 0.0
        %893 = vmatprep.subr.mxu0 0.0
        %894 = vmatpush1.msra.mxu0 0.0
        %895 = vmatprep.subr.mxu0 0.0
        %896 = vmatpush1.msra.mxu0 0.0
        %897 = vmatprep.subr.mxu0 0.0
        %898 = vmatpush1.msra.mxu0 0.0
        %899 = vmatprep.subr.mxu0 0.0
        %900 = vmatpush1.msra.mxu0 0.0
        %901 = vmatprep.subr.mxu0 0.0
        %902 = vmatpush1.msra.mxu0 0.0
        %903 = vmatprep.mubr.f32.mxu0 0.0
        %904 = vmatmul.mubr.f32.gmra.mrb[0].mxu0 %v521
        %v905 = vpop.f32.mrb[0].mxu0
        %v906 = vadd.f32 0.0, %v905
        %v907 = vpop.f32.mrb[0].mxu0
        %908 = vdwg.mxu0
        %s909 = scalar_lea.vmem [#allocation2], 320
        %v910 = vld [vmem:[%s909] sm:$0xff]
        %v911 = vld [vmem:[%s909 + $0x8] sm:$0xff]
        %v912 = vld [vmem:[%s909 + $0x10] sm:$0xff]
        %v913 = vld [vmem:[%s909 + $0x18] sm:$0xff]
        %v914 = vld [vmem:[%s909 + $0x20] sm:$0xff]
        %v915 = vld [vmem:[%s909 + $0x28] sm:$0xff]
        %v916 = vld [vmem:[%s909 + $0x30] sm:$0xff]
        %v917 = vld [vmem:[%s909 + $0x38] sm:$0xff]
        %918 = vmatprep.subr.mxu0 0.0
        %919 = vmatpush1.msra.mxu0 %v910
        %920 = vmatprep.subr.mxu0 0.0
        %921 = vmatpush1.msra.mxu0 %v911
        %922 = vmatprep.subr.mxu0 0.0
        %923 = vmatpush1.msra.mxu0 %v912
        %924 = vmatprep.subr.mxu0 0.0
        %925 = vmatpush1.msra.mxu0 %v913
        %926 = vmatprep.subr.mxu0 0.0
        %927 = vmatpush1.msra.mxu0 %v914
        %928 = vmatprep.subr.mxu0 0.0
        %929 = vmatpush1.msra.mxu0 %v915
        %930 = vmatprep.subr.mxu0 0.0
        %931 = vmatpush1.msra.mxu0 %v916
        %932 = vmatprep.subr.mxu0 0.0
        %933 = vmatpush1.msra.mxu0 %v917
        %934 = vmatprep.subr.mxu0 0.0
        %935 = vmatpush1.msra.mxu0 0.0
        %936 = vmatprep.subr.mxu0 0.0
        %937 = vmatpush1.msra.mxu0 0.0
        %938 = vmatprep.subr.mxu0 0.0
        %939 = vmatpush1.msra.mxu0 0.0
        %940 = vmatprep.subr.mxu0 0.0
        %941 = vmatpush1.msra.mxu0 0.0
        %942 = vmatprep.subr.mxu0 0.0
        %943 = vmatpush1.msra.mxu0 0.0
        %944 = vmatprep.subr.mxu0 0.0
        %945 = vmatpush1.msra.mxu0 0.0
        %946 = vmatprep.subr.mxu0 0.0
        %947 = vmatpush1.msra.mxu0 0.0
        %948 = vmatprep.subr.mxu0 0.0
        %949 = vmatpush1.msra.mxu0 0.0
        %950 = vmatprep.subr.mxu0 0.0
        %951 = vmatpush1.msra.mxu0 0.0
        %952 = vmatprep.subr.mxu0 0.0
        %953 = vmatpush1.msra.mxu0 0.0
        %954 = vmatprep.subr.mxu0 0.0
        %955 = vmatpush1.msra.mxu0 0.0
        %956 = vmatprep.subr.mxu0 0.0
        %957 = vmatpush1.msra.mxu0 0.0
        %958 = vmatprep.subr.mxu0 0.0
        %959 = vmatpush1.msra.mxu0 0.0
        %960 = vmatprep.subr.mxu0 0.0
        %961 = vmatpush1.msra.mxu0 0.0
        %962 = vmatprep.subr.mxu0 0.0
        %963 = vmatpush1.msra.mxu0 0.0
        %964 = vmatprep.subr.mxu0 0.0
        %965 = vmatpush1.msra.mxu0 0.0
        %966 = vmatprep.subr.mxu0 0.0
        %967 = vmatpush1.msra.mxu0 0.0
        %968 = vmatprep.subr.mxu0 0.0
        %969 = vmatpush1.msra.mxu0 0.0
        %970 = vmatprep.subr.mxu0 0.0
        %971 = vmatpush1.msra.mxu0 0.0
        %972 = vmatprep.subr.mxu0 0.0
        %973 = vmatpush1.msra.mxu0 0.0
        %974 = vmatprep.subr.mxu0 0.0
        %975 = vmatpush1.msra.mxu0 0.0
        %976 = vmatprep.subr.mxu0 0.0
        %977 = vmatpush1.msra.mxu0 0.0
        %978 = vmatprep.subr.mxu0 0.0
        %979 = vmatpush1.msra.mxu0 0.0
        %980 = vmatprep.subr.mxu0 0.0
        %981 = vmatpush1.msra.mxu0 0.0
        %982 = vmatprep.mubr.f32.mxu0 0.0
        %983 = vmatmul.mubr.f32.gmra.mrb[0].mxu0 %v521
        %v984 = vpop.f32.mrb[0].mxu0
        %v985 = vadd.f32 0.0, %v984
        %v986 = vpop.f32.mrb[0].mxu0
        %987 = vdwg.mxu0
        %s988 = scalar_lea.vmem [#allocation2], 384
        %v989 = vld [vmem:[%s988] sm:$0xff]
        %v990 = vld [vmem:[%s988 + $0x8] sm:$0xff]
        %v991 = vld [vmem:[%s988 + $0x10] sm:$0xff]
        %v992 = vld [vmem:[%s988 + $0x18] sm:$0xff]
        %v993 = vld [vmem:[%s988 + $0x20] sm:$0xff]
        %v994 = vld [vmem:[%s988 + $0x28] sm:$0xff]
        %v995 = vld [vmem:[%s988 + $0x30] sm:$0xff]
        %v996 = vld [vmem:[%s988 + $0x38] sm:$0xff]
        %997 = vmatprep.subr.mxu0 0.0
        %998 = vmatpush1.msra.mxu0 %v989
        %999 = vmatprep.subr.mxu0 0.0
        %1000 = vmatpush1.msra.mxu0 %v990
        %1001 = vmatprep.subr.mxu0 0.0
        %1002 = vmatpush1.msra.mxu0 %v991
        %1003 = vmatprep.subr.mxu0 0.0
        %1004 = vmatpush1.msra.mxu0 %v992
        %1005 = vmatprep.subr.mxu0 0.0
        %1006 = vmatpush1.msra.mxu0 %v993
        %1007 = vmatprep.subr.mxu0 0.0
        %1008 = vmatpush1.msra.mxu0 %v994
        %1009 = vmatprep.subr.mxu0 0.0
        %1010 = vmatpush1.msra.mxu0 %v995
        %1011 = vmatprep.subr.mxu0 0.0
        %1012 = vmatpush1.msra.mxu0 %v996
        %1013 = vmatprep.subr.mxu0 0.0
        %1014 = vmatpush1.msra.mxu0 0.0
        %1015 = vmatprep.subr.mxu0 0.0
        %1016 = vmatpush1.msra.mxu0 0.0
        %1017 = vmatprep.subr.mxu0 0.0
        %1018 = vmatpush1.msra.mxu0 0.0
        %1019 = vmatprep.subr.mxu0 0.0
        %1020 = vmatpush1.msra.mxu0 0.0
        %1021 = vmatprep.subr.mxu0 0.0
        %1022 = vmatpush1.msra.mxu0 0.0
        %1023 = vmatprep.subr.mxu0 0.0
        %1024 = vmatpush1.msra.mxu0 0.0
        %1025 = vmatprep.subr.mxu0 0.0
        %1026 = vmatpush1.msra.mxu0 0.0
        %1027 = vmatprep.subr.mxu0 0.0
        %1028 = vmatpush1.msra.mxu0 0.0
        %1029 = vmatprep.subr.mxu0 0.0
        %1030 = vmatpush1.msra.mxu0 0.0
        %1031 = vmatprep.subr.mxu0 0.0
        %1032 = vmatpush1.msra.mxu0 0.0
        %1033 = vmatprep.subr.mxu0 0.0
        %1034 = vmatpush1.msra.mxu0 0.0
        %1035 = vmatprep.subr.mxu0 0.0
        %1036 = vmatpush1.msra.mxu0 0.0
        %1037 = vmatprep.subr.mxu0 0.0
        %1038 = vmatpush1.msra.mxu0 0.0
        %1039 = vmatprep.subr.mxu0 0.0
        %1040 = vmatpush1.msra.mxu0 0.0
        %1041 = vmatprep.subr.mxu0 0.0
        %1042 = vmatpush1.msra.mxu0 0.0
        %1043 = vmatprep.subr.mxu0 0.0
        %1044 = vmatpush1.msra.mxu0 0.0
        %1045 = vmatprep.subr.mxu0 0.0
        %1046 = vmatpush1.msra.mxu0 0.0
        %1047 = vmatprep.subr.mxu0 0.0
        %1048 = vmatpush1.msra.mxu0 0.0
        %1049 = vmatprep.subr.mxu0 0.0
        %1050 = vmatpush1.msra.mxu0 0.0
        %1051 = vmatprep.subr.mxu0 0.0
        %1052 = vmatpush1.msra.mxu0 0.0
        %1053 = vmatprep.subr.mxu0 0.0
        %1054 = vmatpush1.msra.mxu0 0.0
        %1055 = vmatprep.subr.mxu0 0.0
        %1056 = vmatpush1.msra.mxu0 0.0
        %1057 = vmatprep.subr.mxu0 0.0
        %1058 = vmatpush1.msra.mxu0 0.0
        %1059 = vmatprep.subr.mxu0 0.0
        %1060 = vmatpush1.msra.mxu0 0.0
        %1061 = vmatprep.mubr.f32.mxu0 0.0
        %1062 = vmatmul.mubr.f32.gmra.mrb[0].mxu0 %v521
        %v1063 = vpop.f32.mrb[0].mxu0
        %v1064 = vadd.f32 0.0, %v1063
        %v1065 = vpop.f32.mrb[0].mxu0
        %1066 = vdwg.mxu0
        %s1067 = scalar_lea.vmem [#allocation2], 448
        %v1068 = vld [vmem:[%s1067] sm:$0xff]
        %v1069 = vld [vmem:[%s1067 + $0x8] sm:$0xff]
        %v1070 = vld [vmem:[%s1067 + $0x10] sm:$0xff]
        %v1071 = vld [vmem:[%s1067 + $0x18] sm:$0xff]
        %v1072 = vld [vmem:[%s1067 + $0x20] sm:$0xff]
        %v1073 = vld [vmem:[%s1067 + $0x28] sm:$0xff]
        %v1074 = vld [vmem:[%s1067 + $0x30] sm:$0xff]
        %v1075 = vld [vmem:[%s1067 + $0x38] sm:$0xff]
        %1076 = vmatprep.subr.mxu0 0.0
        %1077 = vmatpush1.msra.mxu0 %v1068
        %1078 = vmatprep.subr.mxu0 0.0
        %1079 = vmatpush1.msra.mxu0 %v1069
        %1080 = vmatprep.subr.mxu0 0.0
        %1081 = vmatpush1.msra.mxu0 %v1070
        %1082 = vmatprep.subr.mxu0 0.0
        %1083 = vmatpush1.msra.mxu0 %v1071
        %1084 = vmatprep.subr.mxu0 0.0
        %1085 = vmatpush1.msra.mxu0 %v1072
        %1086 = vmatprep.subr.mxu0 0.0
        %1087 = vmatpush1.msra.mxu0 %v1073
        %1088 = vmatprep.subr.mxu0 0.0
        %1089 = vmatpush1.msra.mxu0 %v1074
        %1090 = vmatprep.subr.mxu0 0.0
        %1091 = vmatpush1.msra.mxu0 %v1075
        %1092 = vmatprep.subr.mxu0 0.0
        %1093 = vmatpush1.msra.mxu0 0.0
        %1094 = vmatprep.subr.mxu0 0.0
        %1095 = vmatpush1.msra.mxu0 0.0
        %1096 = vmatprep.subr.mxu0 0.0
        %1097 = vmatpush1.msra.mxu0 0.0
        %1098 = vmatprep.subr.mxu0 0.0
        %1099 = vmatpush1.msra.mxu0 0.0
        %1100 = vmatprep.subr.mxu0 0.0
        %1101 = vmatpush1.msra.mxu0 0.0
        %1102 = vmatprep.subr.mxu0 0.0
        %1103 = vmatpush1.msra.mxu0 0.0
        %1104 = vmatprep.subr.mxu0 0.0
        %1105 = vmatpush1.msra.mxu0 0.0
        %1106 = vmatprep.subr.mxu0 0.0
        %1107 = vmatpush1.msra.mxu0 0.0
        %1108 = vmatprep.subr.mxu0 0.0
        %1109 = vmatpush1.msra.mxu0 0.0
        %1110 = vmatprep.subr.mxu0 0.0
        %1111 = vmatpush1.msra.mxu0 0.0
        %1112 = vmatprep.subr.mxu0 0.0
        %1113 = vmatpush1.msra.mxu0 0.0
        %1114 = vmatprep.subr.mxu0 0.0
        %1115 = vmatpush1.msra.mxu0 0.0
        %1116 = vmatprep.subr.mxu0 0.0
        %1117 = vmatpush1.msra.mxu0 0.0
        %1118 = vmatprep.subr.mxu0 0.0
        %1119 = vmatpush1.msra.mxu0 0.0
        %1120 = vmatprep.subr.mxu0 0.0
        %1121 = vmatpush1.msra.mxu0 0.0
        %1122 = vmatprep.subr.mxu0 0.0
        %1123 = vmatpush1.msra.mxu0 0.0
        %1124 = vmatprep.subr.mxu0 0.0
        %1125 = vmatpush1.msra.mxu0 0.0
        %1126 = vmatprep.subr.mxu0 0.0
        %1127 = vmatpush1.msra.mxu0 0.0
        %1128 = vmatprep.subr.mxu0 0.0
        %1129 = vmatpush1.msra.mxu0 0.0
        %1130 = vmatprep.subr.mxu0 0.0
        %1131 = vmatpush1.msra.mxu0 0.0
        %1132 = vmatprep.subr.mxu0 0.0
        %1133 = vmatpush1.msra.mxu0 0.0
        %1134 = vmatprep.subr.mxu0 0.0
        %1135 = vmatpush1.msra.mxu0 0.0
        %1136 = vmatprep.subr.mxu0 0.0
        %1137 = vmatpush1.msra.mxu0 0.0
        %1138 = vmatprep.subr.mxu0 0.0
        %1139 = vmatpush1.msra.mxu0 0.0
        %1140 = vmatprep.mubr.f32.mxu0 0.0
        %1141 = vmatmul.mubr.f32.gmra.mrb[0].mxu0 %v521
        %v1142 = vpop.f32.mrb[0].mxu0
        %v1143 = vadd.f32 0.0, %v1142
        %v1144 = vpop.f32.mrb[0].mxu0
        %1145 = vdwg.mxu0
        %s1146 = scalar_lea.vmem [#allocation2], 512
        %v1147 = vld [vmem:[%s1146] sm:$0xff]
        %v1148 = vld [vmem:[%s1146 + $0x8] sm:$0xff]
        %v1149 = vld [vmem:[%s1146 + $0x10] sm:$0xff]
        %v1150 = vld [vmem:[%s1146 + $0x18] sm:$0xff]
        %v1151 = vld [vmem:[%s1146 + $0x20] sm:$0xff]
        %v1152 = vld [vmem:[%s1146 + $0x28] sm:$0xff]
        %v1153 = vld [vmem:[%s1146 + $0x30] sm:$0xff]
        %v1154 = vld [vmem:[%s1146 + $0x38] sm:$0xff]
        %1155 = vmatprep.subr.mxu0 0.0
        %1156 = vmatpush1.msra.mxu0 %v1147
        %1157 = vmatprep.subr.mxu0 0.0
        %1158 = vmatpush1.msra.mxu0 %v1148
        %1159 = vmatprep.subr.mxu0 0.0
        %1160 = vmatpush1.msra.mxu0 %v1149
        %1161 = vmatprep.subr.mxu0 0.0
        %1162 = vmatpush1.msra.mxu0 %v1150
        %1163 = vmatprep.subr.mxu0 0.0
        %1164 = vmatpush1.msra.mxu0 %v1151
        %1165 = vmatprep.subr.mxu0 0.0
        %1166 = vmatpush1.msra.mxu0 %v1152
        %1167 = vmatprep.subr.mxu0 0.0
        %1168 = vmatpush1.msra.mxu0 %v1153
        %1169 = vmatprep.subr.mxu0 0.0
        %1170 = vmatpush1.msra.mxu0 %v1154
        %1171 = vmatprep.subr.mxu0 0.0
        %1172 = vmatpush1.msra.mxu0 0.0
        %1173 = vmatprep.subr.mxu0 0.0
        %1174 = vmatpush1.msra.mxu0 0.0
        %1175 = vmatprep.subr.mxu0 0.0
        %1176 = vmatpush1.msra.mxu0 0.0
        %1177 = vmatprep.subr.mxu0 0.0
        %1178 = vmatpush1.msra.mxu0 0.0
        %1179 = vmatprep.subr.mxu0 0.0
        %1180 = vmatpush1.msra.mxu0 0.0
        %1181 = vmatprep.subr.mxu0 0.0
        %1182 = vmatpush1.msra.mxu0 0.0
        %1183 = vmatprep.subr.mxu0 0.0
        %1184 = vmatpush1.msra.mxu0 0.0
        %1185 = vmatprep.subr.mxu0 0.0
        %1186 = vmatpush1.msra.mxu0 0.0
        %1187 = vmatprep.subr.mxu0 0.0
        %1188 = vmatpush1.msra.mxu0 0.0
        %1189 = vmatprep.subr.mxu0 0.0
        %1190 = vmatpush1.msra.mxu0 0.0
        %1191 = vmatprep.subr.mxu0 0.0
        %1192 = vmatpush1.msra.mxu0 0.0
        %1193 = vmatprep.subr.mxu0 0.0
        %1194 = vmatpush1.msra.mxu0 0.0
        %1195 = vmatprep.subr.mxu0 0.0
        %1196 = vmatpush1.msra.mxu0 0.0
        %1197 = vmatprep.subr.mxu0 0.0
        %1198 = vmatpush1.msra.mxu0 0.0
        %1199 = vmatprep.subr.mxu0 0.0
        %1200 = vmatpush1.msra.mxu0 0.0
        %1201 = vmatprep.subr.mxu0 0.0
        %1202 = vmatpush1.msra.mxu0 0.0
        %1203 = vmatprep.subr.mxu0 0.0
        %1204 = vmatpush1.msra.mxu0 0.0
        %1205 = vmatprep.subr.mxu0 0.0
        %1206 = vmatpush1.msra.mxu0 0.0
        %1207 = vmatprep.subr.mxu0 0.0
        %1208 = vmatpush1.msra.mxu0 0.0
        %1209 = vmatprep.subr.mxu0 0.0
        %1210 = vmatpush1.msra.mxu0 0.0
        %1211 = vmatprep.subr.mxu0 0.0
        %1212 = vmatpush1.msra.mxu0 0.0
        %1213 = vmatprep.subr.mxu0 0.0
        %1214 = vmatpush1.msra.mxu0 0.0
        %1215 = vmatprep.subr.mxu0 0.0
        %1216 = vmatpush1.msra.mxu0 0.0
        %1217 = vmatprep.subr.mxu0 0.0
        %1218 = vmatpush1.msra.mxu0 0.0
        %1219 = vmatprep.mubr.f32.mxu0 0.0
        %1220 = vmatmul.mubr.f32.gmra.mrb[0].mxu0 %v521
        %v1221 = vpop.f32.mrb[0].mxu0
        %v1222 = vadd.f32 0.0, %v1221
        %v1223 = vpop.f32.mrb[0].mxu0
        %1224 = vdwg.mxu0
        %s1225 = scalar_lea.vmem [#allocation2], 576
        %v1226 = vld [vmem:[%s1225] sm:$0xff]
        %v1227 = vld [vmem:[%s1225 + $0x8] sm:$0xff]
        %v1228 = vld [vmem:[%s1225 + $0x10] sm:$0xff]
        %v1229 = vld [vmem:[%s1225 + $0x18] sm:$0xff]
        %v1230 = vld [vmem:[%s1225 + $0x20] sm:$0xff]
        %v1231 = vld [vmem:[%s1225 + $0x28] sm:$0xff]
        %v1232 = vld [vmem:[%s1225 + $0x30] sm:$0xff]
        %v1233 = vld [vmem:[%s1225 + $0x38] sm:$0xff]
        %1234 = vmatprep.subr.mxu0 0.0
        %1235 = vmatpush1.msra.mxu0 %v1226
        %1236 = vmatprep.subr.mxu0 0.0
        %1237 = vmatpush1.msra.mxu0 %v1227
        %1238 = vmatprep.subr.mxu0 0.0
        %1239 = vmatpush1.msra.mxu0 %v1228
        %1240 = vmatprep.subr.mxu0 0.0
        %1241 = vmatpush1.msra.mxu0 %v1229
        %1242 = vmatprep.subr.mxu0 0.0
        %1243 = vmatpush1.msra.mxu0 %v1230
        %1244 = vmatprep.subr.mxu0 0.0
        %1245 = vmatpush1.msra.mxu0 %v1231
        %1246 = vmatprep.subr.mxu0 0.0
        %1247 = vmatpush1.msra.mxu0 %v1232
        %1248 = vmatprep.subr.mxu0 0.0
        %1249 = vmatpush1.msra.mxu0 %v1233
        %1250 = vmatprep.subr.mxu0 0.0
        %1251 = vmatpush1.msra.mxu0 0.0
        %1252 = vmatprep.subr.mxu0 0.0
        %1253 = vmatpush1.msra.mxu0 0.0
        %1254 = vmatprep.subr.mxu0 0.0
        %1255 = vmatpush1.msra.mxu0 0.0
        %1256 = vmatprep.subr.mxu0 0.0
        %1257 = vmatpush1.msra.mxu0 0.0
        %1258 = vmatprep.subr.mxu0 0.0
        %1259 = vmatpush1.msra.mxu0 0.0
        %1260 = vmatprep.subr.mxu0 0.0
        %1261 = vmatpush1.msra.mxu0 0.0
        %1262 = vmatprep.subr.mxu0 0.0
        %1263 = vmatpush1.msra.mxu0 0.0
        %1264 = vmatprep.subr.mxu0 0.0
        %1265 = vmatpush1.msra.mxu0 0.0
        %1266 = vmatprep.subr.mxu0 0.0
        %1267 = vmatpush1.msra.mxu0 0.0
        %1268 = vmatprep.subr.mxu0 0.0
        %1269 = vmatpush1.msra.mxu0 0.0
        %1270 = vmatprep.subr.mxu0 0.0
        %1271 = vmatpush1.msra.mxu0 0.0
        %1272 = vmatprep.subr.mxu0 0.0
        %1273 = vmatpush1.msra.mxu0 0.0
        %1274 = vmatprep.subr.mxu0 0.0
        %1275 = vmatpush1.msra.mxu0 0.0
        %1276 = vmatprep.subr.mxu0 0.0
        %1277 = vmatpush1.msra.mxu0 0.0
        %1278 = vmatprep.subr.mxu0 0.0
        %1279 = vmatpush1.msra.mxu0 0.0
        %1280 = vmatprep.subr.mxu0 0.0
        %1281 = vmatpush1.msra.mxu0 0.0
        %1282 = vmatprep.subr.mxu0 0.0
        %1283 = vmatpush1.msra.mxu0 0.0
        %1284 = vmatprep.subr.mxu0 0.0
        %1285 = vmatpush1.msra.mxu0 0.0
        %1286 = vmatprep.subr.mxu0 0.0
        %1287 = vmatpush1.msra.mxu0 0.0
        %1288 = vmatprep.subr.mxu0 0.0
        %1289 = vmatpush1.msra.mxu0 0.0
        %1290 = vmatprep.subr.mxu0 0.0
        %1291 = vmatpush1.msra.mxu0 0.0
        %1292 = vmatprep.subr.mxu0 0.0
        %1293 = vmatpush1.msra.mxu0 0.0
        %1294 = vmatprep.subr.mxu0 0.0
        %1295 = vmatpush1.msra.mxu0 0.0
        %1296 = vmatprep.subr.mxu0 0.0
        %1297 = vmatpush1.msra.mxu0 0.0
        %1298 = vmatprep.mubr.f32.mxu0 0.0
        %1299 = vmatmul.mubr.f32.gmra.mrb[0].mxu0 %v521
        %v1300 = vpop.f32.mrb[0].mxu0
        %v1301 = vadd.f32 0.0, %v1300
        %v1302 = vpop.f32.mrb[0].mxu0
        %1303 = vdwg.mxu0
        %s1304 = scalar_lea.vmem [#allocation2], 640
        %v1305 = vld [vmem:[%s1304] sm:$0xff]
        %v1306 = vld [vmem:[%s1304 + $0x8] sm:$0xff]
        %v1307 = vld [vmem:[%s1304 + $0x10] sm:$0xff]
        %v1308 = vld [vmem:[%s1304 + $0x18] sm:$0xff]
        %v1309 = vld [vmem:[%s1304 + $0x20] sm:$0xff]
        %v1310 = vld [vmem:[%s1304 + $0x28] sm:$0xff]
        %v1311 = vld [vmem:[%s1304 + $0x30] sm:$0xff]
        %v1312 = vld [vmem:[%s1304 + $0x38] sm:$0xff]
        %1313 = vmatprep.subr.mxu0 0.0
        %1314 = vmatpush1.msra.mxu0 %v1305
        %1315 = vmatprep.subr.mxu0 0.0
        %1316 = vmatpush1.msra.mxu0 %v1306
        %1317 = vmatprep.subr.mxu0 0.0
        %1318 = vmatpush1.msra.mxu0 %v1307
        %1319 = vmatprep.subr.mxu0 0.0
        %1320 = vmatpush1.msra.mxu0 %v1308
        %1321 = vmatprep.subr.mxu0 0.0
        %1322 = vmatpush1.msra.mxu0 %v1309
        %1323 = vmatprep.subr.mxu0 0.0
        %1324 = vmatpush1.msra.mxu0 %v1310
        %1325 = vmatprep.subr.mxu0 0.0
        %1326 = vmatpush1.msra.mxu0 %v1311
        %1327 = vmatprep.subr.mxu0 0.0
        %1328 = vmatpush1.msra.mxu0 %v1312
        %1329 = vmatprep.subr.mxu0 0.0
        %1330 = vmatpush1.msra.mxu0 0.0
        %1331 = vmatprep.subr.mxu0 0.0
        %1332 = vmatpush1.msra.mxu0 0.0
        %1333 = vmatprep.subr.mxu0 0.0
        %1334 = vmatpush1.msra.mxu0 0.0
        %1335 = vmatprep.subr.mxu0 0.0
        %1336 = vmatpush1.msra.mxu0 0.0
        %1337 = vmatprep.subr.mxu0 0.0
        %1338 = vmatpush1.msra.mxu0 0.0
        %1339 = vmatprep.subr.mxu0 0.0
        %1340 = vmatpush1.msra.mxu0 0.0
        %1341 = vmatprep.subr.mxu0 0.0
        %1342 = vmatpush1.msra.mxu0 0.0
        %1343 = vmatprep.subr.mxu0 0.0
        %1344 = vmatpush1.msra.mxu0 0.0
        %1345 = vmatprep.subr.mxu0 0.0
        %1346 = vmatpush1.msra.mxu0 0.0
        %1347 = vmatprep.subr.mxu0 0.0
        %1348 = vmatpush1.msra.mxu0 0.0
        %1349 = vmatprep.subr.mxu0 0.0
        %1350 = vmatpush1.msra.mxu0 0.0
        %1351 = vmatprep.subr.mxu0 0.0
        %1352 = vmatpush1.msra.mxu0 0.0
        %1353 = vmatprep.subr.mxu0 0.0
        %1354 = vmatpush1.msra.mxu0 0.0
        %1355 = vmatprep.subr.mxu0 0.0
        %1356 = vmatpush1.msra.mxu0 0.0
        %1357 = vmatprep.subr.mxu0 0.0
        %1358 = vmatpush1.msra.mxu0 0.0
        %1359 = vmatprep.subr.mxu0 0.0
        %1360 = vmatpush1.msra.mxu0 0.0
        %1361 = vmatprep.subr.mxu0 0.0
        %1362 = vmatpush1.msra.mxu0 0.0
        %1363 = vmatprep.subr.mxu0 0.0
        %1364 = vmatpush1.msra.mxu0 0.0
        %1365 = vmatprep.subr.mxu0 0.0
        %1366 = vmatpush1.msra.mxu0 0.0
        %1367 = vmatprep.subr.mxu0 0.0
        %1368 = vmatpush1.msra.mxu0 0.0
        %1369 = vmatprep.subr.mxu0 0.0
        %1370 = vmatpush1.msra.mxu0 0.0
        %1371 = vmatprep.subr.mxu0 0.0
        %1372 = vmatpush1.msra.mxu0 0.0
        %1373 = vmatprep.subr.mxu0 0.0
        %1374 = vmatpush1.msra.mxu0 0.0
        %1375 = vmatprep.subr.mxu0 0.0
        %1376 = vmatpush1.msra.mxu0 0.0
        %1377 = vmatprep.mubr.f32.mxu0 0.0
        %1378 = vmatmul.mubr.f32.gmra.mrb[0].mxu0 %v521
        %v1379 = vpop.f32.mrb[0].mxu0
        %v1380 = vadd.f32 0.0, %v1379
        %v1381 = vpop.f32.mrb[0].mxu0
        %1382 = vdwg.mxu0
        %s1383 = scalar_lea.vmem [#allocation2], 704
        %v1384 = vld [vmem:[%s1383] sm:$0xff]
        %v1385 = vld [vmem:[%s1383 + $0x8] sm:$0xff]
        %v1386 = vld [vmem:[%s1383 + $0x10] sm:$0xff]
        %v1387 = vld [vmem:[%s1383 + $0x18] sm:$0xff]
        %v1388 = vld [vmem:[%s1383 + $0x20] sm:$0xff]
        %v1389 = vld [vmem:[%s1383 + $0x28] sm:$0xff]
        %v1390 = vld [vmem:[%s1383 + $0x30] sm:$0xff]
        %v1391 = vld [vmem:[%s1383 + $0x38] sm:$0xff]
        %1392 = vmatprep.subr.mxu0 0.0
        %1393 = vmatpush1.msra.mxu0 %v1384
        %1394 = vmatprep.subr.mxu0 0.0
        %1395 = vmatpush1.msra.mxu0 %v1385
        %1396 = vmatprep.subr.mxu0 0.0
        %1397 = vmatpush1.msra.mxu0 %v1386
        %1398 = vmatprep.subr.mxu0 0.0
        %1399 = vmatpush1.msra.mxu0 %v1387
        %1400 = vmatprep.subr.mxu0 0.0
        %1401 = vmatpush1.msra.mxu0 %v1388
        %1402 = vmatprep.subr.mxu0 0.0
        %1403 = vmatpush1.msra.mxu0 %v1389
        %1404 = vmatprep.subr.mxu0 0.0
        %1405 = vmatpush1.msra.mxu0 %v1390
        %1406 = vmatprep.subr.mxu0 0.0
        %1407 = vmatpush1.msra.mxu0 %v1391
        %1408 = vmatprep.subr.mxu0 0.0
        %1409 = vmatpush1.msra.mxu0 0.0
        %1410 = vmatprep.subr.mxu0 0.0
        %1411 = vmatpush1.msra.mxu0 0.0
        %1412 = vmatprep.subr.mxu0 0.0
        %1413 = vmatpush1.msra.mxu0 0.0
        %1414 = vmatprep.subr.mxu0 0.0
        %1415 = vmatpush1.msra.mxu0 0.0
        %1416 = vmatprep.subr.mxu0 0.0
        %1417 = vmatpush1.msra.mxu0 0.0
        %1418 = vmatprep.subr.mxu0 0.0
        %1419 = vmatpush1.msra.mxu0 0.0
        %1420 = vmatprep.subr.mxu0 0.0
        %1421 = vmatpush1.msra.mxu0 0.0
        %1422 = vmatprep.subr.mxu0 0.0
        %1423 = vmatpush1.msra.mxu0 0.0
        %1424 = vmatprep.subr.mxu0 0.0
        %1425 = vmatpush1.msra.mxu0 0.0
        %1426 = vmatprep.subr.mxu0 0.0
        %1427 = vmatpush1.msra.mxu0 0.0
        %1428 = vmatprep.subr.mxu0 0.0
        %1429 = vmatpush1.msra.mxu0 0.0
        %1430 = vmatprep.subr.mxu0 0.0
        %1431 = vmatpush1.msra.mxu0 0.0
        %1432 = vmatprep.subr.mxu0 0.0
        %1433 = vmatpush1.msra.mxu0 0.0
        %1434 = vmatprep.subr.mxu0 0.0
        %1435 = vmatpush1.msra.mxu0 0.0
        %1436 = vmatprep.subr.mxu0 0.0
        %1437 = vmatpush1.msra.mxu0 0.0
        %1438 = vmatprep.subr.mxu0 0.0
        %1439 = vmatpush1.msra.mxu0 0.0
        %1440 = vmatprep.subr.mxu0 0.0
        %1441 = vmatpush1.msra.mxu0 0.0
        %1442 = vmatprep.subr.mxu0 0.0
        %1443 = vmatpush1.msra.mxu0 0.0
        %1444 = vmatprep.subr.mxu0 0.0
        %1445 = vmatpush1.msra.mxu0 0.0
        %1446 = vmatprep.subr.mxu0 0.0
        %1447 = vmatpush1.msra.mxu0 0.0
        %1448 = vmatprep.subr.mxu0 0.0
        %1449 = vmatpush1.msra.mxu0 0.0
        %1450 = vmatprep.subr.mxu0 0.0
        %1451 = vmatpush1.msra.mxu0 0.0
        %1452 = vmatprep.subr.mxu0 0.0
        %1453 = vmatpush1.msra.mxu0 0.0
        %1454 = vmatprep.subr.mxu0 0.0
        %1455 = vmatpush1.msra.mxu0 0.0
        %1456 = vmatprep.mubr.f32.mxu0 0.0
        %1457 = vmatmul.mubr.f32.gmra.mrb[0].mxu0 %v521
        %v1458 = vpop.f32.mrb[0].mxu0
        %v1459 = vadd.f32 0.0, %v1458
        %v1460 = vpop.f32.mrb[0].mxu0
        %1461 = vdwg.mxu0
        %s1462 = scalar_lea.vmem [#allocation2], 768
        %v1463 = vld [vmem:[%s1462] sm:$0xff]
        %v1464 = vld [vmem:[%s1462 + $0x8] sm:$0xff]
        %v1465 = vld [vmem:[%s1462 + $0x10] sm:$0xff]
        %v1466 = vld [vmem:[%s1462 + $0x18] sm:$0xff]
        %v1467 = vld [vmem:[%s1462 + $0x20] sm:$0xff]
        %v1468 = vld [vmem:[%s1462 + $0x28] sm:$0xff]
        %v1469 = vld [vmem:[%s1462 + $0x30] sm:$0xff]
        %v1470 = vld [vmem:[%s1462 + $0x38] sm:$0xff]
        %1471 = vmatprep.subr.mxu0 0.0
        %1472 = vmatpush1.msra.mxu0 %v1463
        %1473 = vmatprep.subr.mxu0 0.0
        %1474 = vmatpush1.msra.mxu0 %v1464
        %1475 = vmatprep.subr.mxu0 0.0
        %1476 = vmatpush1.msra.mxu0 %v1465
        %1477 = vmatprep.subr.mxu0 0.0
        %1478 = vmatpush1.msra.mxu0 %v1466
        %1479 = vmatprep.subr.mxu0 0.0
        %1480 = vmatpush1.msra.mxu0 %v1467
        %1481 = vmatprep.subr.mxu0 0.0
        %1482 = vmatpush1.msra.mxu0 %v1468
        %1483 = vmatprep.subr.mxu0 0.0
        %1484 = vmatpush1.msra.mxu0 %v1469
        %1485 = vmatprep.subr.mxu0 0.0
        %1486 = vmatpush1.msra.mxu0 %v1470
        %1487 = vmatprep.subr.mxu0 0.0
        %1488 = vmatpush1.msra.mxu0 0.0
        %1489 = vmatprep.subr.mxu0 0.0
        %1490 = vmatpush1.msra.mxu0 0.0
        %1491 = vmatprep.subr.mxu0 0.0
        %1492 = vmatpush1.msra.mxu0 0.0
        %1493 = vmatprep.subr.mxu0 0.0
        %1494 = vmatpush1.msra.mxu0 0.0
        %1495 = vmatprep.subr.mxu0 0.0
        %1496 = vmatpush1.msra.mxu0 0.0
        %1497 = vmatprep.subr.mxu0 0.0
        %1498 = vmatpush1.msra.mxu0 0.0
        %1499 = vmatprep.subr.mxu0 0.0
        %1500 = vmatpush1.msra.mxu0 0.0
        %1501 = vmatprep.subr.mxu0 0.0
        %1502 = vmatpush1.msra.mxu0 0.0
        %1503 = vmatprep.subr.mxu0 0.0
        %1504 = vmatpush1.msra.mxu0 0.0
        %1505 = vmatprep.subr.mxu0 0.0
        %1506 = vmatpush1.msra.mxu0 0.0
        %1507 = vmatprep.subr.mxu0 0.0
        %1508 = vmatpush1.msra.mxu0 0.0
        %1509 = vmatprep.subr.mxu0 0.0
        %1510 = vmatpush1.msra.mxu0 0.0
        %1511 = vmatprep.subr.mxu0 0.0
        %1512 = vmatpush1.msra.mxu0 0.0
        %1513 = vmatprep.subr.mxu0 0.0
        %1514 = vmatpush1.msra.mxu0 0.0
        %1515 = vmatprep.subr.mxu0 0.0
        %1516 = vmatpush1.msra.mxu0 0.0
        %1517 = vmatprep.subr.mxu0 0.0
        %1518 = vmatpush1.msra.mxu0 0.0
        %1519 = vmatprep.subr.mxu0 0.0
        %1520 = vmatpush1.msra.mxu0 0.0
        %1521 = vmatprep.subr.mxu0 0.0
        %1522 = vmatpush1.msra.mxu0 0.0
        %1523 = vmatprep.subr.mxu0 0.0
        %1524 = vmatpush1.msra.mxu0 0.0
        %1525 = vmatprep.subr.mxu0 0.0
        %1526 = vmatpush1.msra.mxu0 0.0
        %1527 = vmatprep.subr.mxu0 0.0
        %1528 = vmatpush1.msra.mxu0 0.0
        %1529 = vmatprep.subr.mxu0 0.0
        %1530 = vmatpush1.msra.mxu0 0.0
        %1531 = vmatprep.subr.mxu0 0.0
        %1532 = vmatpush1.msra.mxu0 0.0
        %1533 = vmatprep.subr.mxu0 0.0
        %1534 = vmatpush1.msra.mxu0 0.0
        %1535 = vmatprep.mubr.f32.mxu0 0.0
        %1536 = vmatmul.mubr.f32.gmra.mrb[0].mxu0 %v521
        %v1537 = vpop.f32.mrb[0].mxu0
        %v1538 = vadd.f32 0.0, %v1537
        %v1539 = vpop.f32.mrb[0].mxu0
        %1540 = vdwg.mxu0
        %s1541 = scalar_lea.vmem [#allocation2], 832
        %v1542 = vld [vmem:[%s1541] sm:$0xff]
        %v1543 = vld [vmem:[%s1541 + $0x8] sm:$0xff]
        %v1544 = vld [vmem:[%s1541 + $0x10] sm:$0xff]
        %v1545 = vld [vmem:[%s1541 + $0x18] sm:$0xff]
        %v1546 = vld [vmem:[%s1541 + $0x20] sm:$0xff]
        %v1547 = vld [vmem:[%s1541 + $0x28] sm:$0xff]
        %v1548 = vld [vmem:[%s1541 + $0x30] sm:$0xff]
        %v1549 = vld [vmem:[%s1541 + $0x38] sm:$0xff]
        %1550 = vmatprep.subr.mxu0 0.0
        %1551 = vmatpush1.msra.mxu0 %v1542
        %1552 = vmatprep.subr.mxu0 0.0
        %1553 = vmatpush1.msra.mxu0 %v1543
        %1554 = vmatprep.subr.mxu0 0.0
        %1555 = vmatpush1.msra.mxu0 %v1544
        %1556 = vmatprep.subr.mxu0 0.0
        %1557 = vmatpush1.msra.mxu0 %v1545
        %1558 = vmatprep.subr.mxu0 0.0
        %1559 = vmatpush1.msra.mxu0 %v1546
        %1560 = vmatprep.subr.mxu0 0.0
        %1561 = vmatpush1.msra.mxu0 %v1547
        %1562 = vmatprep.subr.mxu0 0.0
        %1563 = vmatpush1.msra.mxu0 %v1548
        %1564 = vmatprep.subr.mxu0 0.0
        %1565 = vmatpush1.msra.mxu0 %v1549
        %1566 = vmatprep.subr.mxu0 0.0
        %1567 = vmatpush1.msra.mxu0 0.0
        %1568 = vmatprep.subr.mxu0 0.0
        %1569 = vmatpush1.msra.mxu0 0.0
        %1570 = vmatprep.subr.mxu0 0.0
        %1571 = vmatpush1.msra.mxu0 0.0
        %1572 = vmatprep.subr.mxu0 0.0
        %1573 = vmatpush1.msra.mxu0 0.0
        %1574 = vmatprep.subr.mxu0 0.0
        %1575 = vmatpush1.msra.mxu0 0.0
        %1576 = vmatprep.subr.mxu0 0.0
        %1577 = vmatpush1.msra.mxu0 0.0
        %1578 = vmatprep.subr.mxu0 0.0
        %1579 = vmatpush1.msra.mxu0 0.0
        %1580 = vmatprep.subr.mxu0 0.0
        %1581 = vmatpush1.msra.mxu0 0.0
        %1582 = vmatprep.subr.mxu0 0.0
        %1583 = vmatpush1.msra.mxu0 0.0
        %1584 = vmatprep.subr.mxu0 0.0
        %1585 = vmatpush1.msra.mxu0 0.0
        %1586 = vmatprep.subr.mxu0 0.0
        %1587 = vmatpush1.msra.mxu0 0.0
        %1588 = vmatprep.subr.mxu0 0.0
        %1589 = vmatpush1.msra.mxu0 0.0
        %1590 = vmatprep.subr.mxu0 0.0
        %1591 = vmatpush1.msra.mxu0 0.0
        %1592 = vmatprep.subr.mxu0 0.0
        %1593 = vmatpush1.msra.mxu0 0.0
        %1594 = vmatprep.subr.mxu0 0.0
        %1595 = vmatpush1.msra.mxu0 0.0
        %1596 = vmatprep.subr.mxu0 0.0
        %1597 = vmatpush1.msra.mxu0 0.0
        %1598 = vmatprep.subr.mxu0 0.0
        %1599 = vmatpush1.msra.mxu0 0.0
        %1600 = vmatprep.subr.mxu0 0.0
        %1601 = vmatpush1.msra.mxu0 0.0
        %1602 = vmatprep.subr.mxu0 0.0
        %1603 = vmatpush1.msra.mxu0 0.0
        %1604 = vmatprep.subr.mxu0 0.0
        %1605 = vmatpush1.msra.mxu0 0.0
        %1606 = vmatprep.subr.mxu0 0.0
        %1607 = vmatpush1.msra.mxu0 0.0
        %1608 = vmatprep.subr.mxu0 0.0
        %1609 = vmatpush1.msra.mxu0 0.0
        %1610 = vmatprep.subr.mxu0 0.0
        %1611 = vmatpush1.msra.mxu0 0.0
        %1612 = vmatprep.subr.mxu0 0.0
        %1613 = vmatpush1.msra.mxu0 0.0
        %1614 = vmatprep.mubr.f32.mxu0 0.0
        %1615 = vmatmul.mubr.f32.gmra.mrb[0].mxu0 %v521
        %v1616 = vpop.f32.mrb[0].mxu0
        %v1617 = vadd.f32 0.0, %v1616
        %v1618 = vpop.f32.mrb[0].mxu0
        %1619 = vdwg.mxu0
        %s1620 = scalar_lea.vmem [#allocation2], 896
        %v1621 = vld [vmem:[%s1620] sm:$0xff]
        %v1622 = vld [vmem:[%s1620 + $0x8] sm:$0xff]
        %v1623 = vld [vmem:[%s1620 + $0x10] sm:$0xff]
        %v1624 = vld [vmem:[%s1620 + $0x18] sm:$0xff]
        %v1625 = vld [vmem:[%s1620 + $0x20] sm:$0xff]
        %v1626 = vld [vmem:[%s1620 + $0x28] sm:$0xff]
        %v1627 = vld [vmem:[%s1620 + $0x30] sm:$0xff]
        %v1628 = vld [vmem:[%s1620 + $0x38] sm:$0xff]
        %1629 = vmatprep.subr.mxu0 0.0
        %1630 = vmatpush1.msra.mxu0 %v1621
        %1631 = vmatprep.subr.mxu0 0.0
        %1632 = vmatpush1.msra.mxu0 %v1622
        %1633 = vmatprep.subr.mxu0 0.0
        %1634 = vmatpush1.msra.mxu0 %v1623
        %1635 = vmatprep.subr.mxu0 0.0
        %1636 = vmatpush1.msra.mxu0 %v1624
        %1637 = vmatprep.subr.mxu0 0.0
        %1638 = vmatpush1.msra.mxu0 %v1625
        %1639 = vmatprep.subr.mxu0 0.0
        %1640 = vmatpush1.msra.mxu0 %v1626
        %1641 = vmatprep.subr.mxu0 0.0
        %1642 = vmatpush1.msra.mxu0 %v1627
        %1643 = vmatprep.subr.mxu0 0.0
        %1644 = vmatpush1.msra.mxu0 %v1628
        %1645 = vmatprep.subr.mxu0 0.0
        %1646 = vmatpush1.msra.mxu0 0.0
        %1647 = vmatprep.subr.mxu0 0.0
        %1648 = vmatpush1.msra.mxu0 0.0
        %1649 = vmatprep.subr.mxu0 0.0
        %1650 = vmatpush1.msra.mxu0 0.0
        %1651 = vmatprep.subr.mxu0 0.0
        %1652 = vmatpush1.msra.mxu0 0.0
        %1653 = vmatprep.subr.mxu0 0.0
        %1654 = vmatpush1.msra.mxu0 0.0
        %1655 = vmatprep.subr.mxu0 0.0
        %1656 = vmatpush1.msra.mxu0 0.0
        %1657 = vmatprep.subr.mxu0 0.0
        %1658 = vmatpush1.msra.mxu0 0.0
        %1659 = vmatprep.subr.mxu0 0.0
        %1660 = vmatpush1.msra.mxu0 0.0
        %1661 = vmatprep.subr.mxu0 0.0
        %1662 = vmatpush1.msra.mxu0 0.0
        %1663 = vmatprep.subr.mxu0 0.0
        %1664 = vmatpush1.msra.mxu0 0.0
        %1665 = vmatprep.subr.mxu0 0.0
        %1666 = vmatpush1.msra.mxu0 0.0
        %1667 = vmatprep.subr.mxu0 0.0
        %1668 = vmatpush1.msra.mxu0 0.0
        %1669 = vmatprep.subr.mxu0 0.0
        %1670 = vmatpush1.msra.mxu0 0.0
        %1671 = vmatprep.subr.mxu0 0.0
        %1672 = vmatpush1.msra.mxu0 0.0
        %1673 = vmatprep.subr.mxu0 0.0
        %1674 = vmatpush1.msra.mxu0 0.0
        %1675 = vmatprep.subr.mxu0 0.0
        %1676 = vmatpush1.msra.mxu0 0.0
        %1677 = vmatprep.subr.mxu0 0.0
        %1678 = vmatpush1.msra.mxu0 0.0
        %1679 = vmatprep.subr.mxu0 0.0
        %1680 = vmatpush1.msra.mxu0 0.0
        %1681 = vmatprep.subr.mxu0 0.0
        %1682 = vmatpush1.msra.mxu0 0.0
        %1683 = vmatprep.subr.mxu0 0.0
        %1684 = vmatpush1.msra.mxu0 0.0
        %1685 = vmatprep.subr.mxu0 0.0
        %1686 = vmatpush1.msra.mxu0 0.0
        %1687 = vmatprep.subr.mxu0 0.0
        %1688 = vmatpush1.msra.mxu0 0.0
        %1689 = vmatprep.subr.mxu0 0.0
        %1690 = vmatpush1.msra.mxu0 0.0
        %1691 = vmatprep.subr.mxu0 0.0
        %1692 = vmatpush1.msra.mxu0 0.0
        %1693 = vmatprep.mubr.f32.mxu0 0.0
        %1694 = vmatmul.mubr.f32.gmra.mrb[0].mxu0 %v521
        %v1695 = vpop.f32.mrb[0].mxu0
        %v1696 = vadd.f32 0.0, %v1695
        %v1697 = vpop.f32.mrb[0].mxu0
        %1698 = vdwg.mxu0
        %v1699 = vld [vmem:[%s3] sm:$0xff]
        %v1700 = vld [vmem:[%s3 + $0x8] sm:$0xff]
        %v1701 = vld [vmem:[%s3 + $0x10] sm:$0xff]
        %v1702 = vld [vmem:[%s3 + $0x18] sm:$0xff]
        %v1703 = vld [vmem:[%s4] sm:$0xff]
        %v1704 = vld [vmem:[%s4 + $0x8] sm:$0xff]
        %v1705 = vld [vmem:[%s4 + $0x10] sm:$0xff]
        %v1706 = vld [vmem:[%s4 + $0x18] sm:$0xff]
        %vm1707 = vcmask 982016
        %v1709 = vsel %vm1707, %v1699, 0
        %v1712 = vsel %vm1707, %v1700, 0
        %v1715 = vsel %vm1707, %v1701, 0
        %v1718 = vsel %vm1707, %v1702, 0
        %1720 = vmatprep.subr.mxu0 0.0
        %1721 = vmatpush1.msra.mxu0 %v590
        %1722 = vmatprep.subr.mxu0 0.0
        %1723 = vmatpush1.msra.mxu0 %v669
        %1724 = vmatprep.subr.mxu0 0.0
        %1725 = vmatpush1.msra.mxu0 %v748
        %1726 = vmatprep.subr.mxu0 0.0
        %1727 = vmatpush1.msra.mxu0 %v827
        %1728 = vmatprep.subr.mxu0 0.0
        %1729 = vmatpush1.msra.mxu0 %v906
        %1730 = vmatprep.subr.mxu0 0.0
        %1731 = vmatpush1.msra.mxu0 %v985
        %1732 = vmatprep.subr.mxu0 0.0
        %1733 = vmatpush1.msra.mxu0 %v1064
        %1734 = vmatprep.subr.mxu0 0.0
        %1735 = vmatpush1.msra.mxu0 %v1143
        %1736 = vmatprep.subr.mxu0 0.0
        %1737 = vmatpush1.msra.mxu0 %v1222
        %1738 = vmatprep.subr.mxu0 0.0
        %1739 = vmatpush1.msra.mxu0 %v1301
        %1740 = vmatprep.subr.mxu0 0.0
        %1741 = vmatpush1.msra.mxu0 %v1380
        %1742 = vmatprep.subr.mxu0 0.0
        %1743 = vmatpush1.msra.mxu0 %v1459
        %1744 = vmatprep.subr.mxu0 0.0
        %1745 = vmatpush1.msra.mxu0 %v1538
        %1746 = vmatprep.subr.mxu0 0.0
        %1747 = vmatpush1.msra.mxu0 %v1617
        %1748 = vmatprep.subr.mxu0 0.0
        %1749 = vmatpush1.msra.mxu0 %v1696
        %1750 = vmatprep.subr.mxu0 0.0
        %1751 = vmatpush1.msra.mxu0 0.0
        %1752 = vmatprep.subr.mxu0 0.0
        %1753 = vmatpush1.msra.mxu0 0.0
        %1754 = vmatprep.subr.mxu0 0.0
        %1755 = vmatpush1.msra.mxu0 0.0
        %1756 = vmatprep.subr.mxu0 0.0
        %1757 = vmatpush1.msra.mxu0 0.0
        %1758 = vmatprep.subr.mxu0 0.0
        %1759 = vmatpush1.msra.mxu0 0.0
        %1760 = vmatprep.subr.mxu0 0.0
        %1761 = vmatpush1.msra.mxu0 0.0
        %1762 = vmatprep.subr.mxu0 0.0
        %1763 = vmatpush1.msra.mxu0 0.0
        %1764 = vmatprep.subr.mxu0 0.0
        %1765 = vmatpush1.msra.mxu0 0.0
        %1766 = vmatprep.subr.mxu0 0.0
        %1767 = vmatpush1.msra.mxu0 0.0
        %1768 = vmatprep.subr.mxu0 0.0
        %1769 = vmatpush1.msra.mxu0 0.0
        %1770 = vmatprep.subr.mxu0 0.0
        %1771 = vmatpush1.msra.mxu0 0.0
        %1772 = vmatprep.subr.mxu0 0.0
        %1773 = vmatpush1.msra.mxu0 0.0
        %1774 = vmatprep.subr.mxu0 0.0
        %1775 = vmatpush1.msra.mxu0 0.0
        %1776 = vmatprep.subr.mxu0 0.0
        %1777 = vmatpush1.msra.mxu0 0.0
        %1778 = vmatprep.subr.mxu0 0.0
        %1779 = vmatpush1.msra.mxu0 0.0
        %1780 = vmatprep.subr.mxu0 0.0
        %1781 = vmatpush1.msra.mxu0 0.0
        %1782 = vmatprep.subr.mxu0 0.0
        %1783 = vmatpush1.msra.mxu0 0.0
        %1784 = vmatprep.mubr.f32.mxu0 0.0
        %1785 = vmatmul.mubr.f32.gmra.mrb[0].mxu0 %v1709
        %v1786 = vpop.f32.mrb[0].mxu0
        %v1787 = vadd.f32 %v1703, %v1786
        %v1788 = vpop.f32.mrb[0].mxu0
        %1789 = vmatprep.mubr.f32.mxu0 0.0
        %1790 = vmatmul.mubr.f32.gmra.mrb[0].mxu0 %v1712
        %v1791 = vpop.f32.mrb[0].mxu0
        %v1792 = vadd.f32 %v1704, %v1791
        %v1793 = vpop.f32.mrb[0].mxu0
        %1794 = vmatprep.mubr.f32.mxu0 0.0
        %1795 = vmatmul.mubr.f32.gmra.mrb[0].mxu0 %v1715
        %v1796 = vpop.f32.mrb[0].mxu0
        %v1797 = vadd.f32 %v1705, %v1796
        %v1798 = vpop.f32.mrb[0].mxu0
        %1799 = vmatprep.mubr.f32.mxu0 0.0
        %1800 = vmatmul.mubr.f32.gmra.mrb[0].mxu0 %v1718
        %v1801 = vpop.f32.mrb[0].mxu0
        %v1802 = vadd.f32 %v1706, %v1801
        %v1803 = vpop.f32.mrb[0].mxu0
        %1804 = vdwg.mxu0
        %vm1805 = vcmask 64512
        %v1806 = vsel %vm1805, %v1787, 0.0
        %1807 = vadd.xlane.f32.xlu0 %v1806
        %v1808 = vpop.xlane.xlu0 %1807
        %v1809 = vsel %vm1805, %v1792, 0.0
        %1810 = vadd.xlane.f32.xlu0 %v1809
        %v1811 = vpop.xlane.xlu0 %1810
        %v1812 = vrcp.pop 8.0
        %v1813 = vmul.f32 %v1808, %v1812
        %v1814 = vmul.f32 %v1811, %v1812
        %v1815 = vsel %vm1805, %v1797, 0.0
        %1816 = vadd.xlane.f32.xlu0 %v1815
        %v1817 = vpop.xlane.xlu0 %1816
        %v1818 = vsel %vm1805, %v1802, 0.0
        %1819 = vadd.xlane.f32.xlu0 %v1818
        %v1820 = vpop.xlane.xlu0 %1819
        %v1821 = vmul.f32 %v1817, %v1812
        %v1822 = vmul.f32 %v1820, %v1812
        %v1823 = vsub.f32 %v1787, %v1813
        %v1824 = vsub.f32 %v1792, %v1814
        %v1825 = vsub.f32 %v1797, %v1821
        %v1826 = vsub.f32 %v1802, %v1822
        %v1827 = vmul.f32 %v1823, %v1823
        %v1828 = vmul.f32 %v1824, %v1824
        %v1829 = vmul.f32 %v1825, %v1825
        %v1830 = vmul.f32 %v1826, %v1826
        %v1831 = vadd.f32 %v1827, %v1829
        %v1832 = vadd.f32 %v1828, %v1830
        %v1833 = vsel %vm1805, %v1831, 0.0
        %1834 = vadd.xlane.f32.xlu0 %v1833
        %v1835 = vpop.xlane.xlu0 %1834
        %v1836 = vsel %vm1805, %v1832, 0.0
        %1837 = vadd.xlane.f32.xlu0 %v1836
        %v1838 = vpop.xlane.xlu0 %1837
        %v1839 = vmul.f32 %v1835, %v1812
        %v1840 = vmul.f32 %v1838, %v1812
        %v1841 = vadd.f32 %v1839, 1e-05
        %v1842 = vadd.f32 %v1840, 1e-05
        %v1843 = vrsqrt.pop %v1841
        %v1844 = vrsqrt.pop %v1842
        %v1845 = vmul.f32 %v1823, %v1843
        %v1846 = vmul.f32 %v1824, %v1844
        %v1847 = vmul.f32 %v1825, %v1843
        %v1848 = vmul.f32 %v1826, %v1844
        %v1849 = vld [vmem:[%s5] sm:$0xff]
        %v1850 = vld [vmem:[%s5 + $0x8] sm:$0xf]
        %v1851 = vld [vmem:[%s6] sm:$0xff]
        %v1852 = vld [vmem:[%s6 + $0x8] sm:$0xf]
        %vm1853 = vcmask 261120
        %v1855 = vsel %vm1853, %v1851, 0
        %v1858 = vsel %vm1853, %v1852, 0
        %1860 = vmatprep.subr.mxu0 0.0
        %1861 = vmatpush1.msra.mxu0 %v1845
        %1862 = vmatprep.subr.mxu0 0.0
        %1863 = vmatpush1.msra.mxu0 %v1846
        %1864 = vmatprep.subr.mxu0 0.0
        %1865 = vmatpush1.msra.mxu0 %v1847
        %1866 = vmatprep.subr.mxu0 0.0
        %1867 = vmatpush1.msra.mxu0 %v1848
        %1868 = vmatprep.subr.mxu0 0.0
        %1869 = vmatpush1.msra.mxu0 0.0
        %1870 = vmatprep.subr.mxu0 0.0
        %1871 = vmatpush1.msra.mxu0 0.0
        %1872 = vmatprep.subr.mxu0 0.0
        %1873 = vmatpush1.msra.mxu0 0.0
        %1874 = vmatprep.subr.mxu0 0.0
        %1875 = vmatpush1.msra.mxu0 0.0
        %1876 = vmatprep.subr.mxu0 0.0
        %1877 = vmatpush1.msra.mxu0 0.0
        %1878 = vmatprep.subr.mxu0 0.0
        %1879 = vmatpush1.msra.mxu0 0.0
        %1880 = vmatprep.subr.mxu0 0.0
        %1881 = vmatpush1.msra.mxu0 0.0
        %1882 = vmatprep.subr.mxu0 0.0
        %1883 = vmatpush1.msra.mxu0 0.0
        %1884 = vmatprep.subr.mxu0 0.0
        %1885 = vmatpush1.msra.mxu0 0.0
        %1886 = vmatprep.subr.mxu0 0.0
        %1887 = vmatpush1.msra.mxu0 0.0
        %1888 = vmatprep.subr.mxu0 0.0
        %1889 = vmatpush1.msra.mxu0 0.0
        %1890 = vmatprep.subr.mxu0 0.0
        %1891 = vmatpush1.msra.mxu0 0.0
        %1892 = vmatprep.subr.mxu0 0.0
        %1893 = vmatpush1.msra.mxu0 0.0
        %1894 = vmatprep.subr.mxu0 0.0
        %1895 = vmatpush1.msra.mxu0 0.0
        %1896 = vmatprep.subr.mxu0 0.0
        %1897 = vmatpush1.msra.mxu0 0.0
        %1898 = vmatprep.subr.mxu0 0.0
        %1899 = vmatpush1.msra.mxu0 0.0
        %1900 = vmatprep.subr.mxu0 0.0
        %1901 = vmatpush1.msra.mxu0 0.0
        %1902 = vmatprep.subr.mxu0 0.0
        %1903 = vmatpush1.msra.mxu0 0.0
        %1904 = vmatprep.subr.mxu0 0.0
        %1905 = vmatpush1.msra.mxu0 0.0
        %1906 = vmatprep.subr.mxu0 0.0
        %1907 = vmatpush1.msra.mxu0 0.0
        %1908 = vmatprep.subr.mxu0 0.0
        %1909 = vmatpush1.msra.mxu0 0.0
        %1910 = vmatprep.subr.mxu0 0.0
        %1911 = vmatpush1.msra.mxu0 0.0
        %1912 = vmatprep.subr.mxu0 0.0
        %1913 = vmatpush1.msra.mxu0 0.0
        %1914 = vmatprep.subr.mxu0 0.0
        %1915 = vmatpush1.msra.mxu0 0.0
        %1916 = vmatprep.subr.mxu0 0.0
        %1917 = vmatpush1.msra.mxu0 0.0
        %1918 = vmatprep.subr.mxu0 0.0
        %1919 = vmatpush1.msra.mxu0 0.0
        %1920 = vmatprep.subr.mxu0 0.0
        %1921 = vmatpush1.msra.mxu0 0.0
        %1922 = vmatprep.subr.mxu0 0.0
        %1923 = vmatpush1.msra.mxu0 0.0
        %1924 = vmatprep.mubr.f32.mxu0 0.0
        %1925 = vmatmul.mubr.f32.gmra.mrb[0].mxu0 %v1855
        %v1926 = vpop.f32.mrb[0].mxu0
        %v1927 = vadd.f32 0.0, %v1926
        %v1928 = vpop.f32.mrb[0].mxu0
        %1929 = vmatprep.mubr.f32.mxu0 0.0
        %1930 = vmatmul.mubr.f32.gmra.mrb[0].mxu0 %v1858
        %v1931 = vpop.f32.mrb[0].mxu0
        %v1932 = vadd.f32 0.0, %v1931
        %v1933 = vpop.f32.mrb[0].mxu0
        %1934 = vdwg.mxu0
        %v1935 = vsel %vm1805, %v1927, 0.0
        %1936 = vadd.xlane.f32.xlu0 %v1935
        %v1937 = vpop.xlane.xlu0 %1936
        %vm1938 = vcmask 60416
        %v1939 = vsel %vm1938, %v1932, 0.0
        %1940 = vadd.xlane.f32.xlu0 %v1939
        %v1941 = vpop.xlane.xlu0 %1940
        %v1942 = vmul.f32 %v1937, %v1812
        %v1943 = vmul.f32 %v1941, %v1812
        %v1945 = vsel %vm1853, %v1849, 0
        %v1948 = vsel %vm1853, %v1850, 0
        %1950 = vmatprep.subr.mxu0 0.0
        %1951 = vmatpush1.msra.mxu0 %v1845
        %1952 = vmatprep.subr.mxu0 0.0
        %1953 = vmatpush1.msra.mxu0 %v1846
        %1954 = vmatprep.subr.mxu0 0.0
        %1955 = vmatpush1.msra.mxu0 %v1847
        %1956 = vmatprep.subr.mxu0 0.0
        %1957 = vmatpush1.msra.mxu0 %v1848
        %1958 = vmatprep.subr.mxu0 0.0
        %1959 = vmatpush1.msra.mxu0 0.0
        %1960 = vmatprep.subr.mxu0 0.0
        %1961 = vmatpush1.msra.mxu0 0.0
        %1962 = vmatprep.subr.mxu0 0.0
        %1963 = vmatpush1.msra.mxu0 0.0
        %1964 = vmatprep.subr.mxu0 0.0
        %1965 = vmatpush1.msra.mxu0 0.0
        %1966 = vmatprep.subr.mxu0 0.0
        %1967 = vmatpush1.msra.mxu0 0.0
        %1968 = vmatprep.subr.mxu0 0.0
        %1969 = vmatpush1.msra.mxu0 0.0
        %1970 = vmatprep.subr.mxu0 0.0
        %1971 = vmatpush1.msra.mxu0 0.0
        %1972 = vmatprep.subr.mxu0 0.0
        %1973 = vmatpush1.msra.mxu0 0.0
        %1974 = vmatprep.subr.mxu0 0.0
        %1975 = vmatpush1.msra.mxu0 0.0
        %1976 = vmatprep.subr.mxu0 0.0
        %1977 = vmatpush1.msra.mxu0 0.0
        %1978 = vmatprep.subr.mxu0 0.0
        %1979 = vmatpush1.msra.mxu0 0.0
        %1980 = vmatprep.subr.mxu0 0.0
        %1981 = vmatpush1.msra.mxu0 0.0
        %1982 = vmatprep.subr.mxu0 0.0
        %1983 = vmatpush1.msra.mxu0 0.0
        %1984 = vmatprep.subr.mxu0 0.0
        %1985 = vmatpush1.msra.mxu0 0.0
        %1986 = vmatprep.subr.mxu0 0.0
        %1987 = vmatpush1.msra.mxu0 0.0
        %1988 = vmatprep.subr.mxu0 0.0
        %1989 = vmatpush1.msra.mxu0 0.0
        %1990 = vmatprep.subr.mxu0 0.0
        %1991 = vmatpush1.msra.mxu0 0.0
        %1992 = vmatprep.subr.mxu0 0.0
        %1993 = vmatpush1.msra.mxu0 0.0
        %1994 = vmatprep.subr.mxu0 0.0
        %1995 = vmatpush1.msra.mxu0 0.0
        %1996 = vmatprep.subr.mxu0 0.0
        %1997 = vmatpush1.msra.mxu0 0.0
        %1998 = vmatprep.subr.mxu0 0.0
        %1999 = vmatpush1.msra.mxu0 0.0
        %2000 = vmatprep.subr.mxu0 0.0
        %2001 = vmatpush1.msra.mxu0 0.0
        %2002 = vmatprep.subr.mxu0 0.0
        %2003 = vmatpush1.msra.mxu0 0.0
        %2004 = vmatprep.subr.mxu0 0.0
        %2005 = vmatpush1.msra.mxu0 0.0
        %2006 = vmatprep.subr.mxu0 0.0
        %2007 = vmatpush1.msra.mxu0 0.0
        %2008 = vmatprep.subr.mxu0 0.0
        %2009 = vmatpush1.msra.mxu0 0.0
        %2010 = vmatprep.subr.mxu0 0.0
        %2011 = vmatpush1.msra.mxu0 0.0
        %2012 = vmatprep.subr.mxu0 0.0
        %2013 = vmatpush1.msra.mxu0 0.0
        %2014 = vmatprep.mubr.f32.mxu0 0.0
        %2015 = vmatmul.mubr.f32.gmra.mrb[0].mxu0 %v1945
        %v2016 = vpop.f32.mrb[0].mxu0
        %v2017 = vadd.f32 %v1942, %v2016
        %v2018 = vpop.f32.mrb[0].mxu0
        %2019 = vmatprep.mubr.f32.mxu0 0.0
        %2020 = vmatmul.mubr.f32.gmra.mrb[0].mxu0 %v1948
        %v2021 = vpop.f32.mrb[0].mxu0
        %v2022 = vadd.f32 %v1943, %v2021
        %v2023 = vpop.f32.mrb[0].mxu0
        %2024 = vdwg.mxu0
        %v2025 = vld [vmem:[%s7] sm:$0xff]
        %v2026 = vld [vmem:[%s7 + $0x8] sm:$0xf]
        %2028 = vset.pattern.permute.xlu0 0
        %2029 = vperm.xlu0 %2028, %v2025
        %v2030 = vpop.permute.xlu0 %2029
        %2033 = vset.pattern.permute.xlu0 0
        %2034 = vperm.xlu0 %2033, %v2026
        %v2035 = vpop.permute.xlu0 %2034
        %v2037 = vadd.f32 %v2017, %v2030
        %v2038 = vadd.f32 %v2022, %v2035
        %2039 = vst.msk [vmem:[%s504] sm:$0xff] %vm1805, %v2037
        %2040 = vst.msk [vmem:[%s504 + $0x8] sm:$0xf] %vm1938, %v2038
        %v2041 = vld [vmem:[%s499] sm:$0xf]
        %v2042 = vld [vmem:[%s8] sm:$0xff]
        %v2043 = vld [vmem:[%s8 + $0x8] sm:$0xff]
        %v2044 = vld [vmem:[%s8 + $0x10] sm:$0xff]
        %v2045 = vld [vmem:[%s8 + $0x18] sm:$0xff]
        %v2046 = vld [vmem:[%s9] sm:$0xff]
        %v2047 = vld [vmem:[%s9 + $0x8] sm:$0xff]
        %v2048 = vld [vmem:[%s9 + $0x10] sm:$0xff]
        %v2049 = vld [vmem:[%s9 + $0x18] sm:$0xff]
        %vm2050 = vcmask 31744
        %v2052 = vsel %vm2050, %v2046, 0
        %v2055 = vsel %vm2050, %v2047, 0
        %v2058 = vsel %vm2050, %v2048, 0
        %v2061 = vsel %vm2050, %v2049, 0
        %vm2063 = vcmask 1043456
        %v2065 = vsel %vm2063, %v2041, 0
        %2067 = vmatprep.subr.mxu0 0.0
        %2068 = vmatpush1.msra.mxu0 %v2065
        %2069 = vmatprep.subr.mxu0 0.0
        %2070 = vmatpush1.msra.mxu0 0.0
        %2071 = vmatprep.subr.mxu0 0.0
        %2072 = vmatpush1.msra.mxu0 0.0
        %2073 = vmatprep.subr.mxu0 0.0
        %2074 = vmatpush1.msra.mxu0 0.0
        %2075 = vmatprep.subr.mxu0 0.0
        %2076 = vmatpush1.msra.mxu0 0.0
        %2077 = vmatprep.subr.mxu0 0.0
        %2078 = vmatpush1.msra.mxu0 0.0
        %2079 = vmatprep.subr.mxu0 0.0
        %2080 = vmatpush1.msra.mxu0 0.0
        %2081 = vmatprep.subr.mxu0 0.0
        %2082 = vmatpush1.msra.mxu0 0.0
        %2083 = vmatprep.subr.mxu0 0.0
        %2084 = vmatpush1.msra.mxu0 0.0
        %2085 = vmatprep.subr.mxu0 0.0
        %2086 = vmatpush1.msra.mxu0 0.0
        %2087 = vmatprep.subr.mxu0 0.0
        %2088 = vmatpush1.msra.mxu0 0.0
        %2089 = vmatprep.subr.mxu0 0.0
        %2090 = vmatpush1.msra.mxu0 0.0
        %2091 = vmatprep.subr.mxu0 0.0
        %2092 = vmatpush1.msra.mxu0 0.0
        %2093 = vmatprep.subr.mxu0 0.0
        %2094 = vmatpush1.msra.mxu0 0.0
        %2095 = vmatprep.subr.mxu0 0.0
        %2096 = vmatpush1.msra.mxu0 0.0
        %2097 = vmatprep.subr.mxu0 0.0
        %2098 = vmatpush1.msra.mxu0 0.0
        %2099 = vmatprep.subr.mxu0 0.0
        %2100 = vmatpush1.msra.mxu0 0.0
        %2101 = vmatprep.subr.mxu0 0.0
        %2102 = vmatpush1.msra.mxu0 0.0
        %2103 = vmatprep.subr.mxu0 0.0
        %2104 = vmatpush1.msra.mxu0 0.0
        %2105 = vmatprep.subr.mxu0 0.0
        %2106 = vmatpush1.msra.mxu0 0.0
        %2107 = vmatprep.subr.mxu0 0.0
        %2108 = vmatpush1.msra.mxu0 0.0
        %2109 = vmatprep.subr.mxu0 0.0
        %2110 = vmatpush1.msra.mxu0 0.0
        %2111 = vmatprep.subr.mxu0 0.0
        %2112 = vmatpush1.msra.mxu0 0.0
        %2113 = vmatprep.subr.mxu0 0.0
        %2114 = vmatpush1.msra.mxu0 0.0
        %2115 = vmatprep.subr.mxu0 0.0
        %2116 = vmatpush1.msra.mxu0 0.0
        %2117 = vmatprep.subr.mxu0 0.0
        %2118 = vmatpush1.msra.mxu0 0.0
        %2119 = vmatprep.subr.mxu0 0.0
        %2120 = vmatpush1.msra.mxu0 0.0
        %2121 = vmatprep.subr.mxu0 0.0
        %2122 = vmatpush1.msra.mxu0 0.0
        %2123 = vmatprep.subr.mxu0 0.0
        %2124 = vmatpush1.msra.mxu0 0.0
        %2125 = vmatprep.subr.mxu0 0.0
        %2126 = vmatpush1.msra.mxu0 0.0
        %2127 = vmatprep.subr.mxu0 0.0
        %2128 = vmatpush1.msra.mxu0 0.0
        %2129 = vmatprep.subr.mxu0 0.0
        %2130 = vmatpush1.msra.mxu0 0.0
        %2131 = vmatprep.mubr.f32.mxu0 0.0
        %2132 = vmatmul.mubr.f32.gmra.mrb[0].mxu0 %v2052
        %v2133 = vpop.f32.mrb[0].mxu0
        %v2134 = vadd.f32 0.0, %v2133
        %v2135 = vpop.f32.mrb[0].mxu0
        %2136 = vmatprep.mubr.f32.mxu0 0.0
        %2137 = vmatmul.mubr.f32.gmra.mrb[0].mxu0 %v2055
        %v2138 = vpop.f32.mrb[0].mxu0
        %v2139 = vadd.f32 0.0, %v2138
        %v2140 = vpop.f32.mrb[0].mxu0
        %2141 = vmatprep.mubr.f32.mxu0 0.0
        %2142 = vmatmul.mubr.f32.gmra.mrb[0].mxu0 %v2058
        %v2143 = vpop.f32.mrb[0].mxu0
        %v2144 = vadd.f32 0.0, %v2143
        %v2145 = vpop.f32.mrb[0].mxu0
        %2146 = vmatprep.mubr.f32.mxu0 0.0
        %2147 = vmatmul.mubr.f32.gmra.mrb[0].mxu0 %v2061
        %v2148 = vpop.f32.mrb[0].mxu0
        %v2149 = vadd.f32 0.0, %v2148
        %v2150 = vpop.f32.mrb[0].mxu0
        %2151 = vdwg.mxu0
        %v2152 = vsel %vm1805, %v2134, 0.0
        %2153 = vadd.xlane.f32.xlu0 %v2152
        %v2154 = vpop.xlane.xlu0 %2153
        %v2155 = vsel %vm1805, %v2139, 0.0
        %2156 = vadd.xlane.f32.xlu0 %v2155
        %v2157 = vpop.xlane.xlu0 %2156
        %v2158 = vsel %vm1805, %v2144, 0.0
        %2159 = vadd.xlane.f32.xlu0 %v2158
        %v2160 = vpop.xlane.xlu0 %2159
        %v2161 = vsel %vm1805, %v2149, 0.0
        %2162 = vadd.xlane.f32.xlu0 %v2161
        %v2163 = vpop.xlane.xlu0 %2162
        %v2164 = vmul.f32 %v2154, %v1812
        %v2165 = vmul.f32 %v2157, %v1812
        %v2166 = vmul.f32 %v2160, %v1812
        %v2167 = vmul.f32 %v2163, %v1812
        %v2169 = vsel %vm2050, %v2042, 0
        %v2172 = vsel %vm2050, %v2043, 0
        %v2175 = vsel %vm2050, %v2044, 0
        %v2178 = vsel %vm2050, %v2045, 0
        %2180 = vmatprep.subr.mxu0 0.0
        %2181 = vmatpush1.msra.mxu0 %v2065
        %2182 = vmatprep.subr.mxu0 0.0
        %2183 = vmatpush1.msra.mxu0 0.0
        %2184 = vmatprep.subr.mxu0 0.0
        %2185 = vmatpush1.msra.mxu0 0.0
        %2186 = vmatprep.subr.mxu0 0.0
        %2187 = vmatpush1.msra.mxu0 0.0
        %2188 = vmatprep.subr.mxu0 0.0
        %2189 = vmatpush1.msra.mxu0 0.0
        %2190 = vmatprep.subr.mxu0 0.0
        %2191 = vmatpush1.msra.mxu0 0.0
        %2192 = vmatprep.subr.mxu0 0.0
        %2193 = vmatpush1.msra.mxu0 0.0
        %2194 = vmatprep.subr.mxu0 0.0
        %2195 = vmatpush1.msra.mxu0 0.0
        %2196 = vmatprep.subr.mxu0 0.0
        %2197 = vmatpush1.msra.mxu0 0.0
        %2198 = vmatprep.subr.mxu0 0.0
        %2199 = vmatpush1.msra.mxu0 0.0
        %2200 = vmatprep.subr.mxu0 0.0
        %2201 = vmatpush1.msra.mxu0 0.0
        %2202 = vmatprep.subr.mxu0 0.0
        %2203 = vmatpush1.msra.mxu0 0.0
        %2204 = vmatprep.subr.mxu0 0.0
        %2205 = vmatpush1.msra.mxu0 0.0
        %2206 = vmatprep.subr.mxu0 0.0
        %2207 = vmatpush1.msra.mxu0 0.0
        %2208 = vmatprep.subr.mxu0 0.0
        %2209 = vmatpush1.msra.mxu0 0.0
        %2210 = vmatprep.subr.mxu0 0.0
        %2211 = vmatpush1.msra.mxu0 0.0
        %2212 = vmatprep.subr.mxu0 0.0
        %2213 = vmatpush1.msra.mxu0 0.0
        %2214 = vmatprep.subr.mxu0 0.0
        %2215 = vmatpush1.msra.mxu0 0.0
        %2216 = vmatprep.subr.mxu0 0.0
        %2217 = vmatpush1.msra.mxu0 0.0
        %2218 = vmatprep.subr.mxu0 0.0
        %2219 = vmatpush1.msra.mxu0 0.0
        %2220 = vmatprep.subr.mxu0 0.0
        %2221 = vmatpush1.msra.mxu0 0.0
        %2222 = vmatprep.subr.mxu0 0.0
        %2223 = vmatpush1.msra.mxu0 0.0
        %2224 = vmatprep.subr.mxu0 0.0
        %2225 = vmatpush1.msra.mxu0 0.0
        %2226 = vmatprep.subr.mxu0 0.0
        %2227 = vmatpush1.msra.mxu0 0.0
        %2228 = vmatprep.subr.mxu0 0.0
        %2229 = vmatpush1.msra.mxu0 0.0
        %2230 = vmatprep.subr.mxu0 0.0
        %2231 = vmatpush1.msra.mxu0 0.0
        %2232 = vmatprep.subr.mxu0 0.0
        %2233 = vmatpush1.msra.mxu0 0.0
        %2234 = vmatprep.subr.mxu0 0.0
        %2235 = vmatpush1.msra.mxu0 0.0
        %2236 = vmatprep.subr.mxu0 0.0
        %2237 = vmatpush1.msra.mxu0 0.0
        %2238 = vmatprep.subr.mxu0 0.0
        %2239 = vmatpush1.msra.mxu0 0.0
        %2240 = vmatprep.subr.mxu0 0.0
        %2241 = vmatpush1.msra.mxu0 0.0
        %2242 = vmatprep.subr.mxu0 0.0
        %2243 = vmatpush1.msra.mxu0 0.0
        %2244 = vmatprep.mubr.f32.mxu0 0.0
        %2245 = vmatmul.mubr.f32.gmra.mrb[0].mxu0 %v2169
        %v2246 = vpop.f32.mrb[0].mxu0
        %v2247 = vadd.f32 %v2164, %v2246
        %v2248 = vpop.f32.mrb[0].mxu0
        %2249 = vmatprep.mubr.f32.mxu0 0.0
        %2250 = vmatmul.mubr.f32.gmra.mrb[0].mxu0 %v2172
        %v2251 = vpop.f32.mrb[0].mxu0
        %v2252 = vadd.f32 %v2165, %v2251
        %v2253 = vpop.f32.mrb[0].mxu0
        %2254 = vmatprep.mubr.f32.mxu0 0.0
        %2255 = vmatmul.mubr.f32.gmra.mrb[0].mxu0 %v2175
        %v2256 = vpop.f32.mrb[0].mxu0
        %v2257 = vadd.f32 %v2166, %v2256
        %v2258 = vpop.f32.mrb[0].mxu0
        %2259 = vmatprep.mubr.f32.mxu0 0.0
        %2260 = vmatmul.mubr.f32.gmra.mrb[0].mxu0 %v2178
        %v2261 = vpop.f32.mrb[0].mxu0
        %v2262 = vadd.f32 %v2167, %v2261
        %v2263 = vpop.f32.mrb[0].mxu0
        %2264 = vdwg.mxu0
        %v2265 = vmul.f32 %v2247, %v2247
        %v2266 = vmul.f32 %v2252, %v2252
        %v2267 = vmul.f32 %v2257, %v2257
        %v2268 = vmul.f32 %v2262, %v2262
        %v2269 = vadd.f32 %v2265, %v2267
        %v2270 = vadd.f32 %v2266, %v2268
        %v2271 = vrsqrt.pop %v2269
        %v2272 = vmul.f32 %v2269, %v2271
        %vm2273 = vcmp.eq.f32.partialorder %v2269, inf
        %v2274 = vsel %vm2273, %v2269, %v2272
        %vm2275 = vcmp.eq.f32.partialorder %v2269, 0.0
        %v2276 = vand.u32 %v2269, 2147483648
        %v2277 = vsel %vm2275, %v2276, %v2274
        %v2278 = vrsqrt.pop %v2270
        %v2279 = vmul.f32 %v2270, %v2278
        %vm2280 = vcmp.eq.f32.partialorder %v2270, inf
        %v2281 = vsel %vm2280, %v2270, %v2279
        %vm2282 = vcmp.eq.f32.partialorder %v2270, 0.0
        %v2283 = vand.u32 %v2270, 2147483648
        %v2284 = vsel %vm2282, %v2283, %v2281
        %v2285 = vld [vmem:[%s12] sm:$0xff]
        %v2286 = vld [vmem:[%s12 + $0x8] sm:$0xff]
        %2288 = vset.pattern.permute.xlu0 0
        %2289 = vperm.xlu0 %2288, %v2285
        %v2290 = vpop.permute.xlu0 %2289
        %2293 = vset.pattern.permute.xlu0 0
        %2294 = vperm.xlu0 %2293, %v2286
        %v2295 = vpop.permute.xlu0 %2294
        %v2297 = vadd.f32 %v2277, %v2290
        %v2298 = vadd.f32 %v2284, %v2295
        %v2299 = vmax.f32 %v2297, 0.0
        %v2300 = vmax.f32 %v2298, 0.0
        %v2301 = vadd.f32 %v2277, 0.01
        %v2302 = vadd.f32 %v2284, 0.01
        %v2303 = vrcp.pop %v2301
        %v2304 = vrcp.pop %v2302
        %v2305 = vmul.f32 %v2299, %v2303
        %v2306 = vmul.f32 %v2300, %v2304
        %v2307 = vmul.f32 %v2247, %v2305
        %v2308 = vmul.f32 %v2252, %v2306
        %v2309 = vmul.f32 %v2257, %v2305
        %v2310 = vmul.f32 %v2262, %v2306
        %v2311 = vld [vmem:[%s10] sm:$0xff]
        %v2312 = vld [vmem:[%s10 + $0x8] sm:$0xf]
        %v2313 = vld [vmem:[%s11] sm:$0xff]
        %v2314 = vld [vmem:[%s11 + $0x8] sm:$0xf]
        %v2316 = vsel %vm1853, %v2313, 0
        %v2319 = vsel %vm1853, %v2314, 0
        %2321 = vmatprep.subr.mxu0 0.0
        %2322 = vmatpush1.msra.mxu0 %v2307
        %2323 = vmatprep.subr.mxu0 0.0
        %2324 = vmatpush1.msra.mxu0 %v2308
        %2325 = vmatprep.subr.mxu0 0.0
        %2326 = vmatpush1.msra.mxu0 %v2309
        %2327 = vmatprep.subr.mxu0 0.0
        %2328 = vmatpush1.msra.mxu0 %v2310
        %2329 = vmatprep.subr.mxu0 0.0
        %2330 = vmatpush1.msra.mxu0 0.0
        %2331 = vmatprep.subr.mxu0 0.0
        %2332 = vmatpush1.msra.mxu0 0.0
        %2333 = vmatprep.subr.mxu0 0.0
        %2334 = vmatpush1.msra.mxu0 0.0
        %2335 = vmatprep.subr.mxu0 0.0
        %2336 = vmatpush1.msra.mxu0 0.0
        %2337 = vmatprep.subr.mxu0 0.0
        %2338 = vmatpush1.msra.mxu0 0.0
        %2339 = vmatprep.subr.mxu0 0.0
        %2340 = vmatpush1.msra.mxu0 0.0
        %2341 = vmatprep.subr.mxu0 0.0
        %2342 = vmatpush1.msra.mxu0 0.0
        %2343 = vmatprep.subr.mxu0 0.0
        %2344 = vmatpush1.msra.mxu0 0.0
        %2345 = vmatprep.subr.mxu0 0.0
        %2346 = vmatpush1.msra.mxu0 0.0
        %2347 = vmatprep.subr.mxu0 0.0
        %2348 = vmatpush1.msra.mxu0 0.0
        %2349 = vmatprep.subr.mxu0 0.0
        %2350 = vmatpush1.msra.mxu0 0.0
        %2351 = vmatprep.subr.mxu0 0.0
        %2352 = vmatpush1.msra.mxu0 0.0
        %2353 = vmatprep.subr.mxu0 0.0
        %2354 = vmatpush1.msra.mxu0 0.0
        %2355 = vmatprep.subr.mxu0 0.0
        %2356 = vmatpush1.msra.mxu0 0.0
        %2357 = vmatprep.subr.mxu0 0.0
        %2358 = vmatpush1.msra.mxu0 0.0
        %2359 = vmatprep.subr.mxu0 0.0
        %2360 = vmatpush1.msra.mxu0 0.0
        %2361 = vmatprep.subr.mxu0 0.0
        %2362 = vmatpush1.msra.mxu0 0.0
        %2363 = vmatprep.subr.mxu0 0.0
        %2364 = vmatpush1.msra.mxu0 0.0
        %2365 = vmatprep.subr.mxu0 0.0
        %2366 = vmatpush1.msra.mxu0 0.0
        %2367 = vmatprep.subr.mxu0 0.0
        %2368 = vmatpush1.msra.mxu0 0.0
        %2369 = vmatprep.subr.mxu0 0.0
        %2370 = vmatpush1.msra.mxu0 0.0
        %2371 = vmatprep.subr.mxu0 0.0
        %2372 = vmatpush1.msra.mxu0 0.0
        %2373 = vmatprep.subr.mxu0 0.0
        %2374 = vmatpush1.msra.mxu0 0.0
        %2375 = vmatprep.subr.mxu0 0.0
        %2376 = vmatpush1.msra.mxu0 0.0
        %2377 = vmatprep.subr.mxu0 0.0
        %2378 = vmatpush1.msra.mxu0 0.0
        %2379 = vmatprep.subr.mxu0 0.0
        %2380 = vmatpush1.msra.mxu0 0.0
        %2381 = vmatprep.subr.mxu0 0.0
        %2382 = vmatpush1.msra.mxu0 0.0
        %2383 = vmatprep.subr.mxu0 0.0
        %2384 = vmatpush1.msra.mxu0 0.0
        %2385 = vmatprep.mubr.f32.mxu0 0.0
        %2386 = vmatmul.mubr.f32.gmra.mrb[0].mxu0 %v2316
        %v2387 = vpop.f32.mrb[0].mxu0
        %v2388 = vadd.f32 0.0, %v2387
        %v2389 = vpop.f32.mrb[0].mxu0
        %2390 = vmatprep.mubr.f32.mxu0 0.0
        %2391 = vmatmul.mubr.f32.gmra.mrb[0].mxu0 %v2319
        %v2392 = vpop.f32.mrb[0].mxu0
        %v2393 = vadd.f32 0.0, %v2392
        %v2394 = vpop.f32.mrb[0].mxu0
        %2395 = vdwg.mxu0
        %v2396 = vsel %vm1805, %v2388, 0.0
        %2397 = vadd.xlane.f32.xlu0 %v2396
        %v2398 = vpop.xlane.xlu0 %2397
        %v2399 = vsel %vm1938, %v2393, 0.0
        %2400 = vadd.xlane.f32.xlu0 %v2399
        %v2401 = vpop.xlane.xlu0 %2400
        %v2402 = vmul.f32 %v2398, %v1812
        %v2403 = vmul.f32 %v2401, %v1812
        %v2405 = vsel %vm1853, %v2311, 0
        %v2408 = vsel %vm1853, %v2312, 0
        %2410 = vmatprep.subr.mxu0 0.0
        %2411 = vmatpush1.msra.mxu0 %v2307
        %2412 = vmatprep.subr.mxu0 0.0
        %2413 = vmatpush1.msra.mxu0 %v2308
        %2414 = vmatprep.subr.mxu0 0.0
        %2415 = vmatpush1.msra.mxu0 %v2309
        %2416 = vmatprep.subr.mxu0 0.0
        %2417 = vmatpush1.msra.mxu0 %v2310
        %2418 = vmatprep.subr.mxu0 0.0
        %2419 = vmatpush1.msra.mxu0 0.0
        %2420 = vmatprep.subr.mxu0 0.0
        %2421 = vmatpush1.msra.mxu0 0.0
        %2422 = vmatprep.subr.mxu0 0.0
        %2423 = vmatpush1.msra.mxu0 0.0
        %2424 = vmatprep.subr.mxu0 0.0
        %2425 = vmatpush1.msra.mxu0 0.0
        %2426 = vmatprep.subr.mxu0 0.0
        %2427 = vmatpush1.msra.mxu0 0.0
        %2428 = vmatprep.subr.mxu0 0.0
        %2429 = vmatpush1.msra.mxu0 0.0
        %2430 = vmatprep.subr.mxu0 0.0
        %2431 = vmatpush1.msra.mxu0 0.0
        %2432 = vmatprep.subr.mxu0 0.0
        %2433 = vmatpush1.msra.mxu0 0.0
        %2434 = vmatprep.subr.mxu0 0.0
        %2435 = vmatpush1.msra.mxu0 0.0
        %2436 = vmatprep.subr.mxu0 0.0
        %2437 = vmatpush1.msra.mxu0 0.0
        %2438 = vmatprep.subr.mxu0 0.0
        %2439 = vmatpush1.msra.mxu0 0.0
        %2440 = vmatprep.subr.mxu0 0.0
        %2441 = vmatpush1.msra.mxu0 0.0
        %2442 = vmatprep.subr.mxu0 0.0
        %2443 = vmatpush1.msra.mxu0 0.0
        %2444 = vmatprep.subr.mxu0 0.0
        %2445 = vmatpush1.msra.mxu0 0.0
        %2446 = vmatprep.subr.mxu0 0.0
        %2447 = vmatpush1.msra.mxu0 0.0
        %2448 = vmatprep.subr.mxu0 0.0
        %2449 = vmatpush1.msra.mxu0 0.0
        %2450 = vmatprep.subr.mxu0 0.0
        %2451 = vmatpush1.msra.mxu0 0.0
        %2452 = vmatprep.subr.mxu0 0.0
        %2453 = vmatpush1.msra.mxu0 0.0
        %2454 = vmatprep.subr.mxu0 0.0
        %2455 = vmatpush1.msra.mxu0 0.0
        %2456 = vmatprep.subr.mxu0 0.0
        %2457 = vmatpush1.msra.mxu0 0.0
        %2458 = vmatprep.subr.mxu0 0.0
        %2459 = vmatpush1.msra.mxu0 0.0
        %2460 = vmatprep.subr.mxu0 0.0
        %2461 = vmatpush1.msra.mxu0 0.0
        %2462 = vmatprep.subr.mxu0 0.0
        %2463 = vmatpush1.msra.mxu0 0.0
        %2464 = vmatprep.subr.mxu0 0.0
        %2465 = vmatpush1.msra.mxu0 0.0
        %2466 = vmatprep.subr.mxu0 0.0
        %2467 = vmatpush1.msra.mxu0 0.0
        %2468 = vmatprep.subr.mxu0 0.0
        %2469 = vmatpush1.msra.mxu0 0.0
        %2470 = vmatprep.subr.mxu0 0.0
        %2471 = vmatpush1.msra.mxu0 0.0
        %2472 = vmatprep.subr.mxu0 0.0
        %2473 = vmatpush1.msra.mxu0 0.0
        %2474 = vmatprep.mubr.f32.mxu0 0.0
        %2475 = vmatmul.mubr.f32.gmra.mrb[0].mxu0 %v2405
        %v2476 = vpop.f32.mrb[0].mxu0
        %v2477 = vadd.f32 %v2402, %v2476
        %v2478 = vpop.f32.mrb[0].mxu0
        %2479 = vmatprep.mubr.f32.mxu0 0.0
        %2480 = vmatmul.mubr.f32.gmra.mrb[0].mxu0 %v2408
        %v2481 = vpop.f32.mrb[0].mxu0
        %v2482 = vadd.f32 %v2403, %v2481
        %v2483 = vpop.f32.mrb[0].mxu0
        %2484 = vdwg.mxu0
        %vm2485 = vcmask 62464
        %v2486 = vsel %vm2485, %v2477, 0.0
        %2487 = vadd.xlane.f32.xlu0 %v2486
        %v2488 = vpop.xlane.xlu0 %2487
        %v2489 = vmul.f32 %v2488, %v1812
        %vm2490 = vcmask 64518
        %v2491 = vsel %vm2490, %v2477, 0.0
        %2492 = vadd.xlane.f32.xlu0 %v2491
        %v2493 = vpop.xlane.xlu0 %2492
        %v2494 = vsel %vm1938, %v2482, 0.0
        %2495 = vadd.xlane.f32.xlu0 %v2494
        %v2496 = vpop.xlane.xlu0 %2495
        %v2497 = vmul.f32 %v2493, %v1812
        %v2498 = vmul.f32 %v2496, %v1812
        %v2499 = vsub.f32 %v2477, %v2489
        %v2500 = vsub.f32 %v2477, %v2497
        %v2501 = vsub.f32 %v2482, %v2498
        %v2502 = vmul.f32 %v2499, %v2499
        %v2503 = vmul.f32 %v2500, %v2500
        %v2504 = vmul.f32 %v2501, %v2501
        %vm2507 = vcmask 1041408
        %v2508 = vrot.slane %v2503, 6
        %v2509 = vrot.slane %v2504, 6
        %v2510 = vsel %vm2507, %v2508, %v2509
        %v2512 = vadd.f32 %v2502, %v2510
        %v2513 = vsel %vm2485, %v2512, 0.0
        %2514 = vadd.xlane.f32.xlu0 %v2513
        %v2515 = vpop.xlane.xlu0 %2514
        %v2516 = vmul.f32 %v2515, %v1812
        %v2517 = vadd.f32 %v2516, 1e-05
        %v2518 = vrsqrt.pop %v2517
        %v2519 = vmul.f32 %v2499, %v2518
        %v2521 = vrot.slane %v2518, 2
        %v2523 = vmul.f32 %v2500, %v2521
        %v2524 = vmul.f32 %v2501, %v2521
        %vm2525 = vcmask 1045504
        %v2526 = vsel %vm2525, %v2519, %v2523
        %2527 = vst.msk [vmem:[%s509] sm:$0xff] %vm1805, %v2526
        %2528 = vst.msk [vmem:[%s509 + $0x8] sm:$0xf] %vm1938, %v2524
        %p2529 = scmp.lt.s32.totalorder %s27, 1
        %s2530 = scalar_select %p2529, %s27, 1
        %s2531 = smul.addr %s2530, 2
        %s2532 = smul.addr %s2531, 8
        %s2533 = scalar_lea.vmem %s13, %s2532
        %p2534 = scmp.lt.s32.totalorder %s27, 1
        %s2535 = scalar_select %p2534, %s27, 1
        %s2536 = smul.addr %s2535, 2
        %s2537 = smul.addr %s2536, 8
        %s2538 = scalar_lea.vmem %s14, %s2537
        // Predicated region
        $region77: #{_lambda_.1} parent=71 // pred_check
          %p2539 = pneg %p328
        $region78: #{_lambda_.1} parent=71 // pred_check_branch
          %2541 = sbr.rel (%p2539) target = $region80
        $region79: #{_lambda_.1} parent=71 // pred_region
          _
        $region80: #{_lambda_.1} parent=71 // pred_fallthru
          _
        // Predicated region
        $region81: #{_lambda_.1} parent=71 // pred_check
          %p2542 = pneg %p354
        $region82: #{_lambda_.1} parent=71 // pred_check_branch
          %2544 = sbr.rel (%p2542) target = $region84
        $region83: #{_lambda_.1} parent=71 // pred_region
          _
        $region84: #{_lambda_.1} parent=71 // pred_fallthru
          _
      $region72: #{_lambda_.1} parent=5 // pred_fallthru
        _
      %p2545 = scmp.le.s32.totalorder 2, %s22
      // Predicated region
      $region85: #{_lambda_.1} parent=5 // pred_check
        %p2546 = pneg %p2545
      $region86: #{_lambda_.1} parent=5 // pred_check_branch
        %2548 = sbr.rel (%p2546) target = $region88
      $region87: #{_lambda_.1} parent=5 // pred_region
        %s2549 = ssub.s32 %s22, 2
        // Predicated region
        $region89: #{_lambda_.1} parent=87 // pred_check
          %p2550 = pneg %p334
        $region90: #{_lambda_.1} parent=87 // pred_check_branch
          %2552 = sbr.rel (%p2550) target = $region92
        $region91: #{_lambda_.1} parent=87 // pred_region
          %p2553 = scmp.lt.s32.totalorder %s28, 1
          %s2554 = scalar_select %p2553, %s28, 1
          %s2555 = smul.addr %s2554, 2
          %s2556 = smul.addr %s2555, 8
          %s2557 = scalar_lea.vmem %s13, %s2556
        $region92: #{_lambda_.1} parent=87 // pred_fallthru
          _
        // Predicated region
        $region93: #{_lambda_.1} parent=87 // pred_check
          %p2558 = pneg %p360
        $region94: #{_lambda_.1} parent=87 // pred_check_branch
          %2560 = sbr.rel (%p2558) target = $region96
        $region95: #{_lambda_.1} parent=87 // pred_region
          %p2561 = scmp.lt.s32.totalorder %s28, 1
          %s2562 = scalar_select %p2561, %s28, 1
          %s2563 = smul.addr %s2562, 2
          %s2564 = smul.addr %s2563, 8
          %s2565 = scalar_lea.vmem %s14, %s2564
        $region96: #{_lambda_.1} parent=87 // pred_fallthru
          _
      $region88: #{_lambda_.1} parent=5 // pred_fallthru
        _
    $region6: #{_lambda_.1} parent=1 // loop_footer
      %s26 = sadd.s32 1, %s22
    $region7: #{_lambda_.1} parent=1 // loop_footer_branch
      %21 = sbr.rel target = $region3
    $region8: #{_lambda_.1} parent=1 // loop_exit
      _
    %2566 = vsyncpa [#allocation3], 1
    %s2567 = scalar_lea.sflag [#allocation3], 1
    %2568 = vsyncpa %s2567, 1

</llo_original>
